<compile_context>
chip_gen: v5e
topology: v5e:2x2
jax: 0.10.0
libtpu: 0.0.40
codegen_flags: <defaults>
</compile_context>

<pallas_src>
import numpy as np
import jax
import jax.numpy as jnp
from jax.experimental import pallas as pl
from jax.experimental.pallas import tpu as pltpu

VMEM = pltpu.MemorySpace.VMEM
SMEM = pltpu.MemorySpace.SMEM

# Order in which the fused kernel consumes the flattened parameter list.
LAYER_ORDER = (
    "layer1", "layer2", "layer3", "layer4", "layer5",
    "decode4_up", "decode4_cat", "decode3_up", "decode3_cat",
    "decode2_up", "decode2_cat",
)


# ------------------------------ fused kernel ------------------------------- #

def fused_unet_diffusion_kernel(*refs):
    """perturb_x -> UNet (split-weight concats) -> tanh head -> masked MSE."""
    x_ref, noise_ref, his_ref, scal_ref = refs[:4]
    o_ref = refs[-1]
    p = iter(refs[4:-1])

    def nxt():
        return next(p)[...]

    def bn_tail(y):
        """bias -> LeakyReLU(0.01) -> BatchNorm1d (training batch stats) -> affine."""
        aux = nxt()                                       # (3, D): bias, gamma, beta
        y = y + aux[0:1]
        y = jnp.where(y > 0, y, 0.01 * y)
        mean = jnp.mean(y, axis=0, keepdims=True)         # stats over all B*N rows
        diff = y - mean
        var = jnp.mean(diff * diff, axis=0, keepdims=True)    # biased variance
        scale = jax.lax.rsqrt(var + 1e-5) * aux[1:2]      # fused (1, D) scale row
        return diff * scale + aux[2:3]

    def lbn(x):
        w = nxt()
        return bn_tail(jnp.dot(x, w, preferred_element_type=jnp.float32))

    def lbn_cat(x_up, x_skip):
        """LinearLayer on cat([x_up, x_skip]) via split-weight accumulation."""
        w_up, w_skip = nxt(), nxt()
        y = jnp.dot(x_up, w_up, preferred_element_type=jnp.float32)
        y = y + jnp.dot(x_skip, w_skip, preferred_element_type=jnp.float32)
        return bn_tail(y)

    # Per-row scalars packed as (M, 4): [c1, c2, t, mask]
    scal = scal_ref[...]
    c1, c2, t_row, m = scal[:, 0:1], scal[:, 1:2], scal[:, 2:3], scal[:, 3:4]

    # perturb_x (inlined): per-row diffusion coefficients (already broadcast
    # over obs_num in glue).
    noise = noise_ref[...]                                # (M, 50)
    perturbed = c1 * x_ref[...] + c2 * noise

    # layer1: cat([perturbed, his, t]) @ W1  ==  three partial dots.
    w_x, w_h, w_t = nxt(), nxt(), nxt()
    y1 = jnp.dot(perturbed, w_x, preferred_element_type=jnp.float32)
    y1 = y1 + jnp.dot(his_ref[...], w_h, preferred_element_type=jnp.float32)
    y1 = y1 + t_row * w_t                                 # (M,1) * (1,64)
    e1 = bn_tail(y1)                                      # (M, 64)

    e2 = lbn(e1)                                          # (M, 128)
    e3 = lbn(e2)                                          # (M, 256)
    e4 = lbn(e3)                                          # (M, 512)
    f = lbn(e4)                                           # (M, 64)

    u4 = lbn(f)                                           # (M, 256)
    d4 = lbn_cat(u4, e4)                                  # (M, 256)
    u3 = lbn(d4)                                          # (M, 128)
    d3 = lbn_cat(u3, e3)                                  # (M, 128)
    u2 = lbn(d3)                                          # (M, 64)
    d2 = lbn_cat(u2, e2)                                  # (M, 64)

    # Output head: Linear -> Tanh.
    ow, ob = nxt(), nxt()
    est = jnp.tanh(jnp.dot(d2, ow, preferred_element_type=jnp.float32) + ob)

    # Masked MSE: sum((est-noise)^2 * mask_bcast) / sum(mask_bcast).
    diff = est - noise
    num = jnp.sum(diff * diff * m)
    den = jnp.sum(m) * float(est.shape[-1])
    o_ref[0, 0] = num / den


# --------------------------- model forward (glue) --------------------------- #

def flatten_params(params):
    flat = []
    for name in LAYER_ORDER:
        p = params[name]
        flat += list(p["ws"]) + [p["aux"]]
    flat += [params["out_w"], params["out_b"]]
    return flat


def gaussian_diffusion_forward(params, buffers, data, key):
    x_delt = data["predicted_his_traj_delt"].astype(jnp.float32)   # (B,N,10,5)
    his = data["predicted_his_traj"].astype(jnp.float32)           # (B,N,11,5)
    mask = data["predicted_traj_mask"].astype(jnp.float32)         # (B,N)

    B, N, HD, D = x_delt.shape
    M = B * N

    k_t, k_noise = jax.random.split(key)
    t = jax.random.randint(k_t, (B,), 0, buffers["num_time_steps"])
    noise = jax.random.normal(k_noise, x_delt.shape, dtype=jnp.float32)

    # extract(): per-batch coefficients, broadcast over obs rows (glue gather),
    # packed with t and the mask into one (M, 4) scalar slab.
    c1 = jnp.repeat(buffers["sqrt_alphas_cum_prod"][t], N)
    c2 = jnp.repeat(buffers["sqrt_one_minus_alphas_cum_prod"][t], N)
    t_row = jnp.repeat(t.astype(jnp.float32), N)
    scal = jnp.stack([c1, c2, t_row, mask.reshape(M)], axis=-1)    # (M, 4)

    x_flat = x_delt.reshape(M, HD * D)
    noise_flat = noise.reshape(M, HD * D)
    his_flat = his.reshape(M, -1)

    args = [x_flat, noise_flat, his_flat, scal]
    args += flatten_params(params)

    loss = pl.pallas_call(
        fused_unet_diffusion_kernel,
        out_shape=jax.ShapeDtypeStruct((1, 1), jnp.float32),
        in_specs=[pl.BlockSpec(memory_space=VMEM)] * len(args),
        out_specs=pl.BlockSpec(memory_space=SMEM),
    )(*args)
    return loss[0, 0]


# ------------------------------ parameter init ------------------------------ #

def init_linear_layer(key, din, dout, w_splits=None):
    kw, kb = jax.random.split(key)
    w = jax.random.normal(kw, (din, dout), jnp.float32) / np.sqrt(din)
    if w_splits is None:
        ws = (w,)
    else:
        assert sum(w_splits) == din
        edges = np.cumsum((0,) + tuple(w_splits))
        ws = tuple(w[int(edges[i]):int(edges[i + 1])] for i in range(len(w_splits)))
    bias = jax.random.normal(kb, (1, dout), jnp.float32) * 0.01
    gamma = jnp.ones((1, dout), jnp.float32)               # BN defaults
    beta = jnp.zeros((1, dout), jnp.float32)
    return {
        "ws": ws,                                           # pre-split weights
        "aux": jnp.concatenate([bias, gamma, beta], axis=0),  # packed (3, dout)
    }


def build_params(key, input_dim, conditional_dim, his_stp):
    his_delt = his_stp - 1
    d_x = his_delt * input_dim            # 50
    d_h = conditional_dim * his_stp       # 55
    dims = [64, 128, 256, 512]
    layer_defs = {
        "layer1": (d_x + d_h + 1, dims[0], (d_x, d_h, 1)),
        "layer2": (dims[0], dims[1], None),
        "layer3": (dims[1], dims[2], None),
        "layer4": (dims[2], dims[3], None),
        "layer5": (dims[3], 64, None),
        "decode4_up": (64, dims[2], None),
        "decode4_cat": (dims[2] + dims[3], dims[2], (dims[2], dims[3])),
        "decode3_up": (dims[2], dims[1], None),
        "decode3_cat": (dims[1] + dims[2], dims[1], (dims[1], dims[2])),
        "decode2_up": (dims[1], dims[0], None),
        "decode2_cat": (dims[0] + dims[1], dims[0], (dims[0], dims[1])),
    }
    keys = jax.random.split(key, len(layer_defs) + 1)
    params = {
        name: init_linear_layer(k, din, dout, splits)
        for k, (name, (din, dout, splits)) in zip(keys[:-1], layer_defs.items())
    }
    ko_w, ko_b = jax.random.split(keys[-1])
    params["out_w"] = jax.random.normal(
        ko_w, (dims[0], d_x), jnp.float32) / np.sqrt(dims[0])
    params["out_b"] = jax.random.normal(ko_b, (1, d_x), jnp.float32) * 0.01
    return params


# ----------------------------------- main ----------------------------------- #

if __name__ == "__main__":
    INPUT_DIM, COND_DIM, HIS_STP = 5, 5, 11
    HIS_DELT = HIS_STP - 1
    B, N = 2, 8                      # batch=2, obs_num=8  -> M = 16 rows
    T = 10                           # num diffusion time steps

    # GaussianDiffusion buffers (betas schedule, synthetic)
    betas = np.linspace(1e-4, 0.02, T).astype(np.float64)
    alphas = 1.0 - betas
    acp = np.cumprod(alphas)
    buffers = {
        "num_time_steps": T,
        "sqrt_alphas_cum_prod": jnp.asarray(np.sqrt(acp), jnp.float32),
        "sqrt_one_minus_alphas_cum_prod": jnp.asarray(np.sqrt(1.0 - acp), jnp.float32),
    }

    root = jax.random.PRNGKey(0)
    k_param, k_x, k_his, k_mask, k_run = jax.random.split(root, 5)

    params = build_params(k_param, INPUT_DIM, COND_DIM, HIS_STP)

    mask = (jax.random.uniform(k_mask, (B, N)) > 0.3).astype(jnp.float32)
    mask = mask.at[0, 0].set(1.0)    # guarantee a non-zero denominator
    data = {
        "predicted_his_traj_delt": jax.random.normal(
            k_x, (B, N, HIS_DELT, INPUT_DIM), jnp.float32),
        "predicted_his_traj": jax.random.normal(
            k_his, (B, N, HIS_STP, COND_DIM), jnp.float32),
        "predicted_traj_mask": mask,
    }

    loss = gaussian_diffusion_forward(params, buffers, data, k_run)
    loss = jax.block_until_ready(loss)
    assert loss.shape == () and bool(jnp.isfinite(loss))
    print("KERNEL_OK")
</pallas_src>

<mosaic_0001>
module attributes {stable_mosaic.version = 11 : i64} {
  func.func @fused_unet_diffusion_kernel(%arg0: memref<16x50xf32, #tpu.memory_space<vmem>>, %arg1: memref<16x50xf32, #tpu.memory_space<vmem>>, %arg2: memref<16x55xf32, #tpu.memory_space<vmem>>, %arg3: memref<16x4xf32, #tpu.memory_space<vmem>>, %arg4: memref<50x64xf32, #tpu.memory_space<vmem>>, %arg5: memref<55x64xf32, #tpu.memory_space<vmem>>, %arg6: memref<1x64xf32, #tpu.memory_space<vmem>>, %arg7: memref<3x64xf32, #tpu.memory_space<vmem>>, %arg8: memref<64x128xf32, #tpu.memory_space<vmem>>, %arg9: memref<3x128xf32, #tpu.memory_space<vmem>>, %arg10: memref<128x256xf32, #tpu.memory_space<vmem>>, %arg11: memref<3x256xf32, #tpu.memory_space<vmem>>, %arg12: memref<256x512xf32, #tpu.memory_space<vmem>>, %arg13: memref<3x512xf32, #tpu.memory_space<vmem>>, %arg14: memref<512x64xf32, #tpu.memory_space<vmem>>, %arg15: memref<3x64xf32, #tpu.memory_space<vmem>>, %arg16: memref<64x256xf32, #tpu.memory_space<vmem>>, %arg17: memref<3x256xf32, #tpu.memory_space<vmem>>, %arg18: memref<256x256xf32, #tpu.memory_space<vmem>>, %arg19: memref<512x256xf32, #tpu.memory_space<vmem>>, %arg20: memref<3x256xf32, #tpu.memory_space<vmem>>, %arg21: memref<256x128xf32, #tpu.memory_space<vmem>>, %arg22: memref<3x128xf32, #tpu.memory_space<vmem>>, %arg23: memref<128x128xf32, #tpu.memory_space<vmem>>, %arg24: memref<256x128xf32, #tpu.memory_space<vmem>>, %arg25: memref<3x128xf32, #tpu.memory_space<vmem>>, %arg26: memref<128x64xf32, #tpu.memory_space<vmem>>, %arg27: memref<3x64xf32, #tpu.memory_space<vmem>>, %arg28: memref<64x64xf32, #tpu.memory_space<vmem>>, %arg29: memref<128x64xf32, #tpu.memory_space<vmem>>, %arg30: memref<3x64xf32, #tpu.memory_space<vmem>>, %arg31: memref<64x50xf32, #tpu.memory_space<vmem>>, %arg32: memref<1x50xf32, #tpu.memory_space<vmem>>, %arg33: memref<1x1xf32, #tpu.memory_space<smem>>) attributes {dimension_semantics = [], scalar_prefetch = 0 : i64, scratch_operands = 0 : i64, tpu.core_type = #tpu.core_type<tc>} {
    %c0 = arith.constant 0 : index
    %c0_0 = arith.constant 0 : index
    %0 = vector.load %arg3[%c0, %c0_0] : memref<16x4xf32, #tpu.memory_space<vmem>>, vector<16x4xf32>
    %1 = vector.extract_strided_slice %0 {offsets = [0, 0], sizes = [16, 1], strides = [1, 1]} : vector<16x4xf32> to vector<16x1xf32>
    %2 = vector.extract_strided_slice %0 {offsets = [0, 1], sizes = [16, 1], strides = [1, 1]} : vector<16x4xf32> to vector<16x1xf32>
    %3 = vector.extract_strided_slice %0 {offsets = [0, 2], sizes = [16, 1], strides = [1, 1]} : vector<16x4xf32> to vector<16x1xf32>
    %4 = vector.extract_strided_slice %0 {offsets = [0, 3], sizes = [16, 1], strides = [1, 1]} : vector<16x4xf32> to vector<16x1xf32>
    %c0_1 = arith.constant 0 : index
    %c0_2 = arith.constant 0 : index
    %5 = vector.load %arg1[%c0_1, %c0_2] : memref<16x50xf32, #tpu.memory_space<vmem>>, vector<16x50xf32>
    %c0_3 = arith.constant 0 : index
    %c0_4 = arith.constant 0 : index
    %6 = vector.load %arg0[%c0_3, %c0_4] : memref<16x50xf32, #tpu.memory_space<vmem>>, vector<16x50xf32>
    %7 = vector.broadcast %1 : vector<16x1xf32> to vector<16x50xf32>
    %8 = arith.mulf %7, %6 : vector<16x50xf32>
    %9 = vector.broadcast %2 : vector<16x1xf32> to vector<16x50xf32>
    %10 = arith.mulf %9, %5 : vector<16x50xf32>
    %11 = arith.addf %8, %10 : vector<16x50xf32>
    %c0_5 = arith.constant 0 : index
    %c0_6 = arith.constant 0 : index
    %12 = vector.load %arg4[%c0_5, %c0_6] : memref<50x64xf32, #tpu.memory_space<vmem>>, vector<50x64xf32>
    %c0_7 = arith.constant 0 : index
    %c0_8 = arith.constant 0 : index
    %13 = vector.load %arg5[%c0_7, %c0_8] : memref<55x64xf32, #tpu.memory_space<vmem>>, vector<55x64xf32>
    %c0_9 = arith.constant 0 : index
    %c0_10 = arith.constant 0 : index
    %14 = vector.load %arg6[%c0_9, %c0_10] : memref<1x64xf32, #tpu.memory_space<vmem>>, vector<1x64xf32>
    %cst = arith.constant dense<0.000000e+00> : vector<16x64xf32>
    %15 = tpu.matmul %11, %12, %cst {dimension_numbers = #tpu.dot_dimension_numbers<[1], [0], [0], [1], [0, 0, 1, 1], [], []>} : vector<16x50xf32>, vector<50x64xf32>, vector<16x64xf32> -> vector<16x64xf32>
    %c0_11 = arith.constant 0 : index
    %c0_12 = arith.constant 0 : index
    %16 = vector.load %arg2[%c0_11, %c0_12] : memref<16x55xf32, #tpu.memory_space<vmem>>, vector<16x55xf32>
    %cst_13 = arith.constant dense<0.000000e+00> : vector<16x64xf32>
    %17 = tpu.matmul %16, %13, %cst_13 {dimension_numbers = #tpu.dot_dimension_numbers<[1], [0], [0], [1], [0, 0, 1, 1], [], []>} : vector<16x55xf32>, vector<55x64xf32>, vector<16x64xf32> -> vector<16x64xf32>
    %18 = arith.addf %15, %17 : vector<16x64xf32>
    %19 = vector.broadcast %3 : vector<16x1xf32> to vector<16x64xf32>
    %20 = vector.broadcast %14 : vector<1x64xf32> to vector<16x64xf32>
    %21 = arith.mulf %19, %20 : vector<16x64xf32>
    %22 = arith.addf %18, %21 : vector<16x64xf32>
    %c0_14 = arith.constant 0 : index
    %c0_15 = arith.constant 0 : index
    %23 = vector.load %arg7[%c0_14, %c0_15] : memref<3x64xf32, #tpu.memory_space<vmem>>, vector<3x64xf32>
    %24 = vector.extract_strided_slice %23 {offsets = [0, 0], sizes = [1, 64], strides = [1, 1]} : vector<3x64xf32> to vector<1x64xf32>
    %25 = vector.broadcast %24 : vector<1x64xf32> to vector<16x64xf32>
    %26 = arith.addf %22, %25 : vector<16x64xf32>
    %cst_16 = arith.constant 0.000000e+00 : f32
    %27 = vector.broadcast %cst_16 : f32 to vector<16x64xf32>
    %28 = arith.cmpf ogt, %26, %27 : vector<16x64xf32>
    %cst_17 = arith.constant 0.00999999977 : f32
    %29 = vector.broadcast %cst_17 : f32 to vector<16x64xf32>
    %30 = arith.mulf %29, %26 : vector<16x64xf32>
    %31 = arith.select %28, %26, %30 : vector<16x64xi1>, vector<16x64xf32>
    %cst_18 = arith.constant dense<0.000000e+00> : vector<64xf32>
    %32 = vector.multi_reduction <add>, %31, %cst_18 [0] : vector<16x64xf32> to vector<64xf32>
    %33 = vector.shape_cast %32 : vector<64xf32> to vector<1x64xf32>
    %cst_19 = arith.constant 1.600000e+01 : f32
    %34 = vector.broadcast %cst_19 : f32 to vector<1x64xf32>
    %35 = arith.divf %33, %34 : vector<1x64xf32>
    %36 = vector.broadcast %35 : vector<1x64xf32> to vector<16x64xf32>
    %37 = arith.subf %31, %36 : vector<16x64xf32>
    %38 = arith.mulf %37, %37 : vector<16x64xf32>
    %cst_20 = arith.constant dense<0.000000e+00> : vector<64xf32>
    %39 = vector.multi_reduction <add>, %38, %cst_20 [0] : vector<16x64xf32> to vector<64xf32>
    %40 = vector.shape_cast %39 : vector<64xf32> to vector<1x64xf32>
    %cst_21 = arith.constant 1.600000e+01 : f32
    %41 = vector.broadcast %cst_21 : f32 to vector<1x64xf32>
    %42 = arith.divf %40, %41 : vector<1x64xf32>
    %cst_22 = arith.constant 9.99999974E-6 : f32
    %43 = vector.broadcast %cst_22 : f32 to vector<1x64xf32>
    %44 = arith.addf %42, %43 : vector<1x64xf32>
    %45 = math.rsqrt %44 : vector<1x64xf32>
    %46 = vector.extract_strided_slice %23 {offsets = [1, 0], sizes = [1, 64], strides = [1, 1]} : vector<3x64xf32> to vector<1x64xf32>
    %47 = arith.mulf %45, %46 : vector<1x64xf32>
    %48 = vector.broadcast %47 : vector<1x64xf32> to vector<16x64xf32>
    %49 = arith.mulf %37, %48 : vector<16x64xf32>
    %50 = vector.extract_strided_slice %23 {offsets = [2, 0], sizes = [1, 64], strides = [1, 1]} : vector<3x64xf32> to vector<1x64xf32>
    %51 = vector.broadcast %50 : vector<1x64xf32> to vector<16x64xf32>
    %52 = arith.addf %49, %51 : vector<16x64xf32>
    %c0_23 = arith.constant 0 : index
    %c0_24 = arith.constant 0 : index
    %53 = vector.load %arg8[%c0_23, %c0_24] : memref<64x128xf32, #tpu.memory_space<vmem>>, vector<64x128xf32>
    %cst_25 = arith.constant dense<0.000000e+00> : vector<16x128xf32>
    %54 = tpu.matmul %52, %53, %cst_25 {dimension_numbers = #tpu.dot_dimension_numbers<[1], [0], [0], [1], [0, 0, 1, 1], [], []>} : vector<16x64xf32>, vector<64x128xf32>, vector<16x128xf32> -> vector<16x128xf32>
    %c0_26 = arith.constant 0 : index
    %c0_27 = arith.constant 0 : index
    %55 = vector.load %arg9[%c0_26, %c0_27] : memref<3x128xf32, #tpu.memory_space<vmem>>, vector<3x128xf32>
    %56 = vector.extract_strided_slice %55 {offsets = [0, 0], sizes = [1, 128], strides = [1, 1]} : vector<3x128xf32> to vector<1x128xf32>
    %57 = vector.broadcast %56 : vector<1x128xf32> to vector<16x128xf32>
    %58 = arith.addf %54, %57 : vector<16x128xf32>
    %cst_28 = arith.constant 0.000000e+00 : f32
    %59 = vector.broadcast %cst_28 : f32 to vector<16x128xf32>
    %60 = arith.cmpf ogt, %58, %59 : vector<16x128xf32>
    %cst_29 = arith.constant 0.00999999977 : f32
    %61 = vector.broadcast %cst_29 : f32 to vector<16x128xf32>
    %62 = arith.mulf %61, %58 : vector<16x128xf32>
    %63 = arith.select %60, %58, %62 : vector<16x128xi1>, vector<16x128xf32>
    %cst_30 = arith.constant dense<0.000000e+00> : vector<128xf32>
    %64 = vector.multi_reduction <add>, %63, %cst_30 [0] : vector<16x128xf32> to vector<128xf32>
    %65 = vector.shape_cast %64 : vector<128xf32> to vector<1x128xf32>
    %cst_31 = arith.constant 1.600000e+01 : f32
    %66 = vector.broadcast %cst_31 : f32 to vector<1x128xf32>
    %67 = arith.divf %65, %66 : vector<1x128xf32>
    %68 = vector.broadcast %67 : vector<1x128xf32> to vector<16x128xf32>
    %69 = arith.subf %63, %68 : vector<16x128xf32>
    %70 = arith.mulf %69, %69 : vector<16x128xf32>
    %cst_32 = arith.constant dense<0.000000e+00> : vector<128xf32>
    %71 = vector.multi_reduction <add>, %70, %cst_32 [0] : vector<16x128xf32> to vector<128xf32>
    %72 = vector.shape_cast %71 : vector<128xf32> to vector<1x128xf32>
    %cst_33 = arith.constant 1.600000e+01 : f32
    %73 = vector.broadcast %cst_33 : f32 to vector<1x128xf32>
    %74 = arith.divf %72, %73 : vector<1x128xf32>
    %cst_34 = arith.constant 9.99999974E-6 : f32
    %75 = vector.broadcast %cst_34 : f32 to vector<1x128xf32>
    %76 = arith.addf %74, %75 : vector<1x128xf32>
    %77 = math.rsqrt %76 : vector<1x128xf32>
    %78 = vector.extract_strided_slice %55 {offsets = [1, 0], sizes = [1, 128], strides = [1, 1]} : vector<3x128xf32> to vector<1x128xf32>
    %79 = arith.mulf %77, %78 : vector<1x128xf32>
    %80 = vector.broadcast %79 : vector<1x128xf32> to vector<16x128xf32>
    %81 = arith.mulf %69, %80 : vector<16x128xf32>
    %82 = vector.extract_strided_slice %55 {offsets = [2, 0], sizes = [1, 128], strides = [1, 1]} : vector<3x128xf32> to vector<1x128xf32>
    %83 = vector.broadcast %82 : vector<1x128xf32> to vector<16x128xf32>
    %84 = arith.addf %81, %83 : vector<16x128xf32>
    %c0_35 = arith.constant 0 : index
    %c0_36 = arith.constant 0 : index
    %85 = vector.load %arg10[%c0_35, %c0_36] : memref<128x256xf32, #tpu.memory_space<vmem>>, vector<128x256xf32>
    %cst_37 = arith.constant dense<0.000000e+00> : vector<16x256xf32>
    %86 = tpu.matmul %84, %85, %cst_37 {dimension_numbers = #tpu.dot_dimension_numbers<[1], [0], [0], [1], [0, 0, 1, 1], [], []>} : vector<16x128xf32>, vector<128x256xf32>, vector<16x256xf32> -> vector<16x256xf32>
    %c0_38 = arith.constant 0 : index
    %c0_39 = arith.constant 0 : index
    %87 = vector.load %arg11[%c0_38, %c0_39] : memref<3x256xf32, #tpu.memory_space<vmem>>, vector<3x256xf32>
    %88 = vector.extract_strided_slice %87 {offsets = [0, 0], sizes = [1, 256], strides = [1, 1]} : vector<3x256xf32> to vector<1x256xf32>
    %89 = vector.broadcast %88 : vector<1x256xf32> to vector<16x256xf32>
    %90 = arith.addf %86, %89 : vector<16x256xf32>
    %cst_40 = arith.constant 0.000000e+00 : f32
    %91 = vector.broadcast %cst_40 : f32 to vector<16x256xf32>
    %92 = arith.cmpf ogt, %90, %91 : vector<16x256xf32>
    %cst_41 = arith.constant 0.00999999977 : f32
    %93 = vector.broadcast %cst_41 : f32 to vector<16x256xf32>
    %94 = arith.mulf %93, %90 : vector<16x256xf32>
    %95 = arith.select %92, %90, %94 : vector<16x256xi1>, vector<16x256xf32>
    %cst_42 = arith.constant dense<0.000000e+00> : vector<256xf32>
    %96 = vector.multi_reduction <add>, %95, %cst_42 [0] : vector<16x256xf32> to vector<256xf32>
    %97 = vector.shape_cast %96 : vector<256xf32> to vector<1x256xf32>
    %cst_43 = arith.constant 1.600000e+01 : f32
    %98 = vector.broadcast %cst_43 : f32 to vector<1x256xf32>
    %99 = arith.divf %97, %98 : vector<1x256xf32>
    %100 = vector.broadcast %99 : vector<1x256xf32> to vector<16x256xf32>
    %101 = arith.subf %95, %100 : vector<16x256xf32>
    %102 = arith.mulf %101, %101 : vector<16x256xf32>
    %cst_44 = arith.constant dense<0.000000e+00> : vector<256xf32>
    %103 = vector.multi_reduction <add>, %102, %cst_44 [0] : vector<16x256xf32> to vector<256xf32>
    %104 = vector.shape_cast %103 : vector<256xf32> to vector<1x256xf32>
    %cst_45 = arith.constant 1.600000e+01 : f32
    %105 = vector.broadcast %cst_45 : f32 to vector<1x256xf32>
    %106 = arith.divf %104, %105 : vector<1x256xf32>
    %cst_46 = arith.constant 9.99999974E-6 : f32
    %107 = vector.broadcast %cst_46 : f32 to vector<1x256xf32>
    %108 = arith.addf %106, %107 : vector<1x256xf32>
    %109 = math.rsqrt %108 : vector<1x256xf32>
    %110 = vector.extract_strided_slice %87 {offsets = [1, 0], sizes = [1, 256], strides = [1, 1]} : vector<3x256xf32> to vector<1x256xf32>
    %111 = arith.mulf %109, %110 : vector<1x256xf32>
    %112 = vector.broadcast %111 : vector<1x256xf32> to vector<16x256xf32>
    %113 = arith.mulf %101, %112 : vector<16x256xf32>
    %114 = vector.extract_strided_slice %87 {offsets = [2, 0], sizes = [1, 256], strides = [1, 1]} : vector<3x256xf32> to vector<1x256xf32>
    %115 = vector.broadcast %114 : vector<1x256xf32> to vector<16x256xf32>
    %116 = arith.addf %113, %115 : vector<16x256xf32>
    %c0_47 = arith.constant 0 : index
    %c0_48 = arith.constant 0 : index
    %117 = vector.load %arg12[%c0_47, %c0_48] : memref<256x512xf32, #tpu.memory_space<vmem>>, vector<256x512xf32>
    %cst_49 = arith.constant dense<0.000000e+00> : vector<16x512xf32>
    %118 = tpu.matmul %116, %117, %cst_49 {dimension_numbers = #tpu.dot_dimension_numbers<[1], [0], [0], [1], [0, 0, 1, 1], [], []>} : vector<16x256xf32>, vector<256x512xf32>, vector<16x512xf32> -> vector<16x512xf32>
    %c0_50 = arith.constant 0 : index
    %c0_51 = arith.constant 0 : index
    %119 = vector.load %arg13[%c0_50, %c0_51] : memref<3x512xf32, #tpu.memory_space<vmem>>, vector<3x512xf32>
    %120 = vector.extract_strided_slice %119 {offsets = [0, 0], sizes = [1, 512], strides = [1, 1]} : vector<3x512xf32> to vector<1x512xf32>
    %121 = vector.broadcast %120 : vector<1x512xf32> to vector<16x512xf32>
    %122 = arith.addf %118, %121 : vector<16x512xf32>
    %cst_52 = arith.constant 0.000000e+00 : f32
    %123 = vector.broadcast %cst_52 : f32 to vector<16x512xf32>
    %124 = arith.cmpf ogt, %122, %123 : vector<16x512xf32>
    %cst_53 = arith.constant 0.00999999977 : f32
    %125 = vector.broadcast %cst_53 : f32 to vector<16x512xf32>
    %126 = arith.mulf %125, %122 : vector<16x512xf32>
    %127 = arith.select %124, %122, %126 : vector<16x512xi1>, vector<16x512xf32>
    %cst_54 = arith.constant dense<0.000000e+00> : vector<512xf32>
    %128 = vector.multi_reduction <add>, %127, %cst_54 [0] : vector<16x512xf32> to vector<512xf32>
    %129 = vector.shape_cast %128 : vector<512xf32> to vector<1x512xf32>
    %cst_55 = arith.constant 1.600000e+01 : f32
    %130 = vector.broadcast %cst_55 : f32 to vector<1x512xf32>
    %131 = arith.divf %129, %130 : vector<1x512xf32>
    %132 = vector.broadcast %131 : vector<1x512xf32> to vector<16x512xf32>
    %133 = arith.subf %127, %132 : vector<16x512xf32>
    %134 = arith.mulf %133, %133 : vector<16x512xf32>
    %cst_56 = arith.constant dense<0.000000e+00> : vector<512xf32>
    %135 = vector.multi_reduction <add>, %134, %cst_56 [0] : vector<16x512xf32> to vector<512xf32>
    %136 = vector.shape_cast %135 : vector<512xf32> to vector<1x512xf32>
    %cst_57 = arith.constant 1.600000e+01 : f32
    %137 = vector.broadcast %cst_57 : f32 to vector<1x512xf32>
    %138 = arith.divf %136, %137 : vector<1x512xf32>
    %cst_58 = arith.constant 9.99999974E-6 : f32
    %139 = vector.broadcast %cst_58 : f32 to vector<1x512xf32>
    %140 = arith.addf %138, %139 : vector<1x512xf32>
    %141 = math.rsqrt %140 : vector<1x512xf32>
    %142 = vector.extract_strided_slice %119 {offsets = [1, 0], sizes = [1, 512], strides = [1, 1]} : vector<3x512xf32> to vector<1x512xf32>
    %143 = arith.mulf %141, %142 : vector<1x512xf32>
    %144 = vector.broadcast %143 : vector<1x512xf32> to vector<16x512xf32>
    %145 = arith.mulf %133, %144 : vector<16x512xf32>
    %146 = vector.extract_strided_slice %119 {offsets = [2, 0], sizes = [1, 512], strides = [1, 1]} : vector<3x512xf32> to vector<1x512xf32>
    %147 = vector.broadcast %146 : vector<1x512xf32> to vector<16x512xf32>
    %148 = arith.addf %145, %147 : vector<16x512xf32>
    %c0_59 = arith.constant 0 : index
    %c0_60 = arith.constant 0 : index
    %149 = vector.load %arg14[%c0_59, %c0_60] : memref<512x64xf32, #tpu.memory_space<vmem>>, vector<512x64xf32>
    %cst_61 = arith.constant dense<0.000000e+00> : vector<16x64xf32>
    %150 = tpu.matmul %148, %149, %cst_61 {dimension_numbers = #tpu.dot_dimension_numbers<[1], [0], [0], [1], [0, 0, 1, 1], [], []>} : vector<16x512xf32>, vector<512x64xf32>, vector<16x64xf32> -> vector<16x64xf32>
    %c0_62 = arith.constant 0 : index
    %c0_63 = arith.constant 0 : index
    %151 = vector.load %arg15[%c0_62, %c0_63] : memref<3x64xf32, #tpu.memory_space<vmem>>, vector<3x64xf32>
    %152 = vector.extract_strided_slice %151 {offsets = [0, 0], sizes = [1, 64], strides = [1, 1]} : vector<3x64xf32> to vector<1x64xf32>
    %153 = vector.broadcast %152 : vector<1x64xf32> to vector<16x64xf32>
    %154 = arith.addf %150, %153 : vector<16x64xf32>
    %cst_64 = arith.constant 0.000000e+00 : f32
    %155 = vector.broadcast %cst_64 : f32 to vector<16x64xf32>
    %156 = arith.cmpf ogt, %154, %155 : vector<16x64xf32>
    %cst_65 = arith.constant 0.00999999977 : f32
    %157 = vector.broadcast %cst_65 : f32 to vector<16x64xf32>
    %158 = arith.mulf %157, %154 : vector<16x64xf32>
    %159 = arith.select %156, %154, %158 : vector<16x64xi1>, vector<16x64xf32>
    %cst_66 = arith.constant dense<0.000000e+00> : vector<64xf32>
    %160 = vector.multi_reduction <add>, %159, %cst_66 [0] : vector<16x64xf32> to vector<64xf32>
    %161 = vector.shape_cast %160 : vector<64xf32> to vector<1x64xf32>
    %cst_67 = arith.constant 1.600000e+01 : f32
    %162 = vector.broadcast %cst_67 : f32 to vector<1x64xf32>
    %163 = arith.divf %161, %162 : vector<1x64xf32>
    %164 = vector.broadcast %163 : vector<1x64xf32> to vector<16x64xf32>
    %165 = arith.subf %159, %164 : vector<16x64xf32>
    %166 = arith.mulf %165, %165 : vector<16x64xf32>
    %cst_68 = arith.constant dense<0.000000e+00> : vector<64xf32>
    %167 = vector.multi_reduction <add>, %166, %cst_68 [0] : vector<16x64xf32> to vector<64xf32>
    %168 = vector.shape_cast %167 : vector<64xf32> to vector<1x64xf32>
    %cst_69 = arith.constant 1.600000e+01 : f32
    %169 = vector.broadcast %cst_69 : f32 to vector<1x64xf32>
    %170 = arith.divf %168, %169 : vector<1x64xf32>
    %cst_70 = arith.constant 9.99999974E-6 : f32
    %171 = vector.broadcast %cst_70 : f32 to vector<1x64xf32>
    %172 = arith.addf %170, %171 : vector<1x64xf32>
    %173 = math.rsqrt %172 : vector<1x64xf32>
    %174 = vector.extract_strided_slice %151 {offsets = [1, 0], sizes = [1, 64], strides = [1, 1]} : vector<3x64xf32> to vector<1x64xf32>
    %175 = arith.mulf %173, %174 : vector<1x64xf32>
    %176 = vector.broadcast %175 : vector<1x64xf32> to vector<16x64xf32>
    %177 = arith.mulf %165, %176 : vector<16x64xf32>
    %178 = vector.extract_strided_slice %151 {offsets = [2, 0], sizes = [1, 64], strides = [1, 1]} : vector<3x64xf32> to vector<1x64xf32>
    %179 = vector.broadcast %178 : vector<1x64xf32> to vector<16x64xf32>
    %180 = arith.addf %177, %179 : vector<16x64xf32>
    %c0_71 = arith.constant 0 : index
    %c0_72 = arith.constant 0 : index
    %181 = vector.load %arg16[%c0_71, %c0_72] : memref<64x256xf32, #tpu.memory_space<vmem>>, vector<64x256xf32>
    %cst_73 = arith.constant dense<0.000000e+00> : vector<16x256xf32>
    %182 = tpu.matmul %180, %181, %cst_73 {dimension_numbers = #tpu.dot_dimension_numbers<[1], [0], [0], [1], [0, 0, 1, 1], [], []>} : vector<16x64xf32>, vector<64x256xf32>, vector<16x256xf32> -> vector<16x256xf32>
    %c0_74 = arith.constant 0 : index
    %c0_75 = arith.constant 0 : index
    %183 = vector.load %arg17[%c0_74, %c0_75] : memref<3x256xf32, #tpu.memory_space<vmem>>, vector<3x256xf32>
    %184 = vector.extract_strided_slice %183 {offsets = [0, 0], sizes = [1, 256], strides = [1, 1]} : vector<3x256xf32> to vector<1x256xf32>
    %185 = vector.broadcast %184 : vector<1x256xf32> to vector<16x256xf32>
    %186 = arith.addf %182, %185 : vector<16x256xf32>
    %cst_76 = arith.constant 0.000000e+00 : f32
    %187 = vector.broadcast %cst_76 : f32 to vector<16x256xf32>
    %188 = arith.cmpf ogt, %186, %187 : vector<16x256xf32>
    %cst_77 = arith.constant 0.00999999977 : f32
    %189 = vector.broadcast %cst_77 : f32 to vector<16x256xf32>
    %190 = arith.mulf %189, %186 : vector<16x256xf32>
    %191 = arith.select %188, %186, %190 : vector<16x256xi1>, vector<16x256xf32>
    %cst_78 = arith.constant dense<0.000000e+00> : vector<256xf32>
    %192 = vector.multi_reduction <add>, %191, %cst_78 [0] : vector<16x256xf32> to vector<256xf32>
    %193 = vector.shape_cast %192 : vector<256xf32> to vector<1x256xf32>
    %cst_79 = arith.constant 1.600000e+01 : f32
    %194 = vector.broadcast %cst_79 : f32 to vector<1x256xf32>
    %195 = arith.divf %193, %194 : vector<1x256xf32>
    %196 = vector.broadcast %195 : vector<1x256xf32> to vector<16x256xf32>
    %197 = arith.subf %191, %196 : vector<16x256xf32>
    %198 = arith.mulf %197, %197 : vector<16x256xf32>
    %cst_80 = arith.constant dense<0.000000e+00> : vector<256xf32>
    %199 = vector.multi_reduction <add>, %198, %cst_80 [0] : vector<16x256xf32> to vector<256xf32>
    %200 = vector.shape_cast %199 : vector<256xf32> to vector<1x256xf32>
    %cst_81 = arith.constant 1.600000e+01 : f32
    %201 = vector.broadcast %cst_81 : f32 to vector<1x256xf32>
    %202 = arith.divf %200, %201 : vector<1x256xf32>
    %cst_82 = arith.constant 9.99999974E-6 : f32
    %203 = vector.broadcast %cst_82 : f32 to vector<1x256xf32>
    %204 = arith.addf %202, %203 : vector<1x256xf32>
    %205 = math.rsqrt %204 : vector<1x256xf32>
    %206 = vector.extract_strided_slice %183 {offsets = [1, 0], sizes = [1, 256], strides = [1, 1]} : vector<3x256xf32> to vector<1x256xf32>
    %207 = arith.mulf %205, %206 : vector<1x256xf32>
    %208 = vector.broadcast %207 : vector<1x256xf32> to vector<16x256xf32>
    %209 = arith.mulf %197, %208 : vector<16x256xf32>
    %210 = vector.extract_strided_slice %183 {offsets = [2, 0], sizes = [1, 256], strides = [1, 1]} : vector<3x256xf32> to vector<1x256xf32>
    %211 = vector.broadcast %210 : vector<1x256xf32> to vector<16x256xf32>
    %212 = arith.addf %209, %211 : vector<16x256xf32>
    %c0_83 = arith.constant 0 : index
    %c0_84 = arith.constant 0 : index
    %213 = vector.load %arg18[%c0_83, %c0_84] : memref<256x256xf32, #tpu.memory_space<vmem>>, vector<256x256xf32>
    %c0_85 = arith.constant 0 : index
    %c0_86 = arith.constant 0 : index
    %214 = vector.load %arg19[%c0_85, %c0_86] : memref<512x256xf32, #tpu.memory_space<vmem>>, vector<512x256xf32>
    %cst_87 = arith.constant dense<0.000000e+00> : vector<16x256xf32>
    %215 = tpu.matmul %212, %213, %cst_87 {dimension_numbers = #tpu.dot_dimension_numbers<[1], [0], [0], [1], [0, 0, 1, 1], [], []>} : vector<16x256xf32>, vector<256x256xf32>, vector<16x256xf32> -> vector<16x256xf32>
    %cst_88 = arith.constant dense<0.000000e+00> : vector<16x256xf32>
    %216 = tpu.matmul %148, %214, %cst_88 {dimension_numbers = #tpu.dot_dimension_numbers<[1], [0], [0], [1], [0, 0, 1, 1], [], []>} : vector<16x512xf32>, vector<512x256xf32>, vector<16x256xf32> -> vector<16x256xf32>
    %217 = arith.addf %215, %216 : vector<16x256xf32>
    %c0_89 = arith.constant 0 : index
    %c0_90 = arith.constant 0 : index
    %218 = vector.load %arg20[%c0_89, %c0_90] : memref<3x256xf32, #tpu.memory_space<vmem>>, vector<3x256xf32>
    %219 = vector.extract_strided_slice %218 {offsets = [0, 0], sizes = [1, 256], strides = [1, 1]} : vector<3x256xf32> to vector<1x256xf32>
    %220 = vector.broadcast %219 : vector<1x256xf32> to vector<16x256xf32>
    %221 = arith.addf %217, %220 : vector<16x256xf32>
    %cst_91 = arith.constant 0.000000e+00 : f32
    %222 = vector.broadcast %cst_91 : f32 to vector<16x256xf32>
    %223 = arith.cmpf ogt, %221, %222 : vector<16x256xf32>
    %cst_92 = arith.constant 0.00999999977 : f32
    %224 = vector.broadcast %cst_92 : f32 to vector<16x256xf32>
    %225 = arith.mulf %224, %221 : vector<16x256xf32>
    %226 = arith.select %223, %221, %225 : vector<16x256xi1>, vector<16x256xf32>
    %cst_93 = arith.constant dense<0.000000e+00> : vector<256xf32>
    %227 = vector.multi_reduction <add>, %226, %cst_93 [0] : vector<16x256xf32> to vector<256xf32>
    %228 = vector.shape_cast %227 : vector<256xf32> to vector<1x256xf32>
    %cst_94 = arith.constant 1.600000e+01 : f32
    %229 = vector.broadcast %cst_94 : f32 to vector<1x256xf32>
    %230 = arith.divf %228, %229 : vector<1x256xf32>
    %231 = vector.broadcast %230 : vector<1x256xf32> to vector<16x256xf32>
    %232 = arith.subf %226, %231 : vector<16x256xf32>
    %233 = arith.mulf %232, %232 : vector<16x256xf32>
    %cst_95 = arith.constant dense<0.000000e+00> : vector<256xf32>
    %234 = vector.multi_reduction <add>, %233, %cst_95 [0] : vector<16x256xf32> to vector<256xf32>
    %235 = vector.shape_cast %234 : vector<256xf32> to vector<1x256xf32>
    %cst_96 = arith.constant 1.600000e+01 : f32
    %236 = vector.broadcast %cst_96 : f32 to vector<1x256xf32>
    %237 = arith.divf %235, %236 : vector<1x256xf32>
    %cst_97 = arith.constant 9.99999974E-6 : f32
    %238 = vector.broadcast %cst_97 : f32 to vector<1x256xf32>
    %239 = arith.addf %237, %238 : vector<1x256xf32>
    %240 = math.rsqrt %239 : vector<1x256xf32>
    %241 = vector.extract_strided_slice %218 {offsets = [1, 0], sizes = [1, 256], strides = [1, 1]} : vector<3x256xf32> to vector<1x256xf32>
    %242 = arith.mulf %240, %241 : vector<1x256xf32>
    %243 = vector.broadcast %242 : vector<1x256xf32> to vector<16x256xf32>
    %244 = arith.mulf %232, %243 : vector<16x256xf32>
    %245 = vector.extract_strided_slice %218 {offsets = [2, 0], sizes = [1, 256], strides = [1, 1]} : vector<3x256xf32> to vector<1x256xf32>
    %246 = vector.broadcast %245 : vector<1x256xf32> to vector<16x256xf32>
    %247 = arith.addf %244, %246 : vector<16x256xf32>
    %c0_98 = arith.constant 0 : index
    %c0_99 = arith.constant 0 : index
    %248 = vector.load %arg21[%c0_98, %c0_99] : memref<256x128xf32, #tpu.memory_space<vmem>>, vector<256x128xf32>
    %cst_100 = arith.constant dense<0.000000e+00> : vector<16x128xf32>
    %249 = tpu.matmul %247, %248, %cst_100 {dimension_numbers = #tpu.dot_dimension_numbers<[1], [0], [0], [1], [0, 0, 1, 1], [], []>} : vector<16x256xf32>, vector<256x128xf32>, vector<16x128xf32> -> vector<16x128xf32>
    %c0_101 = arith.constant 0 : index
    %c0_102 = arith.constant 0 : index
    %250 = vector.load %arg22[%c0_101, %c0_102] : memref<3x128xf32, #tpu.memory_space<vmem>>, vector<3x128xf32>
    %251 = vector.extract_strided_slice %250 {offsets = [0, 0], sizes = [1, 128], strides = [1, 1]} : vector<3x128xf32> to vector<1x128xf32>
    %252 = vector.broadcast %251 : vector<1x128xf32> to vector<16x128xf32>
    %253 = arith.addf %249, %252 : vector<16x128xf32>
    %cst_103 = arith.constant 0.000000e+00 : f32
    %254 = vector.broadcast %cst_103 : f32 to vector<16x128xf32>
    %255 = arith.cmpf ogt, %253, %254 : vector<16x128xf32>
    %cst_104 = arith.constant 0.00999999977 : f32
    %256 = vector.broadcast %cst_104 : f32 to vector<16x128xf32>
    %257 = arith.mulf %256, %253 : vector<16x128xf32>
    %258 = arith.select %255, %253, %257 : vector<16x128xi1>, vector<16x128xf32>
    %cst_105 = arith.constant dense<0.000000e+00> : vector<128xf32>
    %259 = vector.multi_reduction <add>, %258, %cst_105 [0] : vector<16x128xf32> to vector<128xf32>
    %260 = vector.shape_cast %259 : vector<128xf32> to vector<1x128xf32>
    %cst_106 = arith.constant 1.600000e+01 : f32
    %261 = vector.broadcast %cst_106 : f32 to vector<1x128xf32>
    %262 = arith.divf %260, %261 : vector<1x128xf32>
    %263 = vector.broadcast %262 : vector<1x128xf32> to vector<16x128xf32>
    %264 = arith.subf %258, %263 : vector<16x128xf32>
    %265 = arith.mulf %264, %264 : vector<16x128xf32>
    %cst_107 = arith.constant dense<0.000000e+00> : vector<128xf32>
    %266 = vector.multi_reduction <add>, %265, %cst_107 [0] : vector<16x128xf32> to vector<128xf32>
    %267 = vector.shape_cast %266 : vector<128xf32> to vector<1x128xf32>
    %cst_108 = arith.constant 1.600000e+01 : f32
    %268 = vector.broadcast %cst_108 : f32 to vector<1x128xf32>
    %269 = arith.divf %267, %268 : vector<1x128xf32>
    %cst_109 = arith.constant 9.99999974E-6 : f32
    %270 = vector.broadcast %cst_109 : f32 to vector<1x128xf32>
    %271 = arith.addf %269, %270 : vector<1x128xf32>
    %272 = math.rsqrt %271 : vector<1x128xf32>
    %273 = vector.extract_strided_slice %250 {offsets = [1, 0], sizes = [1, 128], strides = [1, 1]} : vector<3x128xf32> to vector<1x128xf32>
    %274 = arith.mulf %272, %273 : vector<1x128xf32>
    %275 = vector.broadcast %274 : vector<1x128xf32> to vector<16x128xf32>
    %276 = arith.mulf %264, %275 : vector<16x128xf32>
    %277 = vector.extract_strided_slice %250 {offsets = [2, 0], sizes = [1, 128], strides = [1, 1]} : vector<3x128xf32> to vector<1x128xf32>
    %278 = vector.broadcast %277 : vector<1x128xf32> to vector<16x128xf32>
    %279 = arith.addf %276, %278 : vector<16x128xf32>
    %c0_110 = arith.constant 0 : index
    %c0_111 = arith.constant 0 : index
    %280 = vector.load %arg23[%c0_110, %c0_111] : memref<128x128xf32, #tpu.memory_space<vmem>>, vector<128x128xf32>
    %c0_112 = arith.constant 0 : index
    %c0_113 = arith.constant 0 : index
    %281 = vector.load %arg24[%c0_112, %c0_113] : memref<256x128xf32, #tpu.memory_space<vmem>>, vector<256x128xf32>
    %cst_114 = arith.constant dense<0.000000e+00> : vector<16x128xf32>
    %282 = tpu.matmul %279, %280, %cst_114 {dimension_numbers = #tpu.dot_dimension_numbers<[1], [0], [0], [1], [0, 0, 1, 1], [], []>} : vector<16x128xf32>, vector<128x128xf32>, vector<16x128xf32> -> vector<16x128xf32>
    %cst_115 = arith.constant dense<0.000000e+00> : vector<16x128xf32>
    %283 = tpu.matmul %116, %281, %cst_115 {dimension_numbers = #tpu.dot_dimension_numbers<[1], [0], [0], [1], [0, 0, 1, 1], [], []>} : vector<16x256xf32>, vector<256x128xf32>, vector<16x128xf32> -> vector<16x128xf32>
    %284 = arith.addf %282, %283 : vector<16x128xf32>
    %c0_116 = arith.constant 0 : index
    %c0_117 = arith.constant 0 : index
    %285 = vector.load %arg25[%c0_116, %c0_117] : memref<3x128xf32, #tpu.memory_space<vmem>>, vector<3x128xf32>
    %286 = vector.extract_strided_slice %285 {offsets = [0, 0], sizes = [1, 128], strides = [1, 1]} : vector<3x128xf32> to vector<1x128xf32>
    %287 = vector.broadcast %286 : vector<1x128xf32> to vector<16x128xf32>
    %288 = arith.addf %284, %287 : vector<16x128xf32>
    %cst_118 = arith.constant 0.000000e+00 : f32
    %289 = vector.broadcast %cst_118 : f32 to vector<16x128xf32>
    %290 = arith.cmpf ogt, %288, %289 : vector<16x128xf32>
    %cst_119 = arith.constant 0.00999999977 : f32
    %291 = vector.broadcast %cst_119 : f32 to vector<16x128xf32>
    %292 = arith.mulf %291, %288 : vector<16x128xf32>
    %293 = arith.select %290, %288, %292 : vector<16x128xi1>, vector<16x128xf32>
    %cst_120 = arith.constant dense<0.000000e+00> : vector<128xf32>
    %294 = vector.multi_reduction <add>, %293, %cst_120 [0] : vector<16x128xf32> to vector<128xf32>
    %295 = vector.shape_cast %294 : vector<128xf32> to vector<1x128xf32>
    %cst_121 = arith.constant 1.600000e+01 : f32
    %296 = vector.broadcast %cst_121 : f32 to vector<1x128xf32>
    %297 = arith.divf %295, %296 : vector<1x128xf32>
    %298 = vector.broadcast %297 : vector<1x128xf32> to vector<16x128xf32>
    %299 = arith.subf %293, %298 : vector<16x128xf32>
    %300 = arith.mulf %299, %299 : vector<16x128xf32>
    %cst_122 = arith.constant dense<0.000000e+00> : vector<128xf32>
    %301 = vector.multi_reduction <add>, %300, %cst_122 [0] : vector<16x128xf32> to vector<128xf32>
    %302 = vector.shape_cast %301 : vector<128xf32> to vector<1x128xf32>
    %cst_123 = arith.constant 1.600000e+01 : f32
    %303 = vector.broadcast %cst_123 : f32 to vector<1x128xf32>
    %304 = arith.divf %302, %303 : vector<1x128xf32>
    %cst_124 = arith.constant 9.99999974E-6 : f32
    %305 = vector.broadcast %cst_124 : f32 to vector<1x128xf32>
    %306 = arith.addf %304, %305 : vector<1x128xf32>
    %307 = math.rsqrt %306 : vector<1x128xf32>
    %308 = vector.extract_strided_slice %285 {offsets = [1, 0], sizes = [1, 128], strides = [1, 1]} : vector<3x128xf32> to vector<1x128xf32>
    %309 = arith.mulf %307, %308 : vector<1x128xf32>
    %310 = vector.broadcast %309 : vector<1x128xf32> to vector<16x128xf32>
    %311 = arith.mulf %299, %310 : vector<16x128xf32>
    %312 = vector.extract_strided_slice %285 {offsets = [2, 0], sizes = [1, 128], strides = [1, 1]} : vector<3x128xf32> to vector<1x128xf32>
    %313 = vector.broadcast %312 : vector<1x128xf32> to vector<16x128xf32>
    %314 = arith.addf %311, %313 : vector<16x128xf32>
    %c0_125 = arith.constant 0 : index
    %c0_126 = arith.constant 0 : index
    %315 = vector.load %arg26[%c0_125, %c0_126] : memref<128x64xf32, #tpu.memory_space<vmem>>, vector<128x64xf32>
    %cst_127 = arith.constant dense<0.000000e+00> : vector<16x64xf32>
    %316 = tpu.matmul %314, %315, %cst_127 {dimension_numbers = #tpu.dot_dimension_numbers<[1], [0], [0], [1], [0, 0, 1, 1], [], []>} : vector<16x128xf32>, vector<128x64xf32>, vector<16x64xf32> -> vector<16x64xf32>
    %c0_128 = arith.constant 0 : index
    %c0_129 = arith.constant 0 : index
    %317 = vector.load %arg27[%c0_128, %c0_129] : memref<3x64xf32, #tpu.memory_space<vmem>>, vector<3x64xf32>
    %318 = vector.extract_strided_slice %317 {offsets = [0, 0], sizes = [1, 64], strides = [1, 1]} : vector<3x64xf32> to vector<1x64xf32>
    %319 = vector.broadcast %318 : vector<1x64xf32> to vector<16x64xf32>
    %320 = arith.addf %316, %319 : vector<16x64xf32>
    %cst_130 = arith.constant 0.000000e+00 : f32
    %321 = vector.broadcast %cst_130 : f32 to vector<16x64xf32>
    %322 = arith.cmpf ogt, %320, %321 : vector<16x64xf32>
    %cst_131 = arith.constant 0.00999999977 : f32
    %323 = vector.broadcast %cst_131 : f32 to vector<16x64xf32>
    %324 = arith.mulf %323, %320 : vector<16x64xf32>
    %325 = arith.select %322, %320, %324 : vector<16x64xi1>, vector<16x64xf32>
    %cst_132 = arith.constant dense<0.000000e+00> : vector<64xf32>
    %326 = vector.multi_reduction <add>, %325, %cst_132 [0] : vector<16x64xf32> to vector<64xf32>
    %327 = vector.shape_cast %326 : vector<64xf32> to vector<1x64xf32>
    %cst_133 = arith.constant 1.600000e+01 : f32
    %328 = vector.broadcast %cst_133 : f32 to vector<1x64xf32>
    %329 = arith.divf %327, %328 : vector<1x64xf32>
    %330 = vector.broadcast %329 : vector<1x64xf32> to vector<16x64xf32>
    %331 = arith.subf %325, %330 : vector<16x64xf32>
    %332 = arith.mulf %331, %331 : vector<16x64xf32>
    %cst_134 = arith.constant dense<0.000000e+00> : vector<64xf32>
    %333 = vector.multi_reduction <add>, %332, %cst_134 [0] : vector<16x64xf32> to vector<64xf32>
    %334 = vector.shape_cast %333 : vector<64xf32> to vector<1x64xf32>
    %cst_135 = arith.constant 1.600000e+01 : f32
    %335 = vector.broadcast %cst_135 : f32 to vector<1x64xf32>
    %336 = arith.divf %334, %335 : vector<1x64xf32>
    %cst_136 = arith.constant 9.99999974E-6 : f32
    %337 = vector.broadcast %cst_136 : f32 to vector<1x64xf32>
    %338 = arith.addf %336, %337 : vector<1x64xf32>
    %339 = math.rsqrt %338 : vector<1x64xf32>
    %340 = vector.extract_strided_slice %317 {offsets = [1, 0], sizes = [1, 64], strides = [1, 1]} : vector<3x64xf32> to vector<1x64xf32>
    %341 = arith.mulf %339, %340 : vector<1x64xf32>
    %342 = vector.broadcast %341 : vector<1x64xf32> to vector<16x64xf32>
    %343 = arith.mulf %331, %342 : vector<16x64xf32>
    %344 = vector.extract_strided_slice %317 {offsets = [2, 0], sizes = [1, 64], strides = [1, 1]} : vector<3x64xf32> to vector<1x64xf32>
    %345 = vector.broadcast %344 : vector<1x64xf32> to vector<16x64xf32>
    %346 = arith.addf %343, %345 : vector<16x64xf32>
    %c0_137 = arith.constant 0 : index
    %c0_138 = arith.constant 0 : index
    %347 = vector.load %arg28[%c0_137, %c0_138] : memref<64x64xf32, #tpu.memory_space<vmem>>, vector<64x64xf32>
    %c0_139 = arith.constant 0 : index
    %c0_140 = arith.constant 0 : index
    %348 = vector.load %arg29[%c0_139, %c0_140] : memref<128x64xf32, #tpu.memory_space<vmem>>, vector<128x64xf32>
    %cst_141 = arith.constant dense<0.000000e+00> : vector<16x64xf32>
    %349 = tpu.matmul %346, %347, %cst_141 {dimension_numbers = #tpu.dot_dimension_numbers<[1], [0], [0], [1], [0, 0, 1, 1], [], []>} : vector<16x64xf32>, vector<64x64xf32>, vector<16x64xf32> -> vector<16x64xf32>
    %cst_142 = arith.constant dense<0.000000e+00> : vector<16x64xf32>
    %350 = tpu.matmul %84, %348, %cst_142 {dimension_numbers = #tpu.dot_dimension_numbers<[1], [0], [0], [1], [0, 0, 1, 1], [], []>} : vector<16x128xf32>, vector<128x64xf32>, vector<16x64xf32> -> vector<16x64xf32>
    %351 = arith.addf %349, %350 : vector<16x64xf32>
    %c0_143 = arith.constant 0 : index
    %c0_144 = arith.constant 0 : index
    %352 = vector.load %arg30[%c0_143, %c0_144] : memref<3x64xf32, #tpu.memory_space<vmem>>, vector<3x64xf32>
    %353 = vector.extract_strided_slice %352 {offsets = [0, 0], sizes = [1, 64], strides = [1, 1]} : vector<3x64xf32> to vector<1x64xf32>
    %354 = vector.broadcast %353 : vector<1x64xf32> to vector<16x64xf32>
    %355 = arith.addf %351, %354 : vector<16x64xf32>
    %cst_145 = arith.constant 0.000000e+00 : f32
    %356 = vector.broadcast %cst_145 : f32 to vector<16x64xf32>
    %357 = arith.cmpf ogt, %355, %356 : vector<16x64xf32>
    %cst_146 = arith.constant 0.00999999977 : f32
    %358 = vector.broadcast %cst_146 : f32 to vector<16x64xf32>
    %359 = arith.mulf %358, %355 : vector<16x64xf32>
    %360 = arith.select %357, %355, %359 : vector<16x64xi1>, vector<16x64xf32>
    %cst_147 = arith.constant dense<0.000000e+00> : vector<64xf32>
    %361 = vector.multi_reduction <add>, %360, %cst_147 [0] : vector<16x64xf32> to vector<64xf32>
    %362 = vector.shape_cast %361 : vector<64xf32> to vector<1x64xf32>
    %cst_148 = arith.constant 1.600000e+01 : f32
    %363 = vector.broadcast %cst_148 : f32 to vector<1x64xf32>
    %364 = arith.divf %362, %363 : vector<1x64xf32>
    %365 = vector.broadcast %364 : vector<1x64xf32> to vector<16x64xf32>
    %366 = arith.subf %360, %365 : vector<16x64xf32>
    %367 = arith.mulf %366, %366 : vector<16x64xf32>
    %cst_149 = arith.constant dense<0.000000e+00> : vector<64xf32>
    %368 = vector.multi_reduction <add>, %367, %cst_149 [0] : vector<16x64xf32> to vector<64xf32>
    %369 = vector.shape_cast %368 : vector<64xf32> to vector<1x64xf32>
    %cst_150 = arith.constant 1.600000e+01 : f32
    %370 = vector.broadcast %cst_150 : f32 to vector<1x64xf32>
    %371 = arith.divf %369, %370 : vector<1x64xf32>
    %cst_151 = arith.constant 9.99999974E-6 : f32
    %372 = vector.broadcast %cst_151 : f32 to vector<1x64xf32>
    %373 = arith.addf %371, %372 : vector<1x64xf32>
    %374 = math.rsqrt %373 : vector<1x64xf32>
    %375 = vector.extract_strided_slice %352 {offsets = [1, 0], sizes = [1, 64], strides = [1, 1]} : vector<3x64xf32> to vector<1x64xf32>
    %376 = arith.mulf %374, %375 : vector<1x64xf32>
    %377 = vector.broadcast %376 : vector<1x64xf32> to vector<16x64xf32>
    %378 = arith.mulf %366, %377 : vector<16x64xf32>
    %379 = vector.extract_strided_slice %352 {offsets = [2, 0], sizes = [1, 64], strides = [1, 1]} : vector<3x64xf32> to vector<1x64xf32>
    %380 = vector.broadcast %379 : vector<1x64xf32> to vector<16x64xf32>
    %381 = arith.addf %378, %380 : vector<16x64xf32>
    %c0_152 = arith.constant 0 : index
    %c0_153 = arith.constant 0 : index
    %382 = vector.load %arg31[%c0_152, %c0_153] : memref<64x50xf32, #tpu.memory_space<vmem>>, vector<64x50xf32>
    %c0_154 = arith.constant 0 : index
    %c0_155 = arith.constant 0 : index
    %383 = vector.load %arg32[%c0_154, %c0_155] : memref<1x50xf32, #tpu.memory_space<vmem>>, vector<1x50xf32>
    %cst_156 = arith.constant dense<0.000000e+00> : vector<16x50xf32>
    %384 = tpu.matmul %381, %382, %cst_156 {dimension_numbers = #tpu.dot_dimension_numbers<[1], [0], [0], [1], [0, 0, 1, 1], [], []>} : vector<16x64xf32>, vector<64x50xf32>, vector<16x50xf32> -> vector<16x50xf32>
    %385 = vector.broadcast %383 : vector<1x50xf32> to vector<16x50xf32>
    %386 = arith.addf %384, %385 : vector<16x50xf32>
    %387 = math.tanh %386 : vector<16x50xf32>
    %388 = arith.subf %387, %5 : vector<16x50xf32>
    %389 = arith.mulf %388, %388 : vector<16x50xf32>
    %390 = vector.broadcast %4 : vector<16x1xf32> to vector<16x50xf32>
    %391 = arith.mulf %389, %390 : vector<16x50xf32>
    %392 = vector.shape_cast %391 : vector<16x50xf32> to vector<1x16x50xf32>
    %cst_157 = arith.constant dense<0.000000e+00> : vector<1xf32>
    %393 = vector.multi_reduction <add>, %392, %cst_157 [1, 2] : vector<1x16x50xf32> to vector<1xf32>
    %394 = vector.shape_cast %393 : vector<1xf32> to vector<1x1x1xf32>
    %395 = vector.extract %394[0, 0, 0] : f32 from vector<1x1x1xf32>
    %396 = vector.shape_cast %4 : vector<16x1xf32> to vector<1x16x1xf32>
    %cst_158 = arith.constant dense<0.000000e+00> : vector<1xf32>
    %397 = vector.multi_reduction <add>, %396, %cst_158 [1, 2] : vector<1x16x1xf32> to vector<1xf32>
    %398 = vector.shape_cast %397 : vector<1xf32> to vector<1x1x1xf32>
    %399 = vector.extract %398[0, 0, 0] : f32 from vector<1x1x1xf32>
    %cst_159 = arith.constant 5.000000e+01 : f32
    %400 = arith.mulf %399, %cst_159 : f32
    %401 = arith.divf %395, %400 : f32
    %c0_160 = arith.constant 0 : index
    %c0_161 = arith.constant 0 : index
    %402 = memref.load %arg33[%c0_160, %c0_161] : memref<1x1xf32, #tpu.memory_space<smem>>
    memref.store %401, %arg33[%c0_160, %c0_161] : memref<1x1xf32, #tpu.memory_space<smem>>
    return
  }
}

</mosaic_0001>

<llo_original>
// kernel: tpu_custom_call.1
$region0: #{tpu_custom_call.1}
  #allocation0 [shape = 'u32[]', space=smem, size = 0x4, offset = 0x4, fixed_abs, tag = 'smem constant byte address 0x4 - core index']
  #allocation1 [shape = 'u32[72,128]{1,0:T(1,128)}', space=vmem, size = 0x9000, scoped, tag = 'internal scratch']
  %s0 = inlined_call_operand.smem [shape: u32[34], index: -1, kind: input, shape index: {}]
  %s1 = sld [smem:[%s0]]
  %s2 = scalar_lea.smem %s0, 1
  %s3 = sld [smem:[%s2]]
  %s4 = scalar_lea.smem %s0, 2
  %s5 = sld [smem:[%s4]]
  %s6 = scalar_lea.smem %s0, 3
  %s7 = sld [smem:[%s6]]
  %s8 = scalar_lea.smem %s0, 4
  %s9 = sld [smem:[%s8]]
  %s10 = scalar_lea.smem %s0, 5
  %s11 = sld [smem:[%s10]]
  %s12 = scalar_lea.smem %s0, 6
  %s13 = sld [smem:[%s12]]
  %s14 = scalar_lea.smem %s0, 7
  %s15 = sld [smem:[%s14]]
  %s16 = scalar_lea.smem %s0, 8
  %s17 = sld [smem:[%s16]]
  %s18 = scalar_lea.smem %s0, 9
  %s19 = sld [smem:[%s18]]
  %s20 = scalar_lea.smem %s0, 10
  %s21 = sld [smem:[%s20]]
  %s22 = scalar_lea.smem %s0, 11
  %s23 = sld [smem:[%s22]]
  %s24 = scalar_lea.smem %s0, 12
  %s25 = sld [smem:[%s24]]
  %s26 = scalar_lea.smem %s0, 13
  %s27 = sld [smem:[%s26]]
  %s28 = scalar_lea.smem %s0, 14
  %s29 = sld [smem:[%s28]]
  %s30 = scalar_lea.smem %s0, 15
  %s31 = sld [smem:[%s30]]
  %s32 = scalar_lea.smem %s0, 16
  %s33 = sld [smem:[%s32]]
  %s34 = scalar_lea.smem %s0, 17
  %s35 = sld [smem:[%s34]]
  %s36 = scalar_lea.smem %s0, 18
  %s37 = sld [smem:[%s36]]
  %s38 = scalar_lea.smem %s0, 19
  %s39 = sld [smem:[%s38]]
  %s40 = scalar_lea.smem %s0, 20
  %s41 = sld [smem:[%s40]]
  %s42 = scalar_lea.smem %s0, 21
  %s43 = sld [smem:[%s42]]
  %s44 = scalar_lea.smem %s0, 22
  %s45 = sld [smem:[%s44]]
  %s46 = scalar_lea.smem %s0, 23
  %s47 = sld [smem:[%s46]]
  %s48 = scalar_lea.smem %s0, 24
  %s49 = sld [smem:[%s48]]
  %s50 = scalar_lea.smem %s0, 25
  %s51 = sld [smem:[%s50]]
  %s52 = scalar_lea.smem %s0, 26
  %s53 = sld [smem:[%s52]]
  %s54 = scalar_lea.smem %s0, 27
  %s55 = sld [smem:[%s54]]
  %s56 = scalar_lea.smem %s0, 28
  %s57 = sld [smem:[%s56]]
  %s58 = scalar_lea.smem %s0, 29
  %s59 = sld [smem:[%s58]]
  %s60 = scalar_lea.smem %s0, 30
  %s61 = sld [smem:[%s60]]
  %s62 = scalar_lea.smem %s0, 31
  %s63 = sld [smem:[%s62]]
  %s64 = scalar_lea.smem %s0, 32
  %s65 = sld [smem:[%s64]]
  %s66 = scalar_lea.smem %s0, 33
  %s67 = sld [smem:[%s66]]
  %s68 = sld [smem:[#allocation0]]
  $region218: #{tpu_custom_call.1} parent=0
    _
  %s70 = ssub.s32 1, %s68
  %s71 = scalar_select 0, %s70, %s68
  $region1: #{tpu_custom_call.1} parent=0
    #allocation2 [shape = 'u8[8192]{0}', space=vmem, size = 0x2000, scoped, tag = 'input window, operand 0, single buffered']
    #allocation3 [shape = 's32[1]{0}', space=sflag, size = 0x4, scoped, tag = 'scoped memory for tpu_custom_call.1']
    #allocation4 [shape = 's32[1]{0}', space=sflag, size = 0x4, scoped, tag = 'scoped memory for tpu_custom_call.1']
    #allocation5 [shape = 'u8[8192]{0}', space=vmem, size = 0x2000, scoped, tag = 'input window, operand 1, single buffered']
    #allocation6 [shape = 's32[1]{0}', space=sflag, size = 0x4, scoped, tag = 'scoped memory for tpu_custom_call.1']
    #allocation7 [shape = 'u8[8192]{0}', space=vmem, size = 0x2000, scoped, tag = 'input window, operand 2, single buffered']
    #allocation8 [shape = 'u8[28672]{0}', space=vmem, size = 0x7000, scoped, tag = 'input window, operand 4, single buffered']
    #allocation9 [shape = 's32[1]{0}', space=sflag, size = 0x4, scoped, tag = 'scoped memory for tpu_custom_call.1']
    #allocation10 [shape = 'u8[28672]{0}', space=vmem, size = 0x7000, scoped, tag = 'input window, operand 5, single buffered']
    #allocation11 [shape = 'u8[2048]{0}', space=vmem, size = 0x800, scoped, tag = 'input window, operand 7, single buffered']
    #allocation12 [shape = 's32[1]{0}', space=sflag, size = 0x4, scoped, tag = 'scoped memory for tpu_custom_call.1']
    #allocation13 [shape = 'u8[32768]{0}', space=vmem, size = 0x8000, scoped, tag = 'input window, operand 8, single buffered']
    #allocation14 [shape = 'u8[2048]{0}', space=vmem, size = 0x800, scoped, tag = 'input window, operand 9, single buffered']
    #allocation15 [shape = 's32[1]{0}', space=sflag, size = 0x4, scoped, tag = 'scoped memory for tpu_custom_call.1']
    #allocation16 [shape = 'u8[524288]{0}', space=vmem, size = 0x80000, scoped, tag = 'input window, operand 12, single buffered']
    #allocation17 [shape = 'u8[8192]{0}', space=vmem, size = 0x2000, scoped, tag = 'input window, operand 13, single buffered']
    #allocation18 [shape = 's32[1]{0}', space=sflag, size = 0x4, scoped, tag = 'scoped memory for tpu_custom_call.1']
    #allocation19 [shape = 'u8[2048]{0}', space=vmem, size = 0x800, scoped, tag = 'input window, operand 15, single buffered']
    #allocation20 [shape = 'u8[524288]{0}', space=vmem, size = 0x80000, scoped, tag = 'input window, operand 19, single buffered']
    #allocation21 [shape = 's32[1]{0}', space=sflag, size = 0x4, scoped, tag = 'scoped memory for tpu_custom_call.1']
    #allocation22 [shape = 'u8[131072]{0}', space=vmem, size = 0x20000, scoped, tag = 'input window, operand 21, single buffered']
    #allocation23 [shape = 'u8[2048]{0}', space=vmem, size = 0x800, scoped, tag = 'input window, operand 22, single buffered']
    #allocation24 [shape = 's32[1]{0}', space=sflag, size = 0x4, scoped, tag = 'scoped memory for tpu_custom_call.1']
    #allocation25 [shape = 'u8[65536]{0}', space=vmem, size = 0x10000, scoped, tag = 'input window, operand 23, single buffered']
    #allocation26 [shape = 'u8[131072]{0}', space=vmem, size = 0x20000, scoped, tag = 'input window, operand 24, single buffered']
    #allocation27 [shape = 's32[1]{0}', space=sflag, size = 0x4, scoped, tag = 'scoped memory for tpu_custom_call.1']
    #allocation28 [shape = 'u8[2048]{0}', space=vmem, size = 0x800, scoped, tag = 'input window, operand 25, single buffered']
    #allocation29 [shape = 'u8[2048]{0}', space=vmem, size = 0x800, scoped, tag = 'input window, operand 27, single buffered']
    #allocation30 [shape = 's32[1]{0}', space=sflag, size = 0x4, scoped, tag = 'scoped memory for tpu_custom_call.1']
    #allocation31 [shape = 'u8[32768]{0}', space=vmem, size = 0x8000, scoped, tag = 'input window, operand 28, single buffered']
    #allocation32 [shape = 'u8[512]{0}', space=smem, size = 0x200, scoped, tag = 'output window, operand 0, single buffered']
    %72 = vsyncpa [#allocation3], 0
    %73 = vsyncpa [#allocation6], 0
    %74 = vsyncpa [#allocation9], 0
    %75 = vsyncpa [#allocation12], 0
    %76 = vsyncpa [#allocation15], 0
    %77 = vsyncpa [#allocation18], 0
    %78 = vsyncpa [#allocation21], 0
    %79 = vsyncpa [#allocation24], 0
    %80 = vsyncpa [#allocation27], 0
    %81 = vsyncpa [#allocation30], 0
    %82 = vsyncpa [#allocation4], 0
    // Predicated region
    $region2: #{tpu_custom_call.1} parent=1 // pred_check
      _
    $region3: #{tpu_custom_call.1} parent=1 // pred_check_branch
      %84 = sbr.rel (0) target = $region5
    $region4: #{tpu_custom_call.1} parent=1 // pred_region
      %86 = vsyncadd [#allocation3], 0
      %s87 = sshll.u32 %s1, 4
      %s88 = int_to_ptr.hbm [resolvable:$true] %s87
      %s89 = sshll.u32 [#allocation2], 4
      %s90 = int_to_ptr.vmem [resolvable:$true] %s89
      %95 = dma.hbm_to_vmem [thread:$0]  %s88, 256, %s90, [#allocation3], 128, 128, 8
    $region5: #{tpu_custom_call.1} parent=1 // pred_fallthru
      _
    // Predicated region
    $region6: #{tpu_custom_call.1} parent=1 // pred_check
      _
    $region7: #{tpu_custom_call.1} parent=1 // pred_check_branch
      %97 = sbr.rel (0) target = $region9
    $region8: #{tpu_custom_call.1} parent=1 // pred_region
      %99 = vsyncadd [#allocation6], 0
      %s100 = sshll.u32 %s3, 4
      %s101 = int_to_ptr.hbm [resolvable:$true] %s100
      %s102 = sshll.u32 [#allocation5], 4
      %s103 = int_to_ptr.vmem [resolvable:$true] %s102
      %108 = dma.hbm_to_vmem [thread:$0]  %s101, 256, %s103, [#allocation6], 128, 128, 8
    $region9: #{tpu_custom_call.1} parent=1 // pred_fallthru
      _
    // Predicated region
    $region10: #{tpu_custom_call.1} parent=1 // pred_check
      _
    $region11: #{tpu_custom_call.1} parent=1 // pred_check_branch
      %110 = sbr.rel (0) target = $region13
    $region12: #{tpu_custom_call.1} parent=1 // pred_region
      %112 = vsyncadd [#allocation6], 0
      %s113 = sshll.u32 %s5, 4
      %s114 = int_to_ptr.hbm [resolvable:$true] %s113
      %s115 = sshll.u32 [#allocation7], 4
      %s116 = int_to_ptr.vmem [resolvable:$true] %s115
      %121 = dma.hbm_to_vmem [thread:$0]  %s114, 256, %s116, [#allocation6], 128, 128, 8
    $region13: #{tpu_custom_call.1} parent=1 // pred_fallthru
      _
    // Predicated region
    $region14: #{tpu_custom_call.1} parent=1 // pred_check
      _
    $region15: #{tpu_custom_call.1} parent=1 // pred_check_branch
      %123 = sbr.rel (0) target = $region17
    $region16: #{tpu_custom_call.1} parent=1 // pred_region
      _
    $region17: #{tpu_custom_call.1} parent=1 // pred_fallthru
      _
    // Predicated region
    $region18: #{tpu_custom_call.1} parent=1 // pred_check
      _
    $region19: #{tpu_custom_call.1} parent=1 // pred_check_branch
      %125 = sbr.rel (0) target = $region21
    $region20: #{tpu_custom_call.1} parent=1 // pred_region
      %127 = vsyncadd [#allocation9], 0
      %s128 = sshll.u32 %s9, 4
      %s129 = int_to_ptr.hbm [resolvable:$true] %s128
      %s130 = sshll.u32 [#allocation8], 4
      %s131 = int_to_ptr.vmem [resolvable:$true] %s130
      %136 = dma.hbm_to_vmem [thread:$0]  %s129, 896, %s131, [#allocation9], 128, 128, 8
    $region21: #{tpu_custom_call.1} parent=1 // pred_fallthru
      _
    // Predicated region
    $region22: #{tpu_custom_call.1} parent=1 // pred_check
      _
    $region23: #{tpu_custom_call.1} parent=1 // pred_check_branch
      %138 = sbr.rel (0) target = $region25
    $region24: #{tpu_custom_call.1} parent=1 // pred_region
      %140 = vsyncadd [#allocation9], 0
      %s141 = sshll.u32 %s11, 4
      %s142 = int_to_ptr.hbm [resolvable:$true] %s141
      %s143 = sshll.u32 [#allocation10], 4
      %s144 = int_to_ptr.vmem [resolvable:$true] %s143
      %149 = dma.hbm_to_vmem [thread:$0]  %s142, 896, %s144, [#allocation9], 128, 128, 8
    $region25: #{tpu_custom_call.1} parent=1 // pred_fallthru
      _
    // Predicated region
    $region26: #{tpu_custom_call.1} parent=1 // pred_check
      _
    $region27: #{tpu_custom_call.1} parent=1 // pred_check_branch
      %151 = sbr.rel (0) target = $region29
    $region28: #{tpu_custom_call.1} parent=1 // pred_region
      _
    $region29: #{tpu_custom_call.1} parent=1 // pred_fallthru
      _
    // Predicated region
    $region30: #{tpu_custom_call.1} parent=1 // pred_check
      _
    $region31: #{tpu_custom_call.1} parent=1 // pred_check_branch
      %153 = sbr.rel (0) target = $region33
    $region32: #{tpu_custom_call.1} parent=1 // pred_region
      %155 = vsyncadd [#allocation12], 0
      %s157 = sshll.u32 %s15, 4
      %s158 = int_to_ptr.hbm [resolvable:$true] %s157
      %s159 = sshll.u32 [#allocation11], 4
      %s160 = int_to_ptr.vmem [resolvable:$true] %s159
      %162 = dma.hbm_to_vmem [thread:$0]  %s158, 64, %s160, [#allocation12]
    $region33: #{tpu_custom_call.1} parent=1 // pred_fallthru
      _
    // Predicated region
    $region34: #{tpu_custom_call.1} parent=1 // pred_check
      _
    $region35: #{tpu_custom_call.1} parent=1 // pred_check_branch
      %164 = sbr.rel (0) target = $region37
    $region36: #{tpu_custom_call.1} parent=1 // pred_region
      %166 = vsyncadd [#allocation12], 0
      %s167 = sshll.u32 %s17, 4
      %s168 = int_to_ptr.hbm [resolvable:$true] %s167
      %s169 = sshll.u32 [#allocation13], 4
      %s170 = int_to_ptr.vmem [resolvable:$true] %s169
      %175 = dma.hbm_to_vmem [thread:$0]  %s168, 1024, %s170, [#allocation12], 128, 128, 8
    $region37: #{tpu_custom_call.1} parent=1 // pred_fallthru
      _
    // Predicated region
    $region38: #{tpu_custom_call.1} parent=1 // pred_check
      _
    $region39: #{tpu_custom_call.1} parent=1 // pred_check_branch
      %177 = sbr.rel (0) target = $region41
    $region40: #{tpu_custom_call.1} parent=1 // pred_region
      %179 = vsyncadd [#allocation15], 0
      %s181 = sshll.u32 %s19, 4
      %s182 = int_to_ptr.hbm [resolvable:$true] %s181
      %s183 = sshll.u32 [#allocation14], 4
      %s184 = int_to_ptr.vmem [resolvable:$true] %s183
      %186 = dma.hbm_to_vmem [thread:$0]  %s182, 64, %s184, [#allocation15]
    $region41: #{tpu_custom_call.1} parent=1 // pred_fallthru
      _
    // Predicated region
    $region42: #{tpu_custom_call.1} parent=1 // pred_check
      _
    $region43: #{tpu_custom_call.1} parent=1 // pred_check_branch
      %188 = sbr.rel (0) target = $region45
    $region44: #{tpu_custom_call.1} parent=1 // pred_region
      _
    $region45: #{tpu_custom_call.1} parent=1 // pred_fallthru
      _
    // Predicated region
    $region46: #{tpu_custom_call.1} parent=1 // pred_check
      _
    $region47: #{tpu_custom_call.1} parent=1 // pred_check_branch
      %190 = sbr.rel (0) target = $region49
    $region48: #{tpu_custom_call.1} parent=1 // pred_region
      _
    $region49: #{tpu_custom_call.1} parent=1 // pred_fallthru
      _
    // Predicated region
    $region50: #{tpu_custom_call.1} parent=1 // pred_check
      _
    $region51: #{tpu_custom_call.1} parent=1 // pred_check_branch
      %192 = sbr.rel (0) target = $region53
    $region52: #{tpu_custom_call.1} parent=1 // pred_region
      %194 = vsyncadd [#allocation15], 0
      %s195 = sshll.u32 %s25, 4
      %s196 = int_to_ptr.hbm [resolvable:$true] %s195
      %s197 = sshll.u32 [#allocation16], 4
      %s198 = int_to_ptr.vmem [resolvable:$true] %s197
      %203 = dma.hbm_to_vmem [thread:$0]  %s196, 16384, %s198, [#allocation15], 512, 512, 32
    $region53: #{tpu_custom_call.1} parent=1 // pred_fallthru
      _
    // Predicated region
    $region54: #{tpu_custom_call.1} parent=1 // pred_check
      _
    $region55: #{tpu_custom_call.1} parent=1 // pred_check_branch
      %205 = sbr.rel (0) target = $region57
    $region56: #{tpu_custom_call.1} parent=1 // pred_region
      %207 = vsyncadd [#allocation18], 0
      %s209 = sshll.u32 %s27, 4
      %s210 = int_to_ptr.hbm [resolvable:$true] %s209
      %s211 = sshll.u32 [#allocation17], 4
      %s212 = int_to_ptr.vmem [resolvable:$true] %s211
      %214 = dma.hbm_to_vmem [thread:$0]  %s210, 256, %s212, [#allocation18]
    $region57: #{tpu_custom_call.1} parent=1 // pred_fallthru
      _
    // Predicated region
    $region58: #{tpu_custom_call.1} parent=1 // pred_check
      _
    $region59: #{tpu_custom_call.1} parent=1 // pred_check_branch
      %216 = sbr.rel (0) target = $region61
    $region60: #{tpu_custom_call.1} parent=1 // pred_region
      _
    $region61: #{tpu_custom_call.1} parent=1 // pred_fallthru
      _
    // Predicated region
    $region62: #{tpu_custom_call.1} parent=1 // pred_check
      _
    $region63: #{tpu_custom_call.1} parent=1 // pred_check_branch
      %218 = sbr.rel (0) target = $region65
    $region64: #{tpu_custom_call.1} parent=1 // pred_region
      %220 = vsyncadd [#allocation18], 0
      %s222 = sshll.u32 %s31, 4
      %s223 = int_to_ptr.hbm [resolvable:$true] %s222
      %s224 = sshll.u32 [#allocation19], 4
      %s225 = int_to_ptr.vmem [resolvable:$true] %s224
      %227 = dma.hbm_to_vmem [thread:$0]  %s223, 64, %s225, [#allocation18]
    $region65: #{tpu_custom_call.1} parent=1 // pred_fallthru
      _
    // Predicated region
    $region66: #{tpu_custom_call.1} parent=1 // pred_check
      _
    $region67: #{tpu_custom_call.1} parent=1 // pred_check_branch
      %229 = sbr.rel (0) target = $region69
    $region68: #{tpu_custom_call.1} parent=1 // pred_region
      _
    $region69: #{tpu_custom_call.1} parent=1 // pred_fallthru
      _
    // Predicated region
    $region70: #{tpu_custom_call.1} parent=1 // pred_check
      _
    $region71: #{tpu_custom_call.1} parent=1 // pred_check_branch
      %231 = sbr.rel (0) target = $region73
    $region72: #{tpu_custom_call.1} parent=1 // pred_region
      _
    $region73: #{tpu_custom_call.1} parent=1 // pred_fallthru
      _
    // Predicated region
    $region74: #{tpu_custom_call.1} parent=1 // pred_check
      _
    $region75: #{tpu_custom_call.1} parent=1 // pred_check_branch
      %233 = sbr.rel (0) target = $region77
    $region76: #{tpu_custom_call.1} parent=1 // pred_region
      _
    $region77: #{tpu_custom_call.1} parent=1 // pred_fallthru
      _
    // Predicated region
    $region78: #{tpu_custom_call.1} parent=1 // pred_check
      _
    $region79: #{tpu_custom_call.1} parent=1 // pred_check_branch
      %235 = sbr.rel (0) target = $region81
    $region80: #{tpu_custom_call.1} parent=1 // pred_region
      %237 = vsyncadd [#allocation21], 0
      %s238 = sshll.u32 %s39, 4
      %s239 = int_to_ptr.hbm [resolvable:$true] %s238
      %s240 = sshll.u32 [#allocation20], 4
      %s241 = int_to_ptr.vmem [resolvable:$true] %s240
      %246 = dma.hbm_to_vmem [thread:$0]  %s239, 16384, %s241, [#allocation21], 256, 256, 16
    $region81: #{tpu_custom_call.1} parent=1 // pred_fallthru
      _
    // Predicated region
    $region82: #{tpu_custom_call.1} parent=1 // pred_check
      _
    $region83: #{tpu_custom_call.1} parent=1 // pred_check_branch
      %248 = sbr.rel (0) target = $region85
    $region84: #{tpu_custom_call.1} parent=1 // pred_region
      _
    $region85: #{tpu_custom_call.1} parent=1 // pred_fallthru
      _
    // Predicated region
    $region86: #{tpu_custom_call.1} parent=1 // pred_check
      _
    $region87: #{tpu_custom_call.1} parent=1 // pred_check_branch
      %250 = sbr.rel (0) target = $region89
    $region88: #{tpu_custom_call.1} parent=1 // pred_region
      %252 = vsyncadd [#allocation21], 0
      %s253 = sshll.u32 %s43, 4
      %s254 = int_to_ptr.hbm [resolvable:$true] %s253
      %s255 = sshll.u32 [#allocation22], 4
      %s256 = int_to_ptr.vmem [resolvable:$true] %s255
      %261 = dma.hbm_to_vmem [thread:$0]  %s254, 4096, %s256, [#allocation21], 128, 128, 8
    $region89: #{tpu_custom_call.1} parent=1 // pred_fallthru
      _
    // Predicated region
    $region90: #{tpu_custom_call.1} parent=1 // pred_check
      _
    $region91: #{tpu_custom_call.1} parent=1 // pred_check_branch
      %263 = sbr.rel (0) target = $region93
    $region92: #{tpu_custom_call.1} parent=1 // pred_region
      %265 = vsyncadd [#allocation24], 0
      %s267 = sshll.u32 %s45, 4
      %s268 = int_to_ptr.hbm [resolvable:$true] %s267
      %s269 = sshll.u32 [#allocation23], 4
      %s270 = int_to_ptr.vmem [resolvable:$true] %s269
      %272 = dma.hbm_to_vmem [thread:$0]  %s268, 64, %s270, [#allocation24]
    $region93: #{tpu_custom_call.1} parent=1 // pred_fallthru
      _
    // Predicated region
    $region94: #{tpu_custom_call.1} parent=1 // pred_check
      _
    $region95: #{tpu_custom_call.1} parent=1 // pred_check_branch
      %274 = sbr.rel (0) target = $region97
    $region96: #{tpu_custom_call.1} parent=1 // pred_region
      %276 = vsyncadd [#allocation24], 0
      %s277 = sshll.u32 %s47, 4
      %s278 = int_to_ptr.hbm [resolvable:$true] %s277
      %s279 = sshll.u32 [#allocation25], 4
      %s280 = int_to_ptr.vmem [resolvable:$true] %s279
      %285 = dma.hbm_to_vmem [thread:$0]  %s278, 2048, %s280, [#allocation24], 128, 128, 8
    $region97: #{tpu_custom_call.1} parent=1 // pred_fallthru
      _
    // Predicated region
    $region98: #{tpu_custom_call.1} parent=1 // pred_check
      _
    $region99: #{tpu_custom_call.1} parent=1 // pred_check_branch
      %287 = sbr.rel (0) target = $region101
    $region100: #{tpu_custom_call.1} parent=1 // pred_region
      %289 = vsyncadd [#allocation27], 0
      %s290 = sshll.u32 %s49, 4
      %s291 = int_to_ptr.hbm [resolvable:$true] %s290
      %s292 = sshll.u32 [#allocation26], 4
      %s293 = int_to_ptr.vmem [resolvable:$true] %s292
      %298 = dma.hbm_to_vmem [thread:$0]  %s291, 4096, %s293, [#allocation27], 128, 128, 8
    $region101: #{tpu_custom_call.1} parent=1 // pred_fallthru
      _
    // Predicated region
    $region102: #{tpu_custom_call.1} parent=1 // pred_check
      _
    $region103: #{tpu_custom_call.1} parent=1 // pred_check_branch
      %300 = sbr.rel (0) target = $region105
    $region104: #{tpu_custom_call.1} parent=1 // pred_region
      %302 = vsyncadd [#allocation27], 0
      %s304 = sshll.u32 %s51, 4
      %s305 = int_to_ptr.hbm [resolvable:$true] %s304
      %s306 = sshll.u32 [#allocation28], 4
      %s307 = int_to_ptr.vmem [resolvable:$true] %s306
      %309 = dma.hbm_to_vmem [thread:$0]  %s305, 64, %s307, [#allocation27]
    $region105: #{tpu_custom_call.1} parent=1 // pred_fallthru
      _
    // Predicated region
    $region106: #{tpu_custom_call.1} parent=1 // pred_check
      _
    $region107: #{tpu_custom_call.1} parent=1 // pred_check_branch
      %311 = sbr.rel (0) target = $region109
    $region108: #{tpu_custom_call.1} parent=1 // pred_region
      _
    $region109: #{tpu_custom_call.1} parent=1 // pred_fallthru
      _
    // Predicated region
    $region110: #{tpu_custom_call.1} parent=1 // pred_check
      _
    $region111: #{tpu_custom_call.1} parent=1 // pred_check_branch
      %313 = sbr.rel (0) target = $region113
    $region112: #{tpu_custom_call.1} parent=1 // pred_region
      %315 = vsyncadd [#allocation30], 0
      %s317 = sshll.u32 %s55, 4
      %s318 = int_to_ptr.hbm [resolvable:$true] %s317
      %s319 = sshll.u32 [#allocation29], 4
      %s320 = int_to_ptr.vmem [resolvable:$true] %s319
      %322 = dma.hbm_to_vmem [thread:$0]  %s318, 64, %s320, [#allocation30]
    $region113: #{tpu_custom_call.1} parent=1 // pred_fallthru
      _
    // Predicated region
    $region114: #{tpu_custom_call.1} parent=1 // pred_check
      _
    $region115: #{tpu_custom_call.1} parent=1 // pred_check_branch
      %324 = sbr.rel (0) target = $region117
    $region116: #{tpu_custom_call.1} parent=1 // pred_region
      %326 = vsyncadd [#allocation30], 0
      %s327 = sshll.u32 %s57, 4
      %s328 = int_to_ptr.hbm [resolvable:$true] %s327
      %s329 = sshll.u32 [#allocation31], 4
      %s330 = int_to_ptr.vmem [resolvable:$true] %s329
      %335 = dma.hbm_to_vmem [thread:$0]  %s328, 1024, %s330, [#allocation30], 128, 128, 8
    $region117: #{tpu_custom_call.1} parent=1 // pred_fallthru
      _
    // Predicated region
    $region118: #{tpu_custom_call.1} parent=1 // pred_check
      _
    $region119: #{tpu_custom_call.1} parent=1 // pred_check_branch
      %337 = sbr.rel (0) target = $region121
    $region120: #{tpu_custom_call.1} parent=1 // pred_region
      _
    $region121: #{tpu_custom_call.1} parent=1 // pred_fallthru
      _
    // Predicated region
    $region122: #{tpu_custom_call.1} parent=1 // pred_check
      _
    $region123: #{tpu_custom_call.1} parent=1 // pred_check_branch
      %339 = sbr.rel (0) target = $region125
    $region124: #{tpu_custom_call.1} parent=1 // pred_region
      _
    $region125: #{tpu_custom_call.1} parent=1 // pred_fallthru
      _
    // Predicated region
    $region126: #{tpu_custom_call.1} parent=1 // pred_check
      _
    $region127: #{tpu_custom_call.1} parent=1 // pred_check_branch
      %341 = sbr.rel (0) target = $region129
    $region128: #{tpu_custom_call.1} parent=1 // pred_region
      _
    $region129: #{tpu_custom_call.1} parent=1 // pred_fallthru
      _
    // Predicated region
    $region130: #{tpu_custom_call.1} parent=1 // pred_check
      _
    $region131: #{tpu_custom_call.1} parent=1 // pred_check_branch
      %343 = sbr.rel (0) target = $region133
    $region132: #{tpu_custom_call.1} parent=1 // pred_region
      _
    $region133: #{tpu_custom_call.1} parent=1 // pred_fallthru
      _
    // Predicated region
    $region134: #{tpu_custom_call.1} parent=1 // pred_check
      _
    $region135: #{tpu_custom_call.1} parent=1 // pred_check_branch
      %345 = sbr.rel (0) target = $region137
    $region136: #{tpu_custom_call.1} parent=1 // pred_region
      %347 = dma.done [#allocation3], 256
    $region137: #{tpu_custom_call.1} parent=1 // pred_fallthru
      _
    // Predicated region
    $region138: #{tpu_custom_call.1} parent=1 // pred_check
      _
    $region139: #{tpu_custom_call.1} parent=1 // pred_check_branch
      %349 = sbr.rel (0) target = $region141
    $region140: #{tpu_custom_call.1} parent=1 // pred_region
      %351 = dma.done [#allocation6], 256
    $region141: #{tpu_custom_call.1} parent=1 // pred_fallthru
      _
    // Predicated region
    $region142: #{tpu_custom_call.1} parent=1 // pred_check
      _
    $region143: #{tpu_custom_call.1} parent=1 // pred_check_branch
      %353 = sbr.rel (0) target = $region145
    $region144: #{tpu_custom_call.1} parent=1 // pred_region
      %355 = dma.done [#allocation6], 256
    $region145: #{tpu_custom_call.1} parent=1 // pred_fallthru
      _
    // Predicated region
    $region146: #{tpu_custom_call.1} parent=1 // pred_check
      _
    $region147: #{tpu_custom_call.1} parent=1 // pred_check_branch
      %357 = sbr.rel (0) target = $region149
    $region148: #{tpu_custom_call.1} parent=1 // pred_region
      %359 = dma.done [#allocation9], 896
    $region149: #{tpu_custom_call.1} parent=1 // pred_fallthru
      _
    // Predicated region
    $region150: #{tpu_custom_call.1} parent=1 // pred_check
      _
    $region151: #{tpu_custom_call.1} parent=1 // pred_check_branch
      %361 = sbr.rel (0) target = $region153
    $region152: #{tpu_custom_call.1} parent=1 // pred_region
      %363 = dma.done [#allocation9], 896
    $region153: #{tpu_custom_call.1} parent=1 // pred_fallthru
      _
    // Predicated region
    $region154: #{tpu_custom_call.1} parent=1 // pred_check
      _
    $region155: #{tpu_custom_call.1} parent=1 // pred_check_branch
      %365 = sbr.rel (0) target = $region157
    $region156: #{tpu_custom_call.1} parent=1 // pred_region
      %367 = dma.done [#allocation12], 64
    $region157: #{tpu_custom_call.1} parent=1 // pred_fallthru
      _
    // Predicated region
    $region158: #{tpu_custom_call.1} parent=1 // pred_check
      _
    $region159: #{tpu_custom_call.1} parent=1 // pred_check_branch
      %369 = sbr.rel (0) target = $region161
    $region160: #{tpu_custom_call.1} parent=1 // pred_region
      %371 = dma.done [#allocation12], 1024
    $region161: #{tpu_custom_call.1} parent=1 // pred_fallthru
      _
    // Predicated region
    $region162: #{tpu_custom_call.1} parent=1 // pred_check
      _
    $region163: #{tpu_custom_call.1} parent=1 // pred_check_branch
      %373 = sbr.rel (0) target = $region165
    $region164: #{tpu_custom_call.1} parent=1 // pred_region
      %375 = dma.done [#allocation15], 64
    $region165: #{tpu_custom_call.1} parent=1 // pred_fallthru
      _
    // Predicated region
    $region166: #{tpu_custom_call.1} parent=1 // pred_check
      _
    $region167: #{tpu_custom_call.1} parent=1 // pred_check_branch
      %377 = sbr.rel (0) target = $region169
    $region168: #{tpu_custom_call.1} parent=1 // pred_region
      %379 = dma.done [#allocation15], 16384
    $region169: #{tpu_custom_call.1} parent=1 // pred_fallthru
      _
    // Predicated region
    $region170: #{tpu_custom_call.1} parent=1 // pred_check
      _
    $region171: #{tpu_custom_call.1} parent=1 // pred_check_branch
      %381 = sbr.rel (0) target = $region173
    $region172: #{tpu_custom_call.1} parent=1 // pred_region
      %383 = dma.done [#allocation18], 256
    $region173: #{tpu_custom_call.1} parent=1 // pred_fallthru
      _
    // Predicated region
    $region174: #{tpu_custom_call.1} parent=1 // pred_check
      _
    $region175: #{tpu_custom_call.1} parent=1 // pred_check_branch
      %385 = sbr.rel (0) target = $region177
    $region176: #{tpu_custom_call.1} parent=1 // pred_region
      %387 = dma.done [#allocation18], 64
    $region177: #{tpu_custom_call.1} parent=1 // pred_fallthru
      _
    // Predicated region
    $region178: #{tpu_custom_call.1} parent=1 // pred_check
      _
    $region179: #{tpu_custom_call.1} parent=1 // pred_check_branch
      %389 = sbr.rel (0) target = $region181
    $region180: #{tpu_custom_call.1} parent=1 // pred_region
      %391 = dma.done [#allocation21], 16384
    $region181: #{tpu_custom_call.1} parent=1 // pred_fallthru
      _
    // Predicated region
    $region182: #{tpu_custom_call.1} parent=1 // pred_check
      _
    $region183: #{tpu_custom_call.1} parent=1 // pred_check_branch
      %393 = sbr.rel (0) target = $region185
    $region184: #{tpu_custom_call.1} parent=1 // pred_region
      %395 = dma.done [#allocation21], 4096
    $region185: #{tpu_custom_call.1} parent=1 // pred_fallthru
      _
    // Predicated region
    $region186: #{tpu_custom_call.1} parent=1 // pred_check
      _
    $region187: #{tpu_custom_call.1} parent=1 // pred_check_branch
      %397 = sbr.rel (0) target = $region189
    $region188: #{tpu_custom_call.1} parent=1 // pred_region
      %399 = dma.done [#allocation24], 64
    $region189: #{tpu_custom_call.1} parent=1 // pred_fallthru
      _
    // Predicated region
    $region190: #{tpu_custom_call.1} parent=1 // pred_check
      _
    $region191: #{tpu_custom_call.1} parent=1 // pred_check_branch
      %401 = sbr.rel (0) target = $region193
    $region192: #{tpu_custom_call.1} parent=1 // pred_region
      %403 = dma.done [#allocation24], 2048
    $region193: #{tpu_custom_call.1} parent=1 // pred_fallthru
      _
    // Predicated region
    $region194: #{tpu_custom_call.1} parent=1 // pred_check
      _
    $region195: #{tpu_custom_call.1} parent=1 // pred_check_branch
      %405 = sbr.rel (0) target = $region197
    $region196: #{tpu_custom_call.1} parent=1 // pred_region
      %407 = dma.done [#allocation27], 4096
    $region197: #{tpu_custom_call.1} parent=1 // pred_fallthru
      _
    // Predicated region
    $region198: #{tpu_custom_call.1} parent=1 // pred_check
      _
    $region199: #{tpu_custom_call.1} parent=1 // pred_check_branch
      %409 = sbr.rel (0) target = $region201
    $region200: #{tpu_custom_call.1} parent=1 // pred_region
      %411 = dma.done [#allocation27], 64
    $region201: #{tpu_custom_call.1} parent=1 // pred_fallthru
      _
    // Predicated region
    $region202: #{tpu_custom_call.1} parent=1 // pred_check
      _
    $region203: #{tpu_custom_call.1} parent=1 // pred_check_branch
      %413 = sbr.rel (0) target = $region205
    $region204: #{tpu_custom_call.1} parent=1 // pred_region
      %415 = dma.done [#allocation30], 64
    $region205: #{tpu_custom_call.1} parent=1 // pred_fallthru
      _
    // Predicated region
    $region206: #{tpu_custom_call.1} parent=1 // pred_check
      _
    $region207: #{tpu_custom_call.1} parent=1 // pred_check_branch
      %417 = sbr.rel (0) target = $region209
    $region208: #{tpu_custom_call.1} parent=1 // pred_region
      %419 = dma.done [#allocation30], 1024
    $region209: #{tpu_custom_call.1} parent=1 // pred_fallthru
      _
    %v420 = vld [vmem:[%s7] sm:$0xff]
    %v421 = vld [vmem:[%s7 + $0x8] sm:$0xff]
    %v422 = vld [vmem:[#allocation5] sm:$0xff]
    %v423 = vld [vmem:[#allocation5 + $0x8] sm:$0xff]
    %v424 = vld [vmem:[#allocation2] sm:$0xff]
    %v425 = vld [vmem:[#allocation2 + $0x8] sm:$0xff]
    %427 = vset.pattern.permute.xlu0 0
    %428 = vperm.xlu0 %427, %v420
    %v429 = vpop.permute.xlu0 %428
    %432 = vset.pattern.permute.xlu0 0
    %433 = vperm.xlu0 %432, %v421
    %v434 = vpop.permute.xlu0 %433
    %v436 = vmul.f32 %v429, %v424
    %v437 = vmul.f32 %v434, %v425
    %438 = vset.pattern.permute.xlu0 1
    %439 = vperm.xlu0 %438, %v420
    %v440 = vpop.permute.xlu0 %439
    %442 = vset.pattern.permute.xlu0 1
    %443 = vperm.xlu0 %442, %v421
    %v444 = vpop.permute.xlu0 %443
    %v446 = vmul.f32 %v440, %v422
    %v447 = vmul.f32 %v444, %v423
    %v448 = vadd.f32 %v436, %v446
    %v449 = vadd.f32 %v437, %v447
    %v450 = vld [vmem:[#allocation8] sm:$0xff]
    %v451 = vld [vmem:[#allocation8 + $0x8] sm:$0xff]
    %v452 = vld [vmem:[#allocation8 + $0x10] sm:$0xff]
    %v453 = vld [vmem:[#allocation8 + $0x18] sm:$0xff]
    %v454 = vld [vmem:[#allocation8 + $0x20] sm:$0xff]
    %v455 = vld [vmem:[#allocation8 + $0x28] sm:$0xff]
    %v456 = vld [vmem:[#allocation8 + $0x30] sm:$0x3]
    %v457 = vld [vmem:[#allocation10] sm:$0xff]
    %v458 = vld [vmem:[#allocation10 + $0x8] sm:$0xff]
    %v459 = vld [vmem:[#allocation10 + $0x10] sm:$0xff]
    %v460 = vld [vmem:[#allocation10 + $0x18] sm:$0xff]
    %v461 = vld [vmem:[#allocation10 + $0x20] sm:$0xff]
    %v462 = vld [vmem:[#allocation10 + $0x28] sm:$0xff]
    %v463 = vld [vmem:[#allocation10 + $0x30] sm:$0x7f]
    %v464 = vld [vmem:[%s13] sm:$0x1]
    %v465 = vld [vmem:[#allocation7] sm:$0xff]
    %v466 = vld [vmem:[#allocation7 + $0x8] sm:$0xff]
    %vm467 = vcmask 449536
    %v469 = vsel %vm467, %v465, 0
    %v472 = vsel %vm467, %v466, 0
    %vm474 = vcmask 1046528
    %v476 = vsel %vm474, %v463, 0
    %478 = vmatpush.msra.mxu0 0.0
    %479 = vmatpush.msra.mxu0 0.0
    %480 = vmatpush.msra.mxu0 0.0
    %481 = vmatpush.msra.mxu0 0.0
    %482 = vmatpush.msra.mxu0 0.0
    %483 = vmatpush.msra.mxu0 0.0
    %484 = vmatpush.msra.mxu0 0.0
    %485 = vmatpush.msra.mxu0 0.0
    %486 = vmatpush.msra.mxu0 0.0
    %487 = vmatpush.msra.mxu0 %v476
    %488 = vmatpush.msra.mxu0 %v462
    %489 = vmatpush.msra.mxu0 %v461
    %490 = vmatpush.msra.mxu0 %v460
    %491 = vmatpush.msra.mxu0 %v459
    %492 = vmatpush.msra.mxu0 %v458
    %493 = vmatpush.msra.mxu0 %v457
    %494 = vmatmul.f32.gmra.mxu0 %v469
    %v495 = vpop.f32.mrf.mxu0
    %v496 = vadd.f32 0.0, %v495
    %497 = vmatmul.f32.gmra.mxu0 %v472
    %v498 = vpop.f32.mrf.mxu0
    %v499 = vadd.f32 0.0, %v498
    %500 = vdwg.mxu0
    %vm501 = vcmask 408576
    %v503 = vsel %vm501, %v448, 0
    %v506 = vsel %vm501, %v449, 0
    %vm508 = vcmask 1041408
    %v510 = vsel %vm508, %v456, 0
    %512 = vmatpush.msra.mxu0 0.0
    %513 = vmatpush.msra.mxu0 0.0
    %514 = vmatpush.msra.mxu0 0.0
    %515 = vmatpush.msra.mxu0 0.0
    %516 = vmatpush.msra.mxu0 0.0
    %517 = vmatpush.msra.mxu0 0.0
    %518 = vmatpush.msra.mxu0 0.0
    %519 = vmatpush.msra.mxu0 0.0
    %520 = vmatpush.msra.mxu0 0.0
    %521 = vmatpush.msra.mxu0 %v510
    %522 = vmatpush.msra.mxu0 %v455
    %523 = vmatpush.msra.mxu0 %v454
    %524 = vmatpush.msra.mxu0 %v453
    %525 = vmatpush.msra.mxu0 %v452
    %526 = vmatpush.msra.mxu0 %v451
    %527 = vmatpush.msra.mxu0 %v450
    %528 = vmatmul.f32.gmra.mxu0 %v503
    %v529 = vpop.f32.mrf.mxu0
    %v530 = vadd.f32 %v496, %v529
    %531 = vmatmul.f32.gmra.mxu0 %v506
    %v532 = vpop.f32.mrf.mxu0
    %v533 = vadd.f32 %v499, %v532
    %534 = vdwg.mxu0
    %535 = vset.pattern.permute.xlu0 2
    %536 = vperm.xlu0 %535, %v420
    %v537 = vpop.permute.xlu0 %536
    %539 = vset.pattern.permute.xlu0 2
    %540 = vperm.xlu0 %539, %v421
    %v541 = vpop.permute.xlu0 %540
    %v544 = vperm.slane %v464, 0
    %v546 = vmul.f32 %v537, %v544
    %v547 = vmul.f32 %v541, %v544
    %v548 = vadd.f32 %v530, %v546
    %v549 = vadd.f32 %v533, %v547
    %v550 = vld [vmem:[#allocation11] sm:$0x7]
    %v551 = vperm.slane %v550, 0
    %v552 = vadd.f32 %v548, %v551
    %v553 = vadd.f32 %v549, %v551
    %vm554 = vcmp.gt.f32.partialorder %v552, 0.0
    %vm555 = vcmp.gt.f32.partialorder %v553, 0.0
    %v556 = vmul.f32 %v552, 0.01
    %v557 = vmul.f32 %v553, 0.01
    %v558 = vsel %vm554, %v552, %v556
    %v559 = vsel %vm555, %v553, %v557
    %vm560 = vcmask 523264
    %v561 = vsel %vm560, %v558, 0.0
    %v562 = vsel %vm560, %v559, 0.0
    %v563 = vadd.f32 %v561, %v562
    %v564 = vrot.slane %v563, 4
    %v565 = vadd.f32 %v563, %v564
    %v566 = vrot.slane %v565, 2
    %v567 = vadd.f32 %v565, %v566
    %v568 = vrot.slane %v567, 1
    %v569 = vadd.f32 %v567, %v568
    %v570 = vrcp.pop 16.0
    %v571 = vmul.f32 16.0, %v570
    %v572 = vsub.f32 1.0, %v571
    %v573 = vmul.f32 %v570, %v572
    %v574 = vadd.f32 %v570, %v573
    %vm575 = vweird.f32 %v570
    %v576 = vsel %vm575, %v570, %v574
    %v577 = vmul.f32 %v569, %v576
    %v578 = vsub.f32 %v558, %v577
    %v579 = vsub.f32 %v559, %v577
    %v580 = vmul.f32 %v578, %v578
    %v581 = vmul.f32 %v579, %v579
    %v582 = vsel %vm560, %v580, 0.0
    %v583 = vsel %vm560, %v581, 0.0
    %v584 = vadd.f32 %v582, %v583
    %v585 = vrot.slane %v584, 4
    %v586 = vadd.f32 %v584, %v585
    %v587 = vrot.slane %v586, 2
    %v588 = vadd.f32 %v586, %v587
    %v589 = vrot.slane %v588, 1
    %v590 = vadd.f32 %v588, %v589
    %v591 = vmul.f32 %v590, %v576
    %v592 = vadd.f32 %v591, 1e-05
    %v593 = vrsqrt.pop %v592
    %v594 = vmul.f32 %v593, %v592
    %v595 = vmul.f32 %v594, %v593
    %v596 = vmul.f32 0.5, %v595
    %v597 = vsub.f32 1.5, %v596
    %v598 = vmul.f32 %v593, %v597
    %vm599 = vweird.f32 %v592
    %vm600 = vweird.f32 %v593
    %vm601 = vmor %vm599, %vm600
    %v602 = vsel %vm601, %v593, %v598
    %v603 = vmul.f32 %v602, %v550
    %v604 = vperm.slane %v603, 1
    %v605 = vmul.f32 %v578, %v604
    %v606 = vmul.f32 %v579, %v604
    %v607 = vperm.slane %v550, 2
    %v608 = vadd.f32 %v605, %v607
    %v609 = vadd.f32 %v606, %v607
    %v610 = vld [vmem:[#allocation13] sm:$0xff]
    %v611 = vld [vmem:[#allocation13 + $0x8] sm:$0xff]
    %v612 = vld [vmem:[#allocation13 + $0x10] sm:$0xff]
    %v613 = vld [vmem:[#allocation13 + $0x18] sm:$0xff]
    %v614 = vld [vmem:[#allocation13 + $0x20] sm:$0xff]
    %v615 = vld [vmem:[#allocation13 + $0x28] sm:$0xff]
    %v616 = vld [vmem:[#allocation13 + $0x30] sm:$0xff]
    %v617 = vld [vmem:[#allocation13 + $0x38] sm:$0xff]
    %v618 = vld [vmem:[#allocation14] sm:$0x7]
    %v619 = vperm.slane %v618, 0
    %v621 = vsel %vm560, %v608, 0
    %v624 = vsel %vm560, %v609, 0
    %626 = vmatpush.msra.mxu0 0.0
    %627 = vmatpush.msra.mxu0 0.0
    %628 = vmatpush.msra.mxu0 0.0
    %629 = vmatpush.msra.mxu0 0.0
    %630 = vmatpush.msra.mxu0 0.0
    %631 = vmatpush.msra.mxu0 0.0
    %632 = vmatpush.msra.mxu0 0.0
    %633 = vmatpush.msra.mxu0 0.0
    %634 = vmatpush.msra.mxu0 %v617
    %635 = vmatpush.msra.mxu0 %v616
    %636 = vmatpush.msra.mxu0 %v615
    %637 = vmatpush.msra.mxu0 %v614
    %638 = vmatpush.msra.mxu0 %v613
    %639 = vmatpush.msra.mxu0 %v612
    %640 = vmatpush.msra.mxu0 %v611
    %641 = vmatpush.msra.mxu0 %v610
    %642 = vmatmul.f32.gmra.mxu0 %v621
    %v643 = vpop.f32.mrf.mxu0
    %v644 = vadd.f32 %v619, %v643
    %645 = vmatmul.f32.gmra.mxu0 %v624
    %v646 = vpop.f32.mrf.mxu0
    %v647 = vadd.f32 %v619, %v646
    %648 = vdwg.mxu0
    %vm649 = vcmp.gt.f32.partialorder %v644, 0.0
    %vm650 = vcmp.gt.f32.partialorder %v647, 0.0
    %v651 = vmul.f32 %v644, 0.01
    %v652 = vmul.f32 %v647, 0.01
    %v653 = vsel %vm649, %v644, %v651
    %v654 = vsel %vm650, %v647, %v652
    %v655 = vadd.f32 %v653, %v654
    %v656 = vrot.slane %v655, 4
    %v657 = vadd.f32 %v655, %v656
    %v658 = vrot.slane %v657, 2
    %v659 = vadd.f32 %v657, %v658
    %v660 = vrot.slane %v659, 1
    %v661 = vadd.f32 %v659, %v660
    %v662 = vmul.f32 %v661, %v576
    %v663 = vsub.f32 %v653, %v662
    %v664 = vsub.f32 %v654, %v662
    %v665 = vmul.f32 %v663, %v663
    %v666 = vmul.f32 %v664, %v664
    %v667 = vadd.f32 %v665, %v666
    %v668 = vrot.slane %v667, 4
    %v669 = vadd.f32 %v667, %v668
    %v670 = vrot.slane %v669, 2
    %v671 = vadd.f32 %v669, %v670
    %v672 = vrot.slane %v671, 1
    %v673 = vadd.f32 %v671, %v672
    %v674 = vmul.f32 %v673, %v576
    %v675 = vadd.f32 %v674, 1e-05
    %v676 = vrsqrt.pop %v675
    %v677 = vmul.f32 %v676, %v675
    %v678 = vmul.f32 %v677, %v676
    %v679 = vmul.f32 0.5, %v678
    %v680 = vsub.f32 1.5, %v679
    %v681 = vmul.f32 %v676, %v680
    %vm682 = vweird.f32 %v675
    %vm683 = vweird.f32 %v676
    %vm684 = vmor %vm682, %vm683
    %v685 = vsel %vm684, %v676, %v681
    %v686 = vmul.f32 %v685, %v618
    %v687 = vperm.slane %v686, 1
    %v688 = vmul.f32 %v663, %v687
    %v689 = vmul.f32 %v664, %v687
    %v690 = vperm.slane %v618, 2
    %v691 = vadd.f32 %v688, %v690
    %v692 = vadd.f32 %v689, %v690
    %v693 = vld [vmem:[%s21] sm:$0xff]
    %v694 = vld [vmem:[%s21 + $0x8] sm:$0xff]
    %v695 = vld [vmem:[%s21 + $0x10] sm:$0xff]
    %v696 = vld [vmem:[%s21 + $0x18] sm:$0xff]
    %v697 = vld [vmem:[%s21 + $0x20] sm:$0xff]
    %v698 = vld [vmem:[%s21 + $0x28] sm:$0xff]
    %v699 = vld [vmem:[%s21 + $0x30] sm:$0xff]
    %v700 = vld [vmem:[%s21 + $0x38] sm:$0xff]
    %v701 = vld [vmem:[%s21 + $0x40] sm:$0xff]
    %v702 = vld [vmem:[%s21 + $0x48] sm:$0xff]
    %v703 = vld [vmem:[%s21 + $0x50] sm:$0xff]
    %v704 = vld [vmem:[%s21 + $0x58] sm:$0xff]
    %v705 = vld [vmem:[%s21 + $0x60] sm:$0xff]
    %v706 = vld [vmem:[%s21 + $0x68] sm:$0xff]
    %v707 = vld [vmem:[%s21 + $0x70] sm:$0xff]
    %v708 = vld [vmem:[%s21 + $0x78] sm:$0xff]
    %v709 = vld [vmem:[%s21 + $0x80] sm:$0xff]
    %v710 = vld [vmem:[%s21 + $0x88] sm:$0xff]
    %v711 = vld [vmem:[%s21 + $0x90] sm:$0xff]
    %v712 = vld [vmem:[%s21 + $0x98] sm:$0xff]
    %v713 = vld [vmem:[%s21 + $0xa0] sm:$0xff]
    %v714 = vld [vmem:[%s21 + $0xa8] sm:$0xff]
    %v715 = vld [vmem:[%s21 + $0xb0] sm:$0xff]
    %v716 = vld [vmem:[%s21 + $0xb8] sm:$0xff]
    %v717 = vld [vmem:[%s21 + $0xc0] sm:$0xff]
    %v718 = vld [vmem:[%s21 + $0xc8] sm:$0xff]
    %v719 = vld [vmem:[%s21 + $0xd0] sm:$0xff]
    %v720 = vld [vmem:[%s21 + $0xd8] sm:$0xff]
    %v721 = vld [vmem:[%s21 + $0xe0] sm:$0xff]
    %v722 = vld [vmem:[%s21 + $0xe8] sm:$0xff]
    %v723 = vld [vmem:[%s21 + $0xf0] sm:$0xff]
    %v724 = vld [vmem:[%s21 + $0xf8] sm:$0xff]
    %v725 = vld [vmem:[%s23] sm:$0x77]
    %v727 = vperm.slane %v725, 0
    %v728 = vperm.slane %v725, 4
    %v731 = vperm.slane %v727, 0
    %v732 = vperm.slane %v728, 0
    %733 = vmatpush.msra.mxu0 %v723
    %734 = vmatpush.msra.mxu0 %v721
    %735 = vmatpush.msra.mxu0 %v719
    %736 = vmatpush.msra.mxu0 %v717
    %737 = vmatpush.msra.mxu0 %v715
    %738 = vmatpush.msra.mxu0 %v713
    %739 = vmatpush.msra.mxu0 %v711
    %740 = vmatpush.msra.mxu0 %v709
    %741 = vmatpush.msra.mxu0 %v707
    %742 = vmatpush.msra.mxu0 %v705
    %743 = vmatpush.msra.mxu0 %v703
    %744 = vmatpush.msra.mxu0 %v701
    %745 = vmatpush.msra.mxu0 %v699
    %746 = vmatpush.msra.mxu0 %v697
    %747 = vmatpush.msra.mxu0 %v695
    %748 = vmatpush.msra.mxu0 %v693
    %749 = vmatmul.f32.gmra.mxu0 %v691
    %v750 = vpop.f32.mrf.mxu0
    %v751 = vadd.f32 %v731, %v750
    %752 = vmatmul.f32.gmra.mxu0 %v692
    %v753 = vpop.f32.mrf.mxu0
    %v754 = vadd.f32 %v731, %v753
    %755 = vdwg.mxu0
    %756 = vmatpush.msra.mxu0 %v724
    %757 = vmatpush.msra.mxu0 %v722
    %758 = vmatpush.msra.mxu0 %v720
    %759 = vmatpush.msra.mxu0 %v718
    %760 = vmatpush.msra.mxu0 %v716
    %761 = vmatpush.msra.mxu0 %v714
    %762 = vmatpush.msra.mxu0 %v712
    %763 = vmatpush.msra.mxu0 %v710
    %764 = vmatpush.msra.mxu0 %v708
    %765 = vmatpush.msra.mxu0 %v706
    %766 = vmatpush.msra.mxu0 %v704
    %767 = vmatpush.msra.mxu0 %v702
    %768 = vmatpush.msra.mxu0 %v700
    %769 = vmatpush.msra.mxu0 %v698
    %770 = vmatpush.msra.mxu0 %v696
    %771 = vmatpush.msra.mxu0 %v694
    %772 = vmatmul.f32.gmra.mxu0 %v691
    %v773 = vpop.f32.mrf.mxu0
    %v774 = vadd.f32 %v732, %v773
    %775 = vmatmul.f32.gmra.mxu0 %v692
    %v776 = vpop.f32.mrf.mxu0
    %v777 = vadd.f32 %v732, %v776
    %778 = vdwg.mxu0
    %vm779 = vcmp.gt.f32.partialorder %v751, 0.0
    %vm780 = vcmp.gt.f32.partialorder %v774, 0.0
    %vm781 = vcmp.gt.f32.partialorder %v754, 0.0
    %vm782 = vcmp.gt.f32.partialorder %v777, 0.0
    %v783 = vmul.f32 %v751, 0.01
    %v784 = vmul.f32 %v774, 0.01
    %v785 = vmul.f32 %v754, 0.01
    %v786 = vmul.f32 %v777, 0.01
    %v787 = vsel %vm779, %v751, %v783
    %v788 = vsel %vm780, %v774, %v784
    %v789 = vsel %vm781, %v754, %v785
    %v790 = vsel %vm782, %v777, %v786
    %v791 = vadd.f32 %v787, %v789
    %v792 = vrot.slane %v791, 4
    %v793 = vadd.f32 %v791, %v792
    %v794 = vrot.slane %v793, 2
    %v795 = vadd.f32 %v793, %v794
    %v796 = vrot.slane %v795, 1
    %v797 = vadd.f32 %v795, %v796
    %v798 = vadd.f32 %v788, %v790
    %v799 = vrot.slane %v798, 4
    %v800 = vadd.f32 %v798, %v799
    %v801 = vrot.slane %v800, 2
    %v802 = vadd.f32 %v800, %v801
    %v803 = vrot.slane %v802, 1
    %v804 = vadd.f32 %v802, %v803
    %v805 = vmul.f32 %v797, %v576
    %v806 = vmul.f32 %v804, %v576
    %v807 = vsub.f32 %v787, %v805
    %v808 = vsub.f32 %v788, %v806
    %v809 = vsub.f32 %v789, %v805
    %v810 = vsub.f32 %v790, %v806
    %v811 = vmul.f32 %v807, %v807
    %v812 = vmul.f32 %v808, %v808
    %v813 = vmul.f32 %v809, %v809
    %v814 = vmul.f32 %v810, %v810
    %v815 = vadd.f32 %v811, %v813
    %v816 = vrot.slane %v815, 4
    %v817 = vadd.f32 %v815, %v816
    %v818 = vrot.slane %v817, 2
    %v819 = vadd.f32 %v817, %v818
    %v820 = vrot.slane %v819, 1
    %v821 = vadd.f32 %v819, %v820
    %v822 = vadd.f32 %v812, %v814
    %v823 = vrot.slane %v822, 4
    %v824 = vadd.f32 %v822, %v823
    %v825 = vrot.slane %v824, 2
    %v826 = vadd.f32 %v824, %v825
    %v827 = vrot.slane %v826, 1
    %v828 = vadd.f32 %v826, %v827
    %v829 = vmul.f32 %v821, %v576
    %v830 = vmul.f32 %v828, %v576
    %v831 = vadd.f32 %v829, 1e-05
    %v832 = vadd.f32 %v830, 1e-05
    %v833 = vrsqrt.pop %v831
    %v834 = vmul.f32 %v833, %v831
    %v835 = vmul.f32 %v834, %v833
    %v836 = vmul.f32 0.5, %v835
    %v837 = vsub.f32 1.5, %v836
    %v838 = vmul.f32 %v833, %v837
    %vm839 = vweird.f32 %v831
    %vm840 = vweird.f32 %v833
    %vm841 = vmor %vm839, %vm840
    %v842 = vsel %vm841, %v833, %v838
    %v843 = vrsqrt.pop %v832
    %v844 = vmul.f32 %v843, %v832
    %v845 = vmul.f32 %v844, %v843
    %v846 = vmul.f32 0.5, %v845
    %v847 = vsub.f32 1.5, %v846
    %v848 = vmul.f32 %v843, %v847
    %vm849 = vweird.f32 %v832
    %vm850 = vweird.f32 %v843
    %vm851 = vmor %vm849, %vm850
    %v852 = vsel %vm851, %v843, %v848
    %v853 = vperm.slane %v725, 1
    %v854 = vperm.slane %v725, 5
    %v857 = vmul.f32 %v842, %v853
    %v858 = vmul.f32 %v852, %v854
    %v859 = vperm.slane %v857, 0
    %v860 = vperm.slane %v858, 0
    %v861 = vmul.f32 %v807, %v859
    %v862 = vmul.f32 %v808, %v860
    %v863 = vmul.f32 %v809, %v859
    %v864 = vmul.f32 %v810, %v860
    %v865 = vperm.slane %v725, 2
    %v866 = vperm.slane %v725, 6
    %v869 = vperm.slane %v865, 2
    %v870 = vperm.slane %v866, 2
    %v871 = vadd.f32 %v861, %v869
    %v872 = vadd.f32 %v862, %v870
    %v873 = vadd.f32 %v863, %v869
    %v874 = vadd.f32 %v864, %v870
    %v875 = vld [vmem:[#allocation16] sm:$0xff]
    %v876 = vld [vmem:[#allocation16 + $0x8] sm:$0xff]
    %v877 = vld [vmem:[#allocation16 + $0x10] sm:$0xff]
    %v878 = vld [vmem:[#allocation16 + $0x18] sm:$0xff]
    %v879 = vld [vmem:[#allocation16 + $0x20] sm:$0xff]
    %v880 = vld [vmem:[#allocation16 + $0x28] sm:$0xff]
    %v881 = vld [vmem:[#allocation16 + $0x30] sm:$0xff]
    %v882 = vld [vmem:[#allocation16 + $0x38] sm:$0xff]
    %v883 = vld [vmem:[#allocation16 + $0x40] sm:$0xff]
    %v884 = vld [vmem:[#allocation16 + $0x48] sm:$0xff]
    %v885 = vld [vmem:[#allocation16 + $0x50] sm:$0xff]
    %v886 = vld [vmem:[#allocation16 + $0x58] sm:$0xff]
    %v887 = vld [vmem:[#allocation16 + $0x60] sm:$0xff]
    %v888 = vld [vmem:[#allocation16 + $0x68] sm:$0xff]
    %v889 = vld [vmem:[#allocation16 + $0x70] sm:$0xff]
    %v890 = vld [vmem:[#allocation16 + $0x78] sm:$0xff]
    %v891 = vld [vmem:[#allocation16 + $0x80] sm:$0xff]
    %v892 = vld [vmem:[#allocation16 + $0x88] sm:$0xff]
    %v893 = vld [vmem:[#allocation16 + $0x90] sm:$0xff]
    %v894 = vld [vmem:[#allocation16 + $0x98] sm:$0xff]
    %v895 = vld [vmem:[#allocation16 + $0xa0] sm:$0xff]
    %v896 = vld [vmem:[#allocation16 + $0xa8] sm:$0xff]
    %v897 = vld [vmem:[#allocation16 + $0xb0] sm:$0xff]
    %v898 = vld [vmem:[#allocation16 + $0xb8] sm:$0xff]
    %v899 = vld [vmem:[#allocation16 + $0xc0] sm:$0xff]
    %v900 = vld [vmem:[#allocation16 + $0xc8] sm:$0xff]
    %v901 = vld [vmem:[#allocation16 + $0xd0] sm:$0xff]
    %v902 = vld [vmem:[#allocation16 + $0xd8] sm:$0xff]
    %v903 = vld [vmem:[#allocation16 + $0xe0] sm:$0xff]
    %v904 = vld [vmem:[#allocation16 + $0xe8] sm:$0xff]
    %v905 = vld [vmem:[#allocation16 + $0xf0] sm:$0xff]
    %v906 = vld [vmem:[#allocation16 + $0xf8] sm:$0xff]
    %v907 = vld [vmem:[#allocation16 + $0x100] sm:$0xff]
    %v908 = vld [vmem:[#allocation16 + $0x108] sm:$0xff]
    %v909 = vld [vmem:[#allocation16 + $0x110] sm:$0xff]
    %v910 = vld [vmem:[#allocation16 + $0x118] sm:$0xff]
    %v911 = vld [vmem:[#allocation16 + $0x120] sm:$0xff]
    %v912 = vld [vmem:[#allocation16 + $0x128] sm:$0xff]
    %v913 = vld [vmem:[#allocation16 + $0x130] sm:$0xff]
    %v914 = vld [vmem:[#allocation16 + $0x138] sm:$0xff]
    %v915 = vld [vmem:[#allocation16 + $0x140] sm:$0xff]
    %v916 = vld [vmem:[#allocation16 + $0x148] sm:$0xff]
    %v917 = vld [vmem:[#allocation16 + $0x150] sm:$0xff]
    %v918 = vld [vmem:[#allocation16 + $0x158] sm:$0xff]
    %v919 = vld [vmem:[#allocation16 + $0x160] sm:$0xff]
    %v920 = vld [vmem:[#allocation16 + $0x168] sm:$0xff]
    %v921 = vld [vmem:[#allocation16 + $0x170] sm:$0xff]
    %v922 = vld [vmem:[#allocation16 + $0x178] sm:$0xff]
    %v923 = vld [vmem:[#allocation16 + $0x180] sm:$0xff]
    %v924 = vld [vmem:[#allocation16 + $0x188] sm:$0xff]
    %v925 = vld [vmem:[#allocation16 + $0x190] sm:$0xff]
    %v926 = vld [vmem:[#allocation16 + $0x198] sm:$0xff]
    %v927 = vld [vmem:[#allocation16 + $0x1a0] sm:$0xff]
    %v928 = vld [vmem:[#allocation16 + $0x1a8] sm:$0xff]
    %v929 = vld [vmem:[#allocation16 + $0x1b0] sm:$0xff]
    %v930 = vld [vmem:[#allocation16 + $0x1b8] sm:$0xff]
    %v931 = vld [vmem:[#allocation16 + $0x1c0] sm:$0xff]
    %v932 = vld [vmem:[#allocation16 + $0x1c8] sm:$0xff]
    %v933 = vld [vmem:[#allocation16 + $0x1d0] sm:$0xff]
    %v934 = vld [vmem:[#allocation16 + $0x1d8] sm:$0xff]
    %v935 = vld [vmem:[#allocation16 + $0x1e0] sm:$0xff]
    %v936 = vld [vmem:[#allocation16 + $0x1e8] sm:$0xff]
    %v937 = vld [vmem:[#allocation16 + $0x1f0] sm:$0xff]
    %v938 = vld [vmem:[#allocation16 + $0x1f8] sm:$0xff]
    %v939 = vld [vmem:[#allocation16 + $0x200] sm:$0xff]
    %v940 = vld [vmem:[#allocation16 + $0x208] sm:$0xff]
    %v941 = vld [vmem:[#allocation16 + $0x210] sm:$0xff]
    %v942 = vld [vmem:[#allocation16 + $0x218] sm:$0xff]
    %v943 = vld [vmem:[#allocation16 + $0x220] sm:$0xff]
    %v944 = vld [vmem:[#allocation16 + $0x228] sm:$0xff]
    %v945 = vld [vmem:[#allocation16 + $0x230] sm:$0xff]
    %v946 = vld [vmem:[#allocation16 + $0x238] sm:$0xff]
    %v947 = vld [vmem:[#allocation16 + $0x240] sm:$0xff]
    %v948 = vld [vmem:[#allocation16 + $0x248] sm:$0xff]
    %v949 = vld [vmem:[#allocation16 + $0x250] sm:$0xff]
    %v950 = vld [vmem:[#allocation16 + $0x258] sm:$0xff]
    %v951 = vld [vmem:[#allocation16 + $0x260] sm:$0xff]
    %v952 = vld [vmem:[#allocation16 + $0x268] sm:$0xff]
    %v953 = vld [vmem:[#allocation16 + $0x270] sm:$0xff]
    %v954 = vld [vmem:[#allocation16 + $0x278] sm:$0xff]
    %v955 = vld [vmem:[#allocation16 + $0x280] sm:$0xff]
    %v956 = vld [vmem:[#allocation16 + $0x288] sm:$0xff]
    %v957 = vld [vmem:[#allocation16 + $0x290] sm:$0xff]
    %v958 = vld [vmem:[#allocation16 + $0x298] sm:$0xff]
    %v959 = vld [vmem:[#allocation16 + $0x2a0] sm:$0xff]
    %v960 = vld [vmem:[#allocation16 + $0x2a8] sm:$0xff]
    %v961 = vld [vmem:[#allocation16 + $0x2b0] sm:$0xff]
    %v962 = vld [vmem:[#allocation16 + $0x2b8] sm:$0xff]
    %v963 = vld [vmem:[#allocation16 + $0x2c0] sm:$0xff]
    %v964 = vld [vmem:[#allocation16 + $0x2c8] sm:$0xff]
    %v965 = vld [vmem:[#allocation16 + $0x2d0] sm:$0xff]
    %v966 = vld [vmem:[#allocation16 + $0x2d8] sm:$0xff]
    %v967 = vld [vmem:[#allocation16 + $0x2e0] sm:$0xff]
    %v968 = vld [vmem:[#allocation16 + $0x2e8] sm:$0xff]
    %v969 = vld [vmem:[#allocation16 + $0x2f0] sm:$0xff]
    %v970 = vld [vmem:[#allocation16 + $0x2f8] sm:$0xff]
    %v971 = vld [vmem:[#allocation16 + $0x300] sm:$0xff]
    %v972 = vld [vmem:[#allocation16 + $0x308] sm:$0xff]
    %v973 = vld [vmem:[#allocation16 + $0x310] sm:$0xff]
    %v974 = vld [vmem:[#allocation16 + $0x318] sm:$0xff]
    %v975 = vld [vmem:[#allocation16 + $0x320] sm:$0xff]
    %v976 = vld [vmem:[#allocation16 + $0x328] sm:$0xff]
    %v977 = vld [vmem:[#allocation16 + $0x330] sm:$0xff]
    %v978 = vld [vmem:[#allocation16 + $0x338] sm:$0xff]
    %v979 = vld [vmem:[#allocation16 + $0x340] sm:$0xff]
    %v980 = vld [vmem:[#allocation16 + $0x348] sm:$0xff]
    %v981 = vld [vmem:[#allocation16 + $0x350] sm:$0xff]
    %v982 = vld [vmem:[#allocation16 + $0x358] sm:$0xff]
    %v983 = vld [vmem:[#allocation16 + $0x360] sm:$0xff]
    %v984 = vld [vmem:[#allocation16 + $0x368] sm:$0xff]
    %v985 = vld [vmem:[#allocation16 + $0x370] sm:$0xff]
    %v986 = vld [vmem:[#allocation16 + $0x378] sm:$0xff]
    %v987 = vld [vmem:[#allocation16 + $0x380] sm:$0xff]
    %v988 = vld [vmem:[#allocation16 + $0x388] sm:$0xff]
    %v989 = vld [vmem:[#allocation16 + $0x390] sm:$0xff]
    %v990 = vld [vmem:[#allocation16 + $0x398] sm:$0xff]
    %v991 = vld [vmem:[#allocation16 + $0x3a0] sm:$0xff]
    %v992 = vld [vmem:[#allocation16 + $0x3a8] sm:$0xff]
    %v993 = vld [vmem:[#allocation16 + $0x3b0] sm:$0xff]
    %v994 = vld [vmem:[#allocation16 + $0x3b8] sm:$0xff]
    %v995 = vld [vmem:[#allocation16 + $0x3c0] sm:$0xff]
    %v996 = vld [vmem:[#allocation16 + $0x3c8] sm:$0xff]
    %v997 = vld [vmem:[#allocation16 + $0x3d0] sm:$0xff]
    %v998 = vld [vmem:[#allocation16 + $0x3d8] sm:$0xff]
    %v999 = vld [vmem:[#allocation16 + $0x3e0] sm:$0xff]
    %v1000 = vld [vmem:[#allocation16 + $0x3e8] sm:$0xff]
    %v1001 = vld [vmem:[#allocation16 + $0x3f0] sm:$0xff]
    %v1002 = vld [vmem:[#allocation16 + $0x3f8] sm:$0xff]
    %v1003 = vld [vmem:[#allocation17] sm:$0x77]
    %v1004 = vld [vmem:[#allocation17 + $0x8] sm:$0x77]
    %v1007 = vperm.slane %v1003, 0
    %v1008 = vperm.slane %v1003, 4
    %v1009 = vperm.slane %v1004, 0
    %v1010 = vperm.slane %v1004, 4
    %v1015 = vperm.slane %v1007, 0
    %v1016 = vperm.slane %v1008, 0
    %v1017 = vperm.slane %v1009, 0
    %v1018 = vperm.slane %v1010, 0
    %1019 = vmatpush.msra.mxu0 %v935
    %1020 = vmatpush.msra.mxu0 %v931
    %1021 = vmatpush.msra.mxu0 %v927
    %1022 = vmatpush.msra.mxu0 %v923
    %1023 = vmatpush.msra.mxu0 %v919
    %1024 = vmatpush.msra.mxu0 %v915
    %1025 = vmatpush.msra.mxu0 %v911
    %1026 = vmatpush.msra.mxu0 %v907
    %1027 = vmatpush.msra.mxu0 %v903
    %1028 = vmatpush.msra.mxu0 %v899
    %1029 = vmatpush.msra.mxu0 %v895
    %1030 = vmatpush.msra.mxu0 %v891
    %1031 = vmatpush.msra.mxu0 %v887
    %1032 = vmatpush.msra.mxu0 %v883
    %1033 = vmatpush.msra.mxu0 %v879
    %1034 = vmatpush.msra.mxu0 %v875
    %1035 = vmatmul.f32.gmra.mxu0 %v871
    %v1036 = vpop.f32.mrf.mxu0
    %v1037 = vadd.f32 %v1015, %v1036
    %1038 = vmatmul.f32.gmra.mxu0 %v873
    %v1039 = vpop.f32.mrf.mxu0
    %v1040 = vadd.f32 %v1015, %v1039
    %1041 = vdwg.mxu0
    %1042 = vmatpush.msra.mxu0 %v999
    %1043 = vmatpush.msra.mxu0 %v995
    %1044 = vmatpush.msra.mxu0 %v991
    %1045 = vmatpush.msra.mxu0 %v987
    %1046 = vmatpush.msra.mxu0 %v983
    %1047 = vmatpush.msra.mxu0 %v979
    %1048 = vmatpush.msra.mxu0 %v975
    %1049 = vmatpush.msra.mxu0 %v971
    %1050 = vmatpush.msra.mxu0 %v967
    %1051 = vmatpush.msra.mxu0 %v963
    %1052 = vmatpush.msra.mxu0 %v959
    %1053 = vmatpush.msra.mxu0 %v955
    %1054 = vmatpush.msra.mxu0 %v951
    %1055 = vmatpush.msra.mxu0 %v947
    %1056 = vmatpush.msra.mxu0 %v943
    %1057 = vmatpush.msra.mxu0 %v939
    %1058 = vmatmul.f32.gmra.mxu0 %v872
    %v1059 = vpop.f32.mrf.mxu0
    %v1060 = vadd.f32 %v1037, %v1059
    %1061 = vmatmul.f32.gmra.mxu0 %v874
    %v1062 = vpop.f32.mrf.mxu0
    %v1063 = vadd.f32 %v1040, %v1062
    %1064 = vdwg.mxu0
    %1065 = vmatpush.msra.mxu0 %v936
    %1066 = vmatpush.msra.mxu0 %v932
    %1067 = vmatpush.msra.mxu0 %v928
    %1068 = vmatpush.msra.mxu0 %v924
    %1069 = vmatpush.msra.mxu0 %v920
    %1070 = vmatpush.msra.mxu0 %v916
    %1071 = vmatpush.msra.mxu0 %v912
    %1072 = vmatpush.msra.mxu0 %v908
    %1073 = vmatpush.msra.mxu0 %v904
    %1074 = vmatpush.msra.mxu0 %v900
    %1075 = vmatpush.msra.mxu0 %v896
    %1076 = vmatpush.msra.mxu0 %v892
    %1077 = vmatpush.msra.mxu0 %v888
    %1078 = vmatpush.msra.mxu0 %v884
    %1079 = vmatpush.msra.mxu0 %v880
    %1080 = vmatpush.msra.mxu0 %v876
    %1081 = vmatmul.f32.gmra.mxu0 %v871
    %v1082 = vpop.f32.mrf.mxu0
    %v1083 = vadd.f32 %v1016, %v1082
    %1084 = vmatmul.f32.gmra.mxu0 %v873
    %v1085 = vpop.f32.mrf.mxu0
    %v1086 = vadd.f32 %v1016, %v1085
    %1087 = vdwg.mxu0
    %1088 = vmatpush.msra.mxu0 %v1000
    %1089 = vmatpush.msra.mxu0 %v996
    %1090 = vmatpush.msra.mxu0 %v992
    %1091 = vmatpush.msra.mxu0 %v988
    %1092 = vmatpush.msra.mxu0 %v984
    %1093 = vmatpush.msra.mxu0 %v980
    %1094 = vmatpush.msra.mxu0 %v976
    %1095 = vmatpush.msra.mxu0 %v972
    %1096 = vmatpush.msra.mxu0 %v968
    %1097 = vmatpush.msra.mxu0 %v964
    %1098 = vmatpush.msra.mxu0 %v960
    %1099 = vmatpush.msra.mxu0 %v956
    %1100 = vmatpush.msra.mxu0 %v952
    %1101 = vmatpush.msra.mxu0 %v948
    %1102 = vmatpush.msra.mxu0 %v944
    %1103 = vmatpush.msra.mxu0 %v940
    %1104 = vmatmul.f32.gmra.mxu0 %v872
    %v1105 = vpop.f32.mrf.mxu0
    %v1106 = vadd.f32 %v1083, %v1105
    %1107 = vmatmul.f32.gmra.mxu0 %v874
    %v1108 = vpop.f32.mrf.mxu0
    %v1109 = vadd.f32 %v1086, %v1108
    %1110 = vdwg.mxu0
    %1111 = vmatpush.msra.mxu0 %v937
    %1112 = vmatpush.msra.mxu0 %v933
    %1113 = vmatpush.msra.mxu0 %v929
    %1114 = vmatpush.msra.mxu0 %v925
    %1115 = vmatpush.msra.mxu0 %v921
    %1116 = vmatpush.msra.mxu0 %v917
    %1117 = vmatpush.msra.mxu0 %v913
    %1118 = vmatpush.msra.mxu0 %v909
    %1119 = vmatpush.msra.mxu0 %v905
    %1120 = vmatpush.msra.mxu0 %v901
    %1121 = vmatpush.msra.mxu0 %v897
    %1122 = vmatpush.msra.mxu0 %v893
    %1123 = vmatpush.msra.mxu0 %v889
    %1124 = vmatpush.msra.mxu0 %v885
    %1125 = vmatpush.msra.mxu0 %v881
    %1126 = vmatpush.msra.mxu0 %v877
    %1127 = vmatmul.f32.gmra.mxu0 %v871
    %v1128 = vpop.f32.mrf.mxu0
    %v1129 = vadd.f32 %v1017, %v1128
    %1130 = vmatmul.f32.gmra.mxu0 %v873
    %v1131 = vpop.f32.mrf.mxu0
    %v1132 = vadd.f32 %v1017, %v1131
    %1133 = vdwg.mxu0
    %1134 = vmatpush.msra.mxu0 %v1001
    %1135 = vmatpush.msra.mxu0 %v997
    %1136 = vmatpush.msra.mxu0 %v993
    %1137 = vmatpush.msra.mxu0 %v989
    %1138 = vmatpush.msra.mxu0 %v985
    %1139 = vmatpush.msra.mxu0 %v981
    %1140 = vmatpush.msra.mxu0 %v977
    %1141 = vmatpush.msra.mxu0 %v973
    %1142 = vmatpush.msra.mxu0 %v969
    %1143 = vmatpush.msra.mxu0 %v965
    %1144 = vmatpush.msra.mxu0 %v961
    %1145 = vmatpush.msra.mxu0 %v957
    %1146 = vmatpush.msra.mxu0 %v953
    %1147 = vmatpush.msra.mxu0 %v949
    %1148 = vmatpush.msra.mxu0 %v945
    %1149 = vmatpush.msra.mxu0 %v941
    %1150 = vmatmul.f32.gmra.mxu0 %v872
    %v1151 = vpop.f32.mrf.mxu0
    %v1152 = vadd.f32 %v1129, %v1151
    %1153 = vmatmul.f32.gmra.mxu0 %v874
    %v1154 = vpop.f32.mrf.mxu0
    %v1155 = vadd.f32 %v1132, %v1154
    %1156 = vdwg.mxu0
    %1157 = vmatpush.msra.mxu0 %v938
    %1158 = vmatpush.msra.mxu0 %v934
    %1159 = vmatpush.msra.mxu0 %v930
    %1160 = vmatpush.msra.mxu0 %v926
    %1161 = vmatpush.msra.mxu0 %v922
    %1162 = vmatpush.msra.mxu0 %v918
    %1163 = vmatpush.msra.mxu0 %v914
    %1164 = vmatpush.msra.mxu0 %v910
    %1165 = vmatpush.msra.mxu0 %v906
    %1166 = vmatpush.msra.mxu0 %v902
    %1167 = vmatpush.msra.mxu0 %v898
    %1168 = vmatpush.msra.mxu0 %v894
    %1169 = vmatpush.msra.mxu0 %v890
    %1170 = vmatpush.msra.mxu0 %v886
    %1171 = vmatpush.msra.mxu0 %v882
    %1172 = vmatpush.msra.mxu0 %v878
    %1173 = vmatmul.f32.gmra.mxu0 %v871
    %v1174 = vpop.f32.mrf.mxu0
    %v1175 = vadd.f32 %v1018, %v1174
    %1176 = vmatmul.f32.gmra.mxu0 %v873
    %v1177 = vpop.f32.mrf.mxu0
    %v1178 = vadd.f32 %v1018, %v1177
    %1179 = vdwg.mxu0
    %1180 = vmatpush.msra.mxu0 %v1002
    %1181 = vmatpush.msra.mxu0 %v998
    %1182 = vmatpush.msra.mxu0 %v994
    %1183 = vmatpush.msra.mxu0 %v990
    %1184 = vmatpush.msra.mxu0 %v986
    %1185 = vmatpush.msra.mxu0 %v982
    %1186 = vmatpush.msra.mxu0 %v978
    %1187 = vmatpush.msra.mxu0 %v974
    %1188 = vmatpush.msra.mxu0 %v970
    %1189 = vmatpush.msra.mxu0 %v966
    %1190 = vmatpush.msra.mxu0 %v962
    %1191 = vmatpush.msra.mxu0 %v958
    %1192 = vmatpush.msra.mxu0 %v954
    %1193 = vmatpush.msra.mxu0 %v950
    %1194 = vmatpush.msra.mxu0 %v946
    %1195 = vmatpush.msra.mxu0 %v942
    %1196 = vmatmul.f32.gmra.mxu0 %v872
    %v1197 = vpop.f32.mrf.mxu0
    %v1198 = vadd.f32 %v1175, %v1197
    %1199 = vmatmul.f32.gmra.mxu0 %v874
    %v1200 = vpop.f32.mrf.mxu0
    %v1201 = vadd.f32 %v1178, %v1200
    %1202 = vdwg.mxu0
    %vm1203 = vcmp.gt.f32.partialorder %v1060, 0.0
    %vm1204 = vcmp.gt.f32.partialorder %v1106, 0.0
    %vm1205 = vcmp.gt.f32.partialorder %v1152, 0.0
    %vm1206 = vcmp.gt.f32.partialorder %v1198, 0.0
    %vm1207 = vcmp.gt.f32.partialorder %v1063, 0.0
    %vm1208 = vcmp.gt.f32.partialorder %v1109, 0.0
    %vm1209 = vcmp.gt.f32.partialorder %v1155, 0.0
    %vm1210 = vcmp.gt.f32.partialorder %v1201, 0.0
    %v1211 = vmul.f32 %v1060, 0.01
    %v1212 = vmul.f32 %v1106, 0.01
    %v1213 = vmul.f32 %v1152, 0.01
    %v1214 = vmul.f32 %v1198, 0.01
    %v1215 = vmul.f32 %v1063, 0.01
    %v1216 = vmul.f32 %v1109, 0.01
    %v1217 = vmul.f32 %v1155, 0.01
    %v1218 = vmul.f32 %v1201, 0.01
    %v1219 = vsel %vm1203, %v1060, %v1211
    %v1220 = vsel %vm1204, %v1106, %v1212
    %v1221 = vsel %vm1205, %v1152, %v1213
    %v1222 = vsel %vm1206, %v1198, %v1214
    %v1223 = vsel %vm1207, %v1063, %v1215
    %v1224 = vsel %vm1208, %v1109, %v1216
    %v1225 = vsel %vm1209, %v1155, %v1217
    %v1226 = vsel %vm1210, %v1201, %v1218
    %v1227 = vadd.f32 %v1219, %v1223
    %v1228 = vrot.slane %v1227, 4
    %v1229 = vadd.f32 %v1227, %v1228
    %v1230 = vrot.slane %v1229, 2
    %v1231 = vadd.f32 %v1229, %v1230
    %v1232 = vrot.slane %v1231, 1
    %v1233 = vadd.f32 %v1231, %v1232
    %v1234 = vadd.f32 %v1220, %v1224
    %v1235 = vrot.slane %v1234, 4
    %v1236 = vadd.f32 %v1234, %v1235
    %v1237 = vrot.slane %v1236, 2
    %v1238 = vadd.f32 %v1236, %v1237
    %v1239 = vrot.slane %v1238, 1
    %v1240 = vadd.f32 %v1238, %v1239
    %v1241 = vadd.f32 %v1221, %v1225
    %v1242 = vrot.slane %v1241, 4
    %v1243 = vadd.f32 %v1241, %v1242
    %v1244 = vrot.slane %v1243, 2
    %v1245 = vadd.f32 %v1243, %v1244
    %v1246 = vrot.slane %v1245, 1
    %v1247 = vadd.f32 %v1245, %v1246
    %v1248 = vadd.f32 %v1222, %v1226
    %v1249 = vrot.slane %v1248, 4
    %v1250 = vadd.f32 %v1248, %v1249
    %v1251 = vrot.slane %v1250, 2
    %v1252 = vadd.f32 %v1250, %v1251
    %v1253 = vrot.slane %v1252, 1
    %v1254 = vadd.f32 %v1252, %v1253
    %v1255 = vmul.f32 %v1233, %v576
    %v1256 = vmul.f32 %v1240, %v576
    %v1257 = vmul.f32 %v1247, %v576
    %v1258 = vmul.f32 %v1254, %v576
    %v1259 = vsub.f32 %v1219, %v1255
    %v1260 = vsub.f32 %v1220, %v1256
    %v1261 = vsub.f32 %v1221, %v1257
    %v1262 = vsub.f32 %v1222, %v1258
    %v1263 = vsub.f32 %v1223, %v1255
    %v1264 = vsub.f32 %v1224, %v1256
    %v1265 = vsub.f32 %v1225, %v1257
    %v1266 = vsub.f32 %v1226, %v1258
    %v1267 = vmul.f32 %v1259, %v1259
    %v1268 = vmul.f32 %v1260, %v1260
    %v1269 = vmul.f32 %v1261, %v1261
    %v1270 = vmul.f32 %v1262, %v1262
    %v1271 = vmul.f32 %v1263, %v1263
    %v1272 = vmul.f32 %v1264, %v1264
    %v1273 = vmul.f32 %v1265, %v1265
    %v1274 = vmul.f32 %v1266, %v1266
    %v1275 = vadd.f32 %v1267, %v1271
    %v1276 = vrot.slane %v1275, 4
    %v1277 = vadd.f32 %v1275, %v1276
    %v1278 = vrot.slane %v1277, 2
    %v1279 = vadd.f32 %v1277, %v1278
    %v1280 = vrot.slane %v1279, 1
    %v1281 = vadd.f32 %v1279, %v1280
    %v1282 = vadd.f32 %v1268, %v1272
    %v1283 = vrot.slane %v1282, 4
    %v1284 = vadd.f32 %v1282, %v1283
    %v1285 = vrot.slane %v1284, 2
    %v1286 = vadd.f32 %v1284, %v1285
    %v1287 = vrot.slane %v1286, 1
    %v1288 = vadd.f32 %v1286, %v1287
    %v1289 = vadd.f32 %v1269, %v1273
    %v1290 = vrot.slane %v1289, 4
    %v1291 = vadd.f32 %v1289, %v1290
    %v1292 = vrot.slane %v1291, 2
    %v1293 = vadd.f32 %v1291, %v1292
    %v1294 = vrot.slane %v1293, 1
    %v1295 = vadd.f32 %v1293, %v1294
    %v1296 = vadd.f32 %v1270, %v1274
    %v1297 = vrot.slane %v1296, 4
    %v1298 = vadd.f32 %v1296, %v1297
    %v1299 = vrot.slane %v1298, 2
    %v1300 = vadd.f32 %v1298, %v1299
    %v1301 = vrot.slane %v1300, 1
    %v1302 = vadd.f32 %v1300, %v1301
    %v1303 = vmul.f32 %v1281, %v576
    %v1304 = vmul.f32 %v1288, %v576
    %v1305 = vmul.f32 %v1295, %v576
    %v1306 = vmul.f32 %v1302, %v576
    %v1307 = vadd.f32 %v1303, 1e-05
    %v1308 = vadd.f32 %v1304, 1e-05
    %v1309 = vadd.f32 %v1305, 1e-05
    %v1310 = vadd.f32 %v1306, 1e-05
    %v1311 = vrsqrt.pop %v1307
    %v1312 = vmul.f32 %v1311, %v1307
    %v1313 = vmul.f32 %v1312, %v1311
    %v1314 = vmul.f32 0.5, %v1313
    %v1315 = vsub.f32 1.5, %v1314
    %v1316 = vmul.f32 %v1311, %v1315
    %vm1317 = vweird.f32 %v1307
    %vm1318 = vweird.f32 %v1311
    %vm1319 = vmor %vm1317, %vm1318
    %v1320 = vsel %vm1319, %v1311, %v1316
    %v1321 = vrsqrt.pop %v1308
    %v1322 = vmul.f32 %v1321, %v1308
    %v1323 = vmul.f32 %v1322, %v1321
    %v1324 = vmul.f32 0.5, %v1323
    %v1325 = vsub.f32 1.5, %v1324
    %v1326 = vmul.f32 %v1321, %v1325
    %vm1327 = vweird.f32 %v1308
    %vm1328 = vweird.f32 %v1321
    %vm1329 = vmor %vm1327, %vm1328
    %v1330 = vsel %vm1329, %v1321, %v1326
    %v1331 = vrsqrt.pop %v1309
    %v1332 = vmul.f32 %v1331, %v1309
    %v1333 = vmul.f32 %v1332, %v1331
    %v1334 = vmul.f32 0.5, %v1333
    %v1335 = vsub.f32 1.5, %v1334
    %v1336 = vmul.f32 %v1331, %v1335
    %vm1337 = vweird.f32 %v1309
    %vm1338 = vweird.f32 %v1331
    %vm1339 = vmor %vm1337, %vm1338
    %v1340 = vsel %vm1339, %v1331, %v1336
    %v1341 = vrsqrt.pop %v1310
    %v1342 = vmul.f32 %v1341, %v1310
    %v1343 = vmul.f32 %v1342, %v1341
    %v1344 = vmul.f32 0.5, %v1343
    %v1345 = vsub.f32 1.5, %v1344
    %v1346 = vmul.f32 %v1341, %v1345
    %vm1347 = vweird.f32 %v1310
    %vm1348 = vweird.f32 %v1341
    %vm1349 = vmor %vm1347, %vm1348
    %v1350 = vsel %vm1349, %v1341, %v1346
    %v1351 = vperm.slane %v1003, 1
    %v1352 = vperm.slane %v1003, 5
    %v1353 = vperm.slane %v1004, 1
    %v1354 = vperm.slane %v1004, 5
    %v1359 = vmul.f32 %v1320, %v1351
    %v1360 = vmul.f32 %v1330, %v1352
    %v1361 = vmul.f32 %v1340, %v1353
    %v1362 = vmul.f32 %v1350, %v1354
    %v1363 = vperm.slane %v1359, 0
    %v1364 = vperm.slane %v1360, 0
    %v1365 = vperm.slane %v1361, 0
    %v1366 = vperm.slane %v1362, 0
    %v1367 = vmul.f32 %v1259, %v1363
    %v1368 = vmul.f32 %v1260, %v1364
    %v1369 = vmul.f32 %v1261, %v1365
    %v1370 = vmul.f32 %v1262, %v1366
    %v1371 = vmul.f32 %v1263, %v1363
    %v1372 = vmul.f32 %v1264, %v1364
    %v1373 = vmul.f32 %v1265, %v1365
    %v1374 = vmul.f32 %v1266, %v1366
    %v1375 = vperm.slane %v1003, 2
    %v1376 = vperm.slane %v1003, 6
    %v1377 = vperm.slane %v1004, 2
    %v1378 = vperm.slane %v1004, 6
    %v1383 = vperm.slane %v1375, 2
    %v1384 = vperm.slane %v1376, 2
    %v1385 = vperm.slane %v1377, 2
    %v1386 = vperm.slane %v1378, 2
    %v1387 = vadd.f32 %v1367, %v1383
    %v1388 = vadd.f32 %v1368, %v1384
    %v1389 = vadd.f32 %v1369, %v1385
    %v1390 = vadd.f32 %v1370, %v1386
    %v1391 = vadd.f32 %v1371, %v1383
    %v1392 = vadd.f32 %v1372, %v1384
    %v1393 = vadd.f32 %v1373, %v1385
    %v1394 = vadd.f32 %v1374, %v1386
    %v1395 = vld [vmem:[%s29] sm:$0xff]
    %v1396 = vld [vmem:[%s29 + $0x8] sm:$0xff]
    %v1397 = vld [vmem:[%s29 + $0x10] sm:$0xff]
    %v1398 = vld [vmem:[%s29 + $0x18] sm:$0xff]
    %v1399 = vld [vmem:[%s29 + $0x20] sm:$0xff]
    %v1400 = vld [vmem:[%s29 + $0x28] sm:$0xff]
    %v1401 = vld [vmem:[%s29 + $0x30] sm:$0xff]
    %v1402 = vld [vmem:[%s29 + $0x38] sm:$0xff]
    %v1403 = vld [vmem:[%s29 + $0x40] sm:$0xff]
    %v1404 = vld [vmem:[%s29 + $0x48] sm:$0xff]
    %v1405 = vld [vmem:[%s29 + $0x50] sm:$0xff]
    %v1406 = vld [vmem:[%s29 + $0x58] sm:$0xff]
    %v1407 = vld [vmem:[%s29 + $0x60] sm:$0xff]
    %v1408 = vld [vmem:[%s29 + $0x68] sm:$0xff]
    %v1409 = vld [vmem:[%s29 + $0x70] sm:$0xff]
    %v1410 = vld [vmem:[%s29 + $0x78] sm:$0xff]
    %v1411 = vld [vmem:[%s29 + $0x80] sm:$0xff]
    %v1412 = vld [vmem:[%s29 + $0x88] sm:$0xff]
    %v1413 = vld [vmem:[%s29 + $0x90] sm:$0xff]
    %v1414 = vld [vmem:[%s29 + $0x98] sm:$0xff]
    %v1415 = vld [vmem:[%s29 + $0xa0] sm:$0xff]
    %v1416 = vld [vmem:[%s29 + $0xa8] sm:$0xff]
    %v1417 = vld [vmem:[%s29 + $0xb0] sm:$0xff]
    %v1418 = vld [vmem:[%s29 + $0xb8] sm:$0xff]
    %v1419 = vld [vmem:[%s29 + $0xc0] sm:$0xff]
    %v1420 = vld [vmem:[%s29 + $0xc8] sm:$0xff]
    %v1421 = vld [vmem:[%s29 + $0xd0] sm:$0xff]
    %v1422 = vld [vmem:[%s29 + $0xd8] sm:$0xff]
    %v1423 = vld [vmem:[%s29 + $0xe0] sm:$0xff]
    %v1424 = vld [vmem:[%s29 + $0xe8] sm:$0xff]
    %v1425 = vld [vmem:[%s29 + $0xf0] sm:$0xff]
    %v1426 = vld [vmem:[%s29 + $0xf8] sm:$0xff]
    %v1427 = vld [vmem:[%s29 + $0x100] sm:$0xff]
    %v1428 = vld [vmem:[%s29 + $0x108] sm:$0xff]
    %v1429 = vld [vmem:[%s29 + $0x110] sm:$0xff]
    %v1430 = vld [vmem:[%s29 + $0x118] sm:$0xff]
    %v1431 = vld [vmem:[%s29 + $0x120] sm:$0xff]
    %v1432 = vld [vmem:[%s29 + $0x128] sm:$0xff]
    %v1433 = vld [vmem:[%s29 + $0x130] sm:$0xff]
    %v1434 = vld [vmem:[%s29 + $0x138] sm:$0xff]
    %v1435 = vld [vmem:[%s29 + $0x140] sm:$0xff]
    %v1436 = vld [vmem:[%s29 + $0x148] sm:$0xff]
    %v1437 = vld [vmem:[%s29 + $0x150] sm:$0xff]
    %v1438 = vld [vmem:[%s29 + $0x158] sm:$0xff]
    %v1439 = vld [vmem:[%s29 + $0x160] sm:$0xff]
    %v1440 = vld [vmem:[%s29 + $0x168] sm:$0xff]
    %v1441 = vld [vmem:[%s29 + $0x170] sm:$0xff]
    %v1442 = vld [vmem:[%s29 + $0x178] sm:$0xff]
    %v1443 = vld [vmem:[%s29 + $0x180] sm:$0xff]
    %v1444 = vld [vmem:[%s29 + $0x188] sm:$0xff]
    %v1445 = vld [vmem:[%s29 + $0x190] sm:$0xff]
    %v1446 = vld [vmem:[%s29 + $0x198] sm:$0xff]
    %v1447 = vld [vmem:[%s29 + $0x1a0] sm:$0xff]
    %v1448 = vld [vmem:[%s29 + $0x1a8] sm:$0xff]
    %v1449 = vld [vmem:[%s29 + $0x1b0] sm:$0xff]
    %v1450 = vld [vmem:[%s29 + $0x1b8] sm:$0xff]
    %v1451 = vld [vmem:[%s29 + $0x1c0] sm:$0xff]
    %v1452 = vld [vmem:[%s29 + $0x1c8] sm:$0xff]
    %v1453 = vld [vmem:[%s29 + $0x1d0] sm:$0xff]
    %v1454 = vld [vmem:[%s29 + $0x1d8] sm:$0xff]
    %v1455 = vld [vmem:[%s29 + $0x1e0] sm:$0xff]
    %v1456 = vld [vmem:[%s29 + $0x1e8] sm:$0xff]
    %v1457 = vld [vmem:[%s29 + $0x1f0] sm:$0xff]
    %v1458 = vld [vmem:[%s29 + $0x1f8] sm:$0xff]
    %v1459 = vld [vmem:[#allocation19] sm:$0x7]
    %v1460 = vperm.slane %v1459, 0
    %1461 = vmatpush.msra.mxu0 %v1410
    %1462 = vmatpush.msra.mxu0 %v1409
    %1463 = vmatpush.msra.mxu0 %v1408
    %1464 = vmatpush.msra.mxu0 %v1407
    %1465 = vmatpush.msra.mxu0 %v1406
    %1466 = vmatpush.msra.mxu0 %v1405
    %1467 = vmatpush.msra.mxu0 %v1404
    %1468 = vmatpush.msra.mxu0 %v1403
    %1469 = vmatpush.msra.mxu0 %v1402
    %1470 = vmatpush.msra.mxu0 %v1401
    %1471 = vmatpush.msra.mxu0 %v1400
    %1472 = vmatpush.msra.mxu0 %v1399
    %1473 = vmatpush.msra.mxu0 %v1398
    %1474 = vmatpush.msra.mxu0 %v1397
    %1475 = vmatpush.msra.mxu0 %v1396
    %1476 = vmatpush.msra.mxu0 %v1395
    %1477 = vmatmul.f32.gmra.mxu0 %v1387
    %v1478 = vpop.f32.mrf.mxu0
    %v1479 = vadd.f32 %v1460, %v1478
    %1480 = vmatmul.f32.gmra.mxu0 %v1391
    %v1481 = vpop.f32.mrf.mxu0
    %v1482 = vadd.f32 %v1460, %v1481
    %1483 = vdwg.mxu0
    %1484 = vmatpush.msra.mxu0 %v1426
    %1485 = vmatpush.msra.mxu0 %v1425
    %1486 = vmatpush.msra.mxu0 %v1424
    %1487 = vmatpush.msra.mxu0 %v1423
    %1488 = vmatpush.msra.mxu0 %v1422
    %1489 = vmatpush.msra.mxu0 %v1421
    %1490 = vmatpush.msra.mxu0 %v1420
    %1491 = vmatpush.msra.mxu0 %v1419
    %1492 = vmatpush.msra.mxu0 %v1418
    %1493 = vmatpush.msra.mxu0 %v1417
    %1494 = vmatpush.msra.mxu0 %v1416
    %1495 = vmatpush.msra.mxu0 %v1415
    %1496 = vmatpush.msra.mxu0 %v1414
    %1497 = vmatpush.msra.mxu0 %v1413
    %1498 = vmatpush.msra.mxu0 %v1412
    %1499 = vmatpush.msra.mxu0 %v1411
    %1500 = vmatmul.f32.gmra.mxu0 %v1388
    %v1501 = vpop.f32.mrf.mxu0
    %v1502 = vadd.f32 %v1479, %v1501
    %1503 = vmatmul.f32.gmra.mxu0 %v1392
    %v1504 = vpop.f32.mrf.mxu0
    %v1505 = vadd.f32 %v1482, %v1504
    %1506 = vdwg.mxu0
    %1507 = vmatpush.msra.mxu0 %v1442
    %1508 = vmatpush.msra.mxu0 %v1441
    %1509 = vmatpush.msra.mxu0 %v1440
    %1510 = vmatpush.msra.mxu0 %v1439
    %1511 = vmatpush.msra.mxu0 %v1438
    %1512 = vmatpush.msra.mxu0 %v1437
    %1513 = vmatpush.msra.mxu0 %v1436
    %1514 = vmatpush.msra.mxu0 %v1435
    %1515 = vmatpush.msra.mxu0 %v1434
    %1516 = vmatpush.msra.mxu0 %v1433
    %1517 = vmatpush.msra.mxu0 %v1432
    %1518 = vmatpush.msra.mxu0 %v1431
    %1519 = vmatpush.msra.mxu0 %v1430
    %1520 = vmatpush.msra.mxu0 %v1429
    %1521 = vmatpush.msra.mxu0 %v1428
    %1522 = vmatpush.msra.mxu0 %v1427
    %1523 = vmatmul.f32.gmra.mxu0 %v1389
    %v1524 = vpop.f32.mrf.mxu0
    %v1525 = vadd.f32 %v1502, %v1524
    %1526 = vmatmul.f32.gmra.mxu0 %v1393
    %v1527 = vpop.f32.mrf.mxu0
    %v1528 = vadd.f32 %v1505, %v1527
    %1529 = vdwg.mxu0
    %1530 = vmatpush.msra.mxu0 %v1458
    %1531 = vmatpush.msra.mxu0 %v1457
    %1532 = vmatpush.msra.mxu0 %v1456
    %1533 = vmatpush.msra.mxu0 %v1455
    %1534 = vmatpush.msra.mxu0 %v1454
    %1535 = vmatpush.msra.mxu0 %v1453
    %1536 = vmatpush.msra.mxu0 %v1452
    %1537 = vmatpush.msra.mxu0 %v1451
    %1538 = vmatpush.msra.mxu0 %v1450
    %1539 = vmatpush.msra.mxu0 %v1449
    %1540 = vmatpush.msra.mxu0 %v1448
    %1541 = vmatpush.msra.mxu0 %v1447
    %1542 = vmatpush.msra.mxu0 %v1446
    %1543 = vmatpush.msra.mxu0 %v1445
    %1544 = vmatpush.msra.mxu0 %v1444
    %1545 = vmatpush.msra.mxu0 %v1443
    %1546 = vmatmul.f32.gmra.mxu0 %v1390
    %v1547 = vpop.f32.mrf.mxu0
    %v1548 = vadd.f32 %v1525, %v1547
    %1549 = vmatmul.f32.gmra.mxu0 %v1394
    %v1550 = vpop.f32.mrf.mxu0
    %v1551 = vadd.f32 %v1528, %v1550
    %1552 = vdwg.mxu0
    %vm1553 = vcmp.gt.f32.partialorder %v1548, 0.0
    %vm1554 = vcmp.gt.f32.partialorder %v1551, 0.0
    %v1555 = vmul.f32 %v1548, 0.01
    %v1556 = vmul.f32 %v1551, 0.01
    %v1557 = vsel %vm1553, %v1548, %v1555
    %v1558 = vsel %vm1554, %v1551, %v1556
    %v1559 = vsel %vm560, %v1557, 0.0
    %v1560 = vsel %vm560, %v1558, 0.0
    %v1561 = vadd.f32 %v1559, %v1560
    %v1562 = vrot.slane %v1561, 4
    %v1563 = vadd.f32 %v1561, %v1562
    %v1564 = vrot.slane %v1563, 2
    %v1565 = vadd.f32 %v1563, %v1564
    %v1566 = vrot.slane %v1565, 1
    %v1567 = vadd.f32 %v1565, %v1566
    %v1568 = vmul.f32 %v1567, %v576
    %v1569 = vsub.f32 %v1557, %v1568
    %v1570 = vsub.f32 %v1558, %v1568
    %v1571 = vmul.f32 %v1569, %v1569
    %v1572 = vmul.f32 %v1570, %v1570
    %v1573 = vsel %vm560, %v1571, 0.0
    %v1574 = vsel %vm560, %v1572, 0.0
    %v1575 = vadd.f32 %v1573, %v1574
    %v1576 = vrot.slane %v1575, 4
    %v1577 = vadd.f32 %v1575, %v1576
    %v1578 = vrot.slane %v1577, 2
    %v1579 = vadd.f32 %v1577, %v1578
    %v1580 = vrot.slane %v1579, 1
    %v1581 = vadd.f32 %v1579, %v1580
    %v1582 = vmul.f32 %v1581, %v576
    %v1583 = vadd.f32 %v1582, 1e-05
    %v1584 = vrsqrt.pop %v1583
    %v1585 = vmul.f32 %v1584, %v1583
    %v1586 = vmul.f32 %v1585, %v1584
    %v1587 = vmul.f32 0.5, %v1586
    %v1588 = vsub.f32 1.5, %v1587
    %v1589 = vmul.f32 %v1584, %v1588
    %vm1590 = vweird.f32 %v1583
    %vm1591 = vweird.f32 %v1584
    %vm1592 = vmor %vm1590, %vm1591
    %v1593 = vsel %vm1592, %v1584, %v1589
    %v1594 = vmul.f32 %v1593, %v1459
    %v1595 = vperm.slane %v1594, 1
    %v1596 = vmul.f32 %v1569, %v1595
    %v1597 = vmul.f32 %v1570, %v1595
    %v1598 = vperm.slane %v1459, 2
    %v1599 = vadd.f32 %v1596, %v1598
    %v1600 = vadd.f32 %v1597, %v1598
    %v1601 = vld [vmem:[%s33] sm:$0xff]
    %v1602 = vld [vmem:[%s33 + $0x8] sm:$0xff]
    %v1603 = vld [vmem:[%s33 + $0x10] sm:$0xff]
    %v1604 = vld [vmem:[%s33 + $0x18] sm:$0xff]
    %v1605 = vld [vmem:[%s33 + $0x20] sm:$0xff]
    %v1606 = vld [vmem:[%s33 + $0x28] sm:$0xff]
    %v1607 = vld [vmem:[%s33 + $0x30] sm:$0xff]
    %v1608 = vld [vmem:[%s33 + $0x38] sm:$0xff]
    %v1609 = vld [vmem:[%s33 + $0x40] sm:$0xff]
    %v1610 = vld [vmem:[%s33 + $0x48] sm:$0xff]
    %v1611 = vld [vmem:[%s33 + $0x50] sm:$0xff]
    %v1612 = vld [vmem:[%s33 + $0x58] sm:$0xff]
    %v1613 = vld [vmem:[%s33 + $0x60] sm:$0xff]
    %v1614 = vld [vmem:[%s33 + $0x68] sm:$0xff]
    %v1615 = vld [vmem:[%s33 + $0x70] sm:$0xff]
    %v1616 = vld [vmem:[%s33 + $0x78] sm:$0xff]
    %v1617 = vld [vmem:[%s35] sm:$0x77]
    %v1619 = vperm.slane %v1617, 0
    %v1620 = vperm.slane %v1617, 4
    %v1623 = vperm.slane %v1619, 0
    %v1624 = vperm.slane %v1620, 0
    %v1626 = vsel %vm560, %v1599, 0
    %v1629 = vsel %vm560, %v1600, 0
    %1631 = vmatpush.msra.mxu0 0.0
    %1632 = vmatpush.msra.mxu0 0.0
    %1633 = vmatpush.msra.mxu0 0.0
    %1634 = vmatpush.msra.mxu0 0.0
    %1635 = vmatpush.msra.mxu0 0.0
    %1636 = vmatpush.msra.mxu0 0.0
    %1637 = vmatpush.msra.mxu0 0.0
    %1638 = vmatpush.msra.mxu0 0.0
    %1639 = vmatpush.msra.mxu0 %v1615
    %1640 = vmatpush.msra.mxu0 %v1613
    %1641 = vmatpush.msra.mxu0 %v1611
    %1642 = vmatpush.msra.mxu0 %v1609
    %1643 = vmatpush.msra.mxu0 %v1607
    %1644 = vmatpush.msra.mxu0 %v1605
    %1645 = vmatpush.msra.mxu0 %v1603
    %1646 = vmatpush.msra.mxu0 %v1601
    %1647 = vmatmul.f32.gmra.mxu0 %v1626
    %v1648 = vpop.f32.mrf.mxu0
    %v1649 = vadd.f32 %v1623, %v1648
    %1650 = vmatmul.f32.gmra.mxu0 %v1629
    %v1651 = vpop.f32.mrf.mxu0
    %v1652 = vadd.f32 %v1623, %v1651
    %1653 = vdwg.mxu0
    %1654 = vmatpush.msra.mxu0 0.0
    %1655 = vmatpush.msra.mxu0 0.0
    %1656 = vmatpush.msra.mxu0 0.0
    %1657 = vmatpush.msra.mxu0 0.0
    %1658 = vmatpush.msra.mxu0 0.0
    %1659 = vmatpush.msra.mxu0 0.0
    %1660 = vmatpush.msra.mxu0 0.0
    %1661 = vmatpush.msra.mxu0 0.0
    %1662 = vmatpush.msra.mxu0 %v1616
    %1663 = vmatpush.msra.mxu0 %v1614
    %1664 = vmatpush.msra.mxu0 %v1612
    %1665 = vmatpush.msra.mxu0 %v1610
    %1666 = vmatpush.msra.mxu0 %v1608
    %1667 = vmatpush.msra.mxu0 %v1606
    %1668 = vmatpush.msra.mxu0 %v1604
    %1669 = vmatpush.msra.mxu0 %v1602
    %1670 = vmatmul.f32.gmra.mxu0 %v1626
    %v1671 = vpop.f32.mrf.mxu0
    %v1672 = vadd.f32 %v1624, %v1671
    %1673 = vmatmul.f32.gmra.mxu0 %v1629
    %v1674 = vpop.f32.mrf.mxu0
    %v1675 = vadd.f32 %v1624, %v1674
    %1676 = vdwg.mxu0
    %vm1677 = vcmp.gt.f32.partialorder %v1649, 0.0
    %vm1678 = vcmp.gt.f32.partialorder %v1672, 0.0
    %vm1679 = vcmp.gt.f32.partialorder %v1652, 0.0
    %vm1680 = vcmp.gt.f32.partialorder %v1675, 0.0
    %v1681 = vmul.f32 %v1649, 0.01
    %v1682 = vmul.f32 %v1672, 0.01
    %v1683 = vmul.f32 %v1652, 0.01
    %v1684 = vmul.f32 %v1675, 0.01
    %v1685 = vsel %vm1677, %v1649, %v1681
    %v1686 = vsel %vm1678, %v1672, %v1682
    %v1687 = vsel %vm1679, %v1652, %v1683
    %v1688 = vsel %vm1680, %v1675, %v1684
    %v1689 = vadd.f32 %v1685, %v1687
    %v1690 = vrot.slane %v1689, 4
    %v1691 = vadd.f32 %v1689, %v1690
    %v1692 = vrot.slane %v1691, 2
    %v1693 = vadd.f32 %v1691, %v1692
    %v1694 = vrot.slane %v1693, 1
    %v1695 = vadd.f32 %v1693, %v1694
    %v1696 = vadd.f32 %v1686, %v1688
    %v1697 = vrot.slane %v1696, 4
    %v1698 = vadd.f32 %v1696, %v1697
    %v1699 = vrot.slane %v1698, 2
    %v1700 = vadd.f32 %v1698, %v1699
    %v1701 = vrot.slane %v1700, 1
    %v1702 = vadd.f32 %v1700, %v1701
    %v1703 = vmul.f32 %v1695, %v576
    %v1704 = vmul.f32 %v1702, %v576
    %v1705 = vsub.f32 %v1685, %v1703
    %v1706 = vsub.f32 %v1686, %v1704
    %v1707 = vsub.f32 %v1687, %v1703
    %v1708 = vsub.f32 %v1688, %v1704
    %v1709 = vmul.f32 %v1705, %v1705
    %v1710 = vmul.f32 %v1706, %v1706
    %v1711 = vmul.f32 %v1707, %v1707
    %v1712 = vmul.f32 %v1708, %v1708
    %v1713 = vadd.f32 %v1709, %v1711
    %v1714 = vrot.slane %v1713, 4
    %v1715 = vadd.f32 %v1713, %v1714
    %v1716 = vrot.slane %v1715, 2
    %v1717 = vadd.f32 %v1715, %v1716
    %v1718 = vrot.slane %v1717, 1
    %v1719 = vadd.f32 %v1717, %v1718
    %v1720 = vadd.f32 %v1710, %v1712
    %v1721 = vrot.slane %v1720, 4
    %v1722 = vadd.f32 %v1720, %v1721
    %v1723 = vrot.slane %v1722, 2
    %v1724 = vadd.f32 %v1722, %v1723
    %v1725 = vrot.slane %v1724, 1
    %v1726 = vadd.f32 %v1724, %v1725
    %v1727 = vmul.f32 %v1719, %v576
    %v1728 = vmul.f32 %v1726, %v576
    %v1729 = vadd.f32 %v1727, 1e-05
    %v1730 = vadd.f32 %v1728, 1e-05
    %v1731 = vrsqrt.pop %v1729
    %v1732 = vmul.f32 %v1731, %v1729
    %v1733 = vmul.f32 %v1732, %v1731
    %v1734 = vmul.f32 0.5, %v1733
    %v1735 = vsub.f32 1.5, %v1734
    %v1736 = vmul.f32 %v1731, %v1735
    %vm1737 = vweird.f32 %v1729
    %vm1738 = vweird.f32 %v1731
    %vm1739 = vmor %vm1737, %vm1738
    %v1740 = vsel %vm1739, %v1731, %v1736
    %v1741 = vrsqrt.pop %v1730
    %v1742 = vmul.f32 %v1741, %v1730
    %v1743 = vmul.f32 %v1742, %v1741
    %v1744 = vmul.f32 0.5, %v1743
    %v1745 = vsub.f32 1.5, %v1744
    %v1746 = vmul.f32 %v1741, %v1745
    %vm1747 = vweird.f32 %v1730
    %vm1748 = vweird.f32 %v1741
    %vm1749 = vmor %vm1747, %vm1748
    %v1750 = vsel %vm1749, %v1741, %v1746
    %v1751 = vperm.slane %v1617, 1
    %v1752 = vperm.slane %v1617, 5
    %v1755 = vmul.f32 %v1740, %v1751
    %v1756 = vmul.f32 %v1750, %v1752
    %v1757 = vperm.slane %v1755, 0
    %v1758 = vperm.slane %v1756, 0
    %v1759 = vmul.f32 %v1705, %v1757
    %v1760 = vmul.f32 %v1706, %v1758
    %v1761 = vmul.f32 %v1707, %v1757
    %v1762 = vmul.f32 %v1708, %v1758
    %v1763 = vperm.slane %v1617, 2
    %v1764 = vperm.slane %v1617, 6
    %v1767 = vperm.slane %v1763, 2
    %v1768 = vperm.slane %v1764, 2
    %v1769 = vadd.f32 %v1759, %v1767
    %v1770 = vadd.f32 %v1760, %v1768
    %v1771 = vadd.f32 %v1761, %v1767
    %v1772 = vadd.f32 %v1762, %v1768
    %v1773 = vld [vmem:[%s37] sm:$0xff]
    %v1774 = vld [vmem:[%s37 + $0x8] sm:$0xff]
    %v1775 = vld [vmem:[%s37 + $0x10] sm:$0xff]
    %v1776 = vld [vmem:[%s37 + $0x18] sm:$0xff]
    %v1777 = vld [vmem:[%s37 + $0x20] sm:$0xff]
    %v1778 = vld [vmem:[%s37 + $0x28] sm:$0xff]
    %v1779 = vld [vmem:[%s37 + $0x30] sm:$0xff]
    %v1780 = vld [vmem:[%s37 + $0x38] sm:$0xff]
    %v1781 = vld [vmem:[%s37 + $0x40] sm:$0xff]
    %v1782 = vld [vmem:[%s37 + $0x48] sm:$0xff]
    %v1783 = vld [vmem:[%s37 + $0x50] sm:$0xff]
    %v1784 = vld [vmem:[%s37 + $0x58] sm:$0xff]
    %v1785 = vld [vmem:[%s37 + $0x60] sm:$0xff]
    %v1786 = vld [vmem:[%s37 + $0x68] sm:$0xff]
    %v1787 = vld [vmem:[%s37 + $0x70] sm:$0xff]
    %v1788 = vld [vmem:[%s37 + $0x78] sm:$0xff]
    %v1789 = vld [vmem:[%s37 + $0x80] sm:$0xff]
    %v1790 = vld [vmem:[%s37 + $0x88] sm:$0xff]
    %v1791 = vld [vmem:[%s37 + $0x90] sm:$0xff]
    %v1792 = vld [vmem:[%s37 + $0x98] sm:$0xff]
    %v1793 = vld [vmem:[%s37 + $0xa0] sm:$0xff]
    %v1794 = vld [vmem:[%s37 + $0xa8] sm:$0xff]
    %v1795 = vld [vmem:[%s37 + $0xb0] sm:$0xff]
    %v1796 = vld [vmem:[%s37 + $0xb8] sm:$0xff]
    %v1797 = vld [vmem:[%s37 + $0xc0] sm:$0xff]
    %v1798 = vld [vmem:[%s37 + $0xc8] sm:$0xff]
    %v1799 = vld [vmem:[%s37 + $0xd0] sm:$0xff]
    %v1800 = vld [vmem:[%s37 + $0xd8] sm:$0xff]
    %v1801 = vld [vmem:[%s37 + $0xe0] sm:$0xff]
    %v1802 = vld [vmem:[%s37 + $0xe8] sm:$0xff]
    %v1803 = vld [vmem:[%s37 + $0xf0] sm:$0xff]
    %v1804 = vld [vmem:[%s37 + $0xf8] sm:$0xff]
    %v1805 = vld [vmem:[%s37 + $0x100] sm:$0xff]
    %v1806 = vld [vmem:[%s37 + $0x108] sm:$0xff]
    %v1807 = vld [vmem:[%s37 + $0x110] sm:$0xff]
    %v1808 = vld [vmem:[%s37 + $0x118] sm:$0xff]
    %v1809 = vld [vmem:[%s37 + $0x120] sm:$0xff]
    %v1810 = vld [vmem:[%s37 + $0x128] sm:$0xff]
    %v1811 = vld [vmem:[%s37 + $0x130] sm:$0xff]
    %v1812 = vld [vmem:[%s37 + $0x138] sm:$0xff]
    %v1813 = vld [vmem:[%s37 + $0x140] sm:$0xff]
    %v1814 = vld [vmem:[%s37 + $0x148] sm:$0xff]
    %v1815 = vld [vmem:[%s37 + $0x150] sm:$0xff]
    %v1816 = vld [vmem:[%s37 + $0x158] sm:$0xff]
    %v1817 = vld [vmem:[%s37 + $0x160] sm:$0xff]
    %v1818 = vld [vmem:[%s37 + $0x168] sm:$0xff]
    %v1819 = vld [vmem:[%s37 + $0x170] sm:$0xff]
    %v1820 = vld [vmem:[%s37 + $0x178] sm:$0xff]
    %v1821 = vld [vmem:[%s37 + $0x180] sm:$0xff]
    %v1822 = vld [vmem:[%s37 + $0x188] sm:$0xff]
    %v1823 = vld [vmem:[%s37 + $0x190] sm:$0xff]
    %v1824 = vld [vmem:[%s37 + $0x198] sm:$0xff]
    %v1825 = vld [vmem:[%s37 + $0x1a0] sm:$0xff]
    %v1826 = vld [vmem:[%s37 + $0x1a8] sm:$0xff]
    %v1827 = vld [vmem:[%s37 + $0x1b0] sm:$0xff]
    %v1828 = vld [vmem:[%s37 + $0x1b8] sm:$0xff]
    %v1829 = vld [vmem:[%s37 + $0x1c0] sm:$0xff]
    %v1830 = vld [vmem:[%s37 + $0x1c8] sm:$0xff]
    %v1831 = vld [vmem:[%s37 + $0x1d0] sm:$0xff]
    %v1832 = vld [vmem:[%s37 + $0x1d8] sm:$0xff]
    %v1833 = vld [vmem:[%s37 + $0x1e0] sm:$0xff]
    %v1834 = vld [vmem:[%s37 + $0x1e8] sm:$0xff]
    %v1835 = vld [vmem:[%s37 + $0x1f0] sm:$0xff]
    %v1836 = vld [vmem:[%s37 + $0x1f8] sm:$0xff]
    %v1837 = vld [vmem:[#allocation20] sm:$0xff]
    %v1838 = vld [vmem:[#allocation20 + $0x8] sm:$0xff]
    %v1839 = vld [vmem:[#allocation20 + $0x10] sm:$0xff]
    %v1840 = vld [vmem:[#allocation20 + $0x18] sm:$0xff]
    %v1841 = vld [vmem:[#allocation20 + $0x20] sm:$0xff]
    %v1842 = vld [vmem:[#allocation20 + $0x28] sm:$0xff]
    %v1843 = vld [vmem:[#allocation20 + $0x30] sm:$0xff]
    %v1844 = vld [vmem:[#allocation20 + $0x38] sm:$0xff]
    %v1845 = vld [vmem:[#allocation20 + $0x40] sm:$0xff]
    %v1846 = vld [vmem:[#allocation20 + $0x48] sm:$0xff]
    %v1847 = vld [vmem:[#allocation20 + $0x50] sm:$0xff]
    %v1848 = vld [vmem:[#allocation20 + $0x58] sm:$0xff]
    %v1849 = vld [vmem:[#allocation20 + $0x60] sm:$0xff]
    %v1850 = vld [vmem:[#allocation20 + $0x68] sm:$0xff]
    %v1851 = vld [vmem:[#allocation20 + $0x70] sm:$0xff]
    %v1852 = vld [vmem:[#allocation20 + $0x78] sm:$0xff]
    %v1853 = vld [vmem:[#allocation20 + $0x80] sm:$0xff]
    %v1854 = vld [vmem:[#allocation20 + $0x88] sm:$0xff]
    %v1855 = vld [vmem:[#allocation20 + $0x90] sm:$0xff]
    %v1856 = vld [vmem:[#allocation20 + $0x98] sm:$0xff]
    %v1857 = vld [vmem:[#allocation20 + $0xa0] sm:$0xff]
    %v1858 = vld [vmem:[#allocation20 + $0xa8] sm:$0xff]
    %v1859 = vld [vmem:[#allocation20 + $0xb0] sm:$0xff]
    %v1860 = vld [vmem:[#allocation20 + $0xb8] sm:$0xff]
    %v1861 = vld [vmem:[#allocation20 + $0xc0] sm:$0xff]
    %v1862 = vld [vmem:[#allocation20 + $0xc8] sm:$0xff]
    %v1863 = vld [vmem:[#allocation20 + $0xd0] sm:$0xff]
    %v1864 = vld [vmem:[#allocation20 + $0xd8] sm:$0xff]
    %v1865 = vld [vmem:[#allocation20 + $0xe0] sm:$0xff]
    %v1866 = vld [vmem:[#allocation20 + $0xe8] sm:$0xff]
    %v1867 = vld [vmem:[#allocation20 + $0xf0] sm:$0xff]
    %v1868 = vld [vmem:[#allocation20 + $0xf8] sm:$0xff]
    %v1869 = vld [vmem:[#allocation20 + $0x100] sm:$0xff]
    %v1870 = vld [vmem:[#allocation20 + $0x108] sm:$0xff]
    %v1871 = vld [vmem:[#allocation20 + $0x110] sm:$0xff]
    %v1872 = vld [vmem:[#allocation20 + $0x118] sm:$0xff]
    %v1873 = vld [vmem:[#allocation20 + $0x120] sm:$0xff]
    %v1874 = vld [vmem:[#allocation20 + $0x128] sm:$0xff]
    %v1875 = vld [vmem:[#allocation20 + $0x130] sm:$0xff]
    %v1876 = vld [vmem:[#allocation20 + $0x138] sm:$0xff]
    %v1877 = vld [vmem:[#allocation20 + $0x140] sm:$0xff]
    %v1878 = vld [vmem:[#allocation20 + $0x148] sm:$0xff]
    %v1879 = vld [vmem:[#allocation20 + $0x150] sm:$0xff]
    %v1880 = vld [vmem:[#allocation20 + $0x158] sm:$0xff]
    %v1881 = vld [vmem:[#allocation20 + $0x160] sm:$0xff]
    %v1882 = vld [vmem:[#allocation20 + $0x168] sm:$0xff]
    %v1883 = vld [vmem:[#allocation20 + $0x170] sm:$0xff]
    %v1884 = vld [vmem:[#allocation20 + $0x178] sm:$0xff]
    %v1885 = vld [vmem:[#allocation20 + $0x180] sm:$0xff]
    %v1886 = vld [vmem:[#allocation20 + $0x188] sm:$0xff]
    %v1887 = vld [vmem:[#allocation20 + $0x190] sm:$0xff]
    %v1888 = vld [vmem:[#allocation20 + $0x198] sm:$0xff]
    %v1889 = vld [vmem:[#allocation20 + $0x1a0] sm:$0xff]
    %v1890 = vld [vmem:[#allocation20 + $0x1a8] sm:$0xff]
    %v1891 = vld [vmem:[#allocation20 + $0x1b0] sm:$0xff]
    %v1892 = vld [vmem:[#allocation20 + $0x1b8] sm:$0xff]
    %v1893 = vld [vmem:[#allocation20 + $0x1c0] sm:$0xff]
    %v1894 = vld [vmem:[#allocation20 + $0x1c8] sm:$0xff]
    %v1895 = vld [vmem:[#allocation20 + $0x1d0] sm:$0xff]
    %v1896 = vld [vmem:[#allocation20 + $0x1d8] sm:$0xff]
    %v1897 = vld [vmem:[#allocation20 + $0x1e0] sm:$0xff]
    %v1898 = vld [vmem:[#allocation20 + $0x1e8] sm:$0xff]
    %v1899 = vld [vmem:[#allocation20 + $0x1f0] sm:$0xff]
    %v1900 = vld [vmem:[#allocation20 + $0x1f8] sm:$0xff]
    %v1901 = vld [vmem:[#allocation20 + $0x200] sm:$0xff]
    %v1902 = vld [vmem:[#allocation20 + $0x208] sm:$0xff]
    %v1903 = vld [vmem:[#allocation20 + $0x210] sm:$0xff]
    %v1904 = vld [vmem:[#allocation20 + $0x218] sm:$0xff]
    %v1905 = vld [vmem:[#allocation20 + $0x220] sm:$0xff]
    %v1906 = vld [vmem:[#allocation20 + $0x228] sm:$0xff]
    %v1907 = vld [vmem:[#allocation20 + $0x230] sm:$0xff]
    %v1908 = vld [vmem:[#allocation20 + $0x238] sm:$0xff]
    %v1909 = vld [vmem:[#allocation20 + $0x240] sm:$0xff]
    %v1910 = vld [vmem:[#allocation20 + $0x248] sm:$0xff]
    %v1911 = vld [vmem:[#allocation20 + $0x250] sm:$0xff]
    %v1912 = vld [vmem:[#allocation20 + $0x258] sm:$0xff]
    %v1913 = vld [vmem:[#allocation20 + $0x260] sm:$0xff]
    %v1914 = vld [vmem:[#allocation20 + $0x268] sm:$0xff]
    %v1915 = vld [vmem:[#allocation20 + $0x270] sm:$0xff]
    %v1916 = vld [vmem:[#allocation20 + $0x278] sm:$0xff]
    %v1917 = vld [vmem:[#allocation20 + $0x280] sm:$0xff]
    %v1918 = vld [vmem:[#allocation20 + $0x288] sm:$0xff]
    %v1919 = vld [vmem:[#allocation20 + $0x290] sm:$0xff]
    %v1920 = vld [vmem:[#allocation20 + $0x298] sm:$0xff]
    %v1921 = vld [vmem:[#allocation20 + $0x2a0] sm:$0xff]
    %v1922 = vld [vmem:[#allocation20 + $0x2a8] sm:$0xff]
    %v1923 = vld [vmem:[#allocation20 + $0x2b0] sm:$0xff]
    %v1924 = vld [vmem:[#allocation20 + $0x2b8] sm:$0xff]
    %v1925 = vld [vmem:[#allocation20 + $0x2c0] sm:$0xff]
    %v1926 = vld [vmem:[#allocation20 + $0x2c8] sm:$0xff]
    %v1927 = vld [vmem:[#allocation20 + $0x2d0] sm:$0xff]
    %v1928 = vld [vmem:[#allocation20 + $0x2d8] sm:$0xff]
    %v1929 = vld [vmem:[#allocation20 + $0x2e0] sm:$0xff]
    %v1930 = vld [vmem:[#allocation20 + $0x2e8] sm:$0xff]
    %v1931 = vld [vmem:[#allocation20 + $0x2f0] sm:$0xff]
    %v1932 = vld [vmem:[#allocation20 + $0x2f8] sm:$0xff]
    %v1933 = vld [vmem:[#allocation20 + $0x300] sm:$0xff]
    %v1934 = vld [vmem:[#allocation20 + $0x308] sm:$0xff]
    %v1935 = vld [vmem:[#allocation20 + $0x310] sm:$0xff]
    %v1936 = vld [vmem:[#allocation20 + $0x318] sm:$0xff]
    %v1937 = vld [vmem:[#allocation20 + $0x320] sm:$0xff]
    %v1938 = vld [vmem:[#allocation20 + $0x328] sm:$0xff]
    %v1939 = vld [vmem:[#allocation20 + $0x330] sm:$0xff]
    %v1940 = vld [vmem:[#allocation20 + $0x338] sm:$0xff]
    %v1941 = vld [vmem:[#allocation20 + $0x340] sm:$0xff]
    %v1942 = vld [vmem:[#allocation20 + $0x348] sm:$0xff]
    %v1943 = vld [vmem:[#allocation20 + $0x350] sm:$0xff]
    %v1944 = vld [vmem:[#allocation20 + $0x358] sm:$0xff]
    %v1945 = vld [vmem:[#allocation20 + $0x360] sm:$0xff]
    %v1946 = vld [vmem:[#allocation20 + $0x368] sm:$0xff]
    %v1947 = vld [vmem:[#allocation20 + $0x370] sm:$0xff]
    %v1948 = vld [vmem:[#allocation20 + $0x378] sm:$0xff]
    %v1949 = vld [vmem:[#allocation20 + $0x380] sm:$0xff]
    %v1950 = vld [vmem:[#allocation20 + $0x388] sm:$0xff]
    %v1951 = vld [vmem:[#allocation20 + $0x390] sm:$0xff]
    %v1952 = vld [vmem:[#allocation20 + $0x398] sm:$0xff]
    %v1953 = vld [vmem:[#allocation20 + $0x3a0] sm:$0xff]
    %v1954 = vld [vmem:[#allocation20 + $0x3a8] sm:$0xff]
    %v1955 = vld [vmem:[#allocation20 + $0x3b0] sm:$0xff]
    %v1956 = vld [vmem:[#allocation20 + $0x3b8] sm:$0xff]
    %v1957 = vld [vmem:[#allocation20 + $0x3c0] sm:$0xff]
    %v1958 = vld [vmem:[#allocation20 + $0x3c8] sm:$0xff]
    %v1959 = vld [vmem:[#allocation20 + $0x3d0] sm:$0xff]
    %v1960 = vld [vmem:[#allocation20 + $0x3d8] sm:$0xff]
    %v1961 = vld [vmem:[#allocation20 + $0x3e0] sm:$0xff]
    %v1962 = vld [vmem:[#allocation20 + $0x3e8] sm:$0xff]
    %v1963 = vld [vmem:[#allocation20 + $0x3f0] sm:$0xff]
    %v1964 = vld [vmem:[#allocation20 + $0x3f8] sm:$0xff]
    %1965 = vmatpush.msra.mxu0 %v1867
    %1966 = vmatpush.msra.mxu0 %v1865
    %1967 = vmatpush.msra.mxu0 %v1863
    %1968 = vmatpush.msra.mxu0 %v1861
    %1969 = vmatpush.msra.mxu0 %v1859
    %1970 = vmatpush.msra.mxu0 %v1857
    %1971 = vmatpush.msra.mxu0 %v1855
    %1972 = vmatpush.msra.mxu0 %v1853
    %1973 = vmatpush.msra.mxu0 %v1851
    %1974 = vmatpush.msra.mxu0 %v1849
    %1975 = vmatpush.msra.mxu0 %v1847
    %1976 = vmatpush.msra.mxu0 %v1845
    %1977 = vmatpush.msra.mxu0 %v1843
    %1978 = vmatpush.msra.mxu0 %v1841
    %1979 = vmatpush.msra.mxu0 %v1839
    %1980 = vmatpush.msra.mxu0 %v1837
    %1981 = vmatmul.f32.gmra.mxu0 %v1387
    %v1982 = vpop.f32.mrf.mxu0
    %v1983 = vadd.f32 0.0, %v1982
    %1984 = vmatmul.f32.gmra.mxu0 %v1391
    %v1985 = vpop.f32.mrf.mxu0
    %v1986 = vadd.f32 0.0, %v1985
    %1987 = vdwg.mxu0
    %1988 = vmatpush.msra.mxu0 %v1899
    %1989 = vmatpush.msra.mxu0 %v1897
    %1990 = vmatpush.msra.mxu0 %v1895
    %1991 = vmatpush.msra.mxu0 %v1893
    %1992 = vmatpush.msra.mxu0 %v1891
    %1993 = vmatpush.msra.mxu0 %v1889
    %1994 = vmatpush.msra.mxu0 %v1887
    %1995 = vmatpush.msra.mxu0 %v1885
    %1996 = vmatpush.msra.mxu0 %v1883
    %1997 = vmatpush.msra.mxu0 %v1881
    %1998 = vmatpush.msra.mxu0 %v1879
    %1999 = vmatpush.msra.mxu0 %v1877
    %2000 = vmatpush.msra.mxu0 %v1875
    %2001 = vmatpush.msra.mxu0 %v1873
    %2002 = vmatpush.msra.mxu0 %v1871
    %2003 = vmatpush.msra.mxu0 %v1869
    %2004 = vmatmul.f32.gmra.mxu0 %v1388
    %v2005 = vpop.f32.mrf.mxu0
    %v2006 = vadd.f32 %v1983, %v2005
    %2007 = vmatmul.f32.gmra.mxu0 %v1392
    %v2008 = vpop.f32.mrf.mxu0
    %v2009 = vadd.f32 %v1986, %v2008
    %2010 = vdwg.mxu0
    %2011 = vmatpush.msra.mxu0 %v1931
    %2012 = vmatpush.msra.mxu0 %v1929
    %2013 = vmatpush.msra.mxu0 %v1927
    %2014 = vmatpush.msra.mxu0 %v1925
    %2015 = vmatpush.msra.mxu0 %v1923
    %2016 = vmatpush.msra.mxu0 %v1921
    %2017 = vmatpush.msra.mxu0 %v1919
    %2018 = vmatpush.msra.mxu0 %v1917
    %2019 = vmatpush.msra.mxu0 %v1915
    %2020 = vmatpush.msra.mxu0 %v1913
    %2021 = vmatpush.msra.mxu0 %v1911
    %2022 = vmatpush.msra.mxu0 %v1909
    %2023 = vmatpush.msra.mxu0 %v1907
    %2024 = vmatpush.msra.mxu0 %v1905
    %2025 = vmatpush.msra.mxu0 %v1903
    %2026 = vmatpush.msra.mxu0 %v1901
    %2027 = vmatmul.f32.gmra.mxu0 %v1389
    %v2028 = vpop.f32.mrf.mxu0
    %v2029 = vadd.f32 %v2006, %v2028
    %2030 = vmatmul.f32.gmra.mxu0 %v1393
    %v2031 = vpop.f32.mrf.mxu0
    %v2032 = vadd.f32 %v2009, %v2031
    %2033 = vdwg.mxu0
    %2034 = vmatpush.msra.mxu0 %v1963
    %2035 = vmatpush.msra.mxu0 %v1961
    %2036 = vmatpush.msra.mxu0 %v1959
    %2037 = vmatpush.msra.mxu0 %v1957
    %2038 = vmatpush.msra.mxu0 %v1955
    %2039 = vmatpush.msra.mxu0 %v1953
    %2040 = vmatpush.msra.mxu0 %v1951
    %2041 = vmatpush.msra.mxu0 %v1949
    %2042 = vmatpush.msra.mxu0 %v1947
    %2043 = vmatpush.msra.mxu0 %v1945
    %2044 = vmatpush.msra.mxu0 %v1943
    %2045 = vmatpush.msra.mxu0 %v1941
    %2046 = vmatpush.msra.mxu0 %v1939
    %2047 = vmatpush.msra.mxu0 %v1937
    %2048 = vmatpush.msra.mxu0 %v1935
    %2049 = vmatpush.msra.mxu0 %v1933
    %2050 = vmatmul.f32.gmra.mxu0 %v1390
    %v2051 = vpop.f32.mrf.mxu0
    %v2052 = vadd.f32 %v2029, %v2051
    %2053 = vmatmul.f32.gmra.mxu0 %v1394
    %v2054 = vpop.f32.mrf.mxu0
    %v2055 = vadd.f32 %v2032, %v2054
    %2056 = vdwg.mxu0
    %2057 = vmatpush.msra.mxu0 %v1868
    %2058 = vmatpush.msra.mxu0 %v1866
    %2059 = vmatpush.msra.mxu0 %v1864
    %2060 = vmatpush.msra.mxu0 %v1862
    %2061 = vmatpush.msra.mxu0 %v1860
    %2062 = vmatpush.msra.mxu0 %v1858
    %2063 = vmatpush.msra.mxu0 %v1856
    %2064 = vmatpush.msra.mxu0 %v1854
    %2065 = vmatpush.msra.mxu0 %v1852
    %2066 = vmatpush.msra.mxu0 %v1850
    %2067 = vmatpush.msra.mxu0 %v1848
    %2068 = vmatpush.msra.mxu0 %v1846
    %2069 = vmatpush.msra.mxu0 %v1844
    %2070 = vmatpush.msra.mxu0 %v1842
    %2071 = vmatpush.msra.mxu0 %v1840
    %2072 = vmatpush.msra.mxu0 %v1838
    %2073 = vmatmul.f32.gmra.mxu0 %v1387
    %v2074 = vpop.f32.mrf.mxu0
    %v2075 = vadd.f32 0.0, %v2074
    %2076 = vmatmul.f32.gmra.mxu0 %v1391
    %v2077 = vpop.f32.mrf.mxu0
    %v2078 = vadd.f32 0.0, %v2077
    %2079 = vdwg.mxu0
    %2080 = vmatpush.msra.mxu0 %v1900
    %2081 = vmatpush.msra.mxu0 %v1898
    %2082 = vmatpush.msra.mxu0 %v1896
    %2083 = vmatpush.msra.mxu0 %v1894
    %2084 = vmatpush.msra.mxu0 %v1892
    %2085 = vmatpush.msra.mxu0 %v1890
    %2086 = vmatpush.msra.mxu0 %v1888
    %2087 = vmatpush.msra.mxu0 %v1886
    %2088 = vmatpush.msra.mxu0 %v1884
    %2089 = vmatpush.msra.mxu0 %v1882
    %2090 = vmatpush.msra.mxu0 %v1880
    %2091 = vmatpush.msra.mxu0 %v1878
    %2092 = vmatpush.msra.mxu0 %v1876
    %2093 = vmatpush.msra.mxu0 %v1874
    %2094 = vmatpush.msra.mxu0 %v1872
    %2095 = vmatpush.msra.mxu0 %v1870
    %2096 = vmatmul.f32.gmra.mxu0 %v1388
    %v2097 = vpop.f32.mrf.mxu0
    %v2098 = vadd.f32 %v2075, %v2097
    %2099 = vmatmul.f32.gmra.mxu0 %v1392
    %v2100 = vpop.f32.mrf.mxu0
    %v2101 = vadd.f32 %v2078, %v2100
    %2102 = vdwg.mxu0
    %2103 = vmatpush.msra.mxu0 %v1932
    %2104 = vmatpush.msra.mxu0 %v1930
    %2105 = vmatpush.msra.mxu0 %v1928
    %2106 = vmatpush.msra.mxu0 %v1926
    %2107 = vmatpush.msra.mxu0 %v1924
    %2108 = vmatpush.msra.mxu0 %v1922
    %2109 = vmatpush.msra.mxu0 %v1920
    %2110 = vmatpush.msra.mxu0 %v1918
    %2111 = vmatpush.msra.mxu0 %v1916
    %2112 = vmatpush.msra.mxu0 %v1914
    %2113 = vmatpush.msra.mxu0 %v1912
    %2114 = vmatpush.msra.mxu0 %v1910
    %2115 = vmatpush.msra.mxu0 %v1908
    %2116 = vmatpush.msra.mxu0 %v1906
    %2117 = vmatpush.msra.mxu0 %v1904
    %2118 = vmatpush.msra.mxu0 %v1902
    %2119 = vmatmul.f32.gmra.mxu0 %v1389
    %v2120 = vpop.f32.mrf.mxu0
    %v2121 = vadd.f32 %v2098, %v2120
    %2122 = vmatmul.f32.gmra.mxu0 %v1393
    %v2123 = vpop.f32.mrf.mxu0
    %v2124 = vadd.f32 %v2101, %v2123
    %2125 = vdwg.mxu0
    %2126 = vmatpush.msra.mxu0 %v1964
    %2127 = vmatpush.msra.mxu0 %v1962
    %2128 = vmatpush.msra.mxu0 %v1960
    %2129 = vmatpush.msra.mxu0 %v1958
    %2130 = vmatpush.msra.mxu0 %v1956
    %2131 = vmatpush.msra.mxu0 %v1954
    %2132 = vmatpush.msra.mxu0 %v1952
    %2133 = vmatpush.msra.mxu0 %v1950
    %2134 = vmatpush.msra.mxu0 %v1948
    %2135 = vmatpush.msra.mxu0 %v1946
    %2136 = vmatpush.msra.mxu0 %v1944
    %2137 = vmatpush.msra.mxu0 %v1942
    %2138 = vmatpush.msra.mxu0 %v1940
    %2139 = vmatpush.msra.mxu0 %v1938
    %2140 = vmatpush.msra.mxu0 %v1936
    %2141 = vmatpush.msra.mxu0 %v1934
    %2142 = vmatmul.f32.gmra.mxu0 %v1390
    %v2143 = vpop.f32.mrf.mxu0
    %v2144 = vadd.f32 %v2121, %v2143
    %2145 = vmatmul.f32.gmra.mxu0 %v1394
    %v2146 = vpop.f32.mrf.mxu0
    %v2147 = vadd.f32 %v2124, %v2146
    %2148 = vdwg.mxu0
    %2149 = vmatpush.msra.mxu0 %v1803
    %2150 = vmatpush.msra.mxu0 %v1801
    %2151 = vmatpush.msra.mxu0 %v1799
    %2152 = vmatpush.msra.mxu0 %v1797
    %2153 = vmatpush.msra.mxu0 %v1795
    %2154 = vmatpush.msra.mxu0 %v1793
    %2155 = vmatpush.msra.mxu0 %v1791
    %2156 = vmatpush.msra.mxu0 %v1789
    %2157 = vmatpush.msra.mxu0 %v1787
    %2158 = vmatpush.msra.mxu0 %v1785
    %2159 = vmatpush.msra.mxu0 %v1783
    %2160 = vmatpush.msra.mxu0 %v1781
    %2161 = vmatpush.msra.mxu0 %v1779
    %2162 = vmatpush.msra.mxu0 %v1777
    %2163 = vmatpush.msra.mxu0 %v1775
    %2164 = vmatpush.msra.mxu0 %v1773
    %2165 = vmatmul.f32.gmra.mxu0 %v1769
    %v2166 = vpop.f32.mrf.mxu0
    %v2167 = vadd.f32 %v2052, %v2166
    %2168 = vmatmul.f32.gmra.mxu0 %v1771
    %v2169 = vpop.f32.mrf.mxu0
    %v2170 = vadd.f32 %v2055, %v2169
    %2171 = vdwg.mxu0
    %2172 = vmatpush.msra.mxu0 %v1835
    %2173 = vmatpush.msra.mxu0 %v1833
    %2174 = vmatpush.msra.mxu0 %v1831
    %2175 = vmatpush.msra.mxu0 %v1829
    %2176 = vmatpush.msra.mxu0 %v1827
    %2177 = vmatpush.msra.mxu0 %v1825
    %2178 = vmatpush.msra.mxu0 %v1823
    %2179 = vmatpush.msra.mxu0 %v1821
    %2180 = vmatpush.msra.mxu0 %v1819
    %2181 = vmatpush.msra.mxu0 %v1817
    %2182 = vmatpush.msra.mxu0 %v1815
    %2183 = vmatpush.msra.mxu0 %v1813
    %2184 = vmatpush.msra.mxu0 %v1811
    %2185 = vmatpush.msra.mxu0 %v1809
    %2186 = vmatpush.msra.mxu0 %v1807
    %2187 = vmatpush.msra.mxu0 %v1805
    %2188 = vmatmul.f32.gmra.mxu0 %v1770
    %v2189 = vpop.f32.mrf.mxu0
    %v2190 = vadd.f32 %v2167, %v2189
    %2191 = vmatmul.f32.gmra.mxu0 %v1772
    %v2192 = vpop.f32.mrf.mxu0
    %v2193 = vadd.f32 %v2170, %v2192
    %2194 = vdwg.mxu0
    %2195 = vmatpush.msra.mxu0 %v1804
    %2196 = vmatpush.msra.mxu0 %v1802
    %2197 = vmatpush.msra.mxu0 %v1800
    %2198 = vmatpush.msra.mxu0 %v1798
    %2199 = vmatpush.msra.mxu0 %v1796
    %2200 = vmatpush.msra.mxu0 %v1794
    %2201 = vmatpush.msra.mxu0 %v1792
    %2202 = vmatpush.msra.mxu0 %v1790
    %2203 = vmatpush.msra.mxu0 %v1788
    %2204 = vmatpush.msra.mxu0 %v1786
    %2205 = vmatpush.msra.mxu0 %v1784
    %2206 = vmatpush.msra.mxu0 %v1782
    %2207 = vmatpush.msra.mxu0 %v1780
    %2208 = vmatpush.msra.mxu0 %v1778
    %2209 = vmatpush.msra.mxu0 %v1776
    %2210 = vmatpush.msra.mxu0 %v1774
    %2211 = vmatmul.f32.gmra.mxu0 %v1769
    %v2212 = vpop.f32.mrf.mxu0
    %v2213 = vadd.f32 %v2144, %v2212
    %2214 = vmatmul.f32.gmra.mxu0 %v1771
    %v2215 = vpop.f32.mrf.mxu0
    %v2216 = vadd.f32 %v2147, %v2215
    %2217 = vdwg.mxu0
    %2218 = vmatpush.msra.mxu0 %v1836
    %2219 = vmatpush.msra.mxu0 %v1834
    %2220 = vmatpush.msra.mxu0 %v1832
    %2221 = vmatpush.msra.mxu0 %v1830
    %2222 = vmatpush.msra.mxu0 %v1828
    %2223 = vmatpush.msra.mxu0 %v1826
    %2224 = vmatpush.msra.mxu0 %v1824
    %2225 = vmatpush.msra.mxu0 %v1822
    %2226 = vmatpush.msra.mxu0 %v1820
    %2227 = vmatpush.msra.mxu0 %v1818
    %2228 = vmatpush.msra.mxu0 %v1816
    %2229 = vmatpush.msra.mxu0 %v1814
    %2230 = vmatpush.msra.mxu0 %v1812
    %2231 = vmatpush.msra.mxu0 %v1810
    %2232 = vmatpush.msra.mxu0 %v1808
    %2233 = vmatpush.msra.mxu0 %v1806
    %2234 = vmatmul.f32.gmra.mxu0 %v1770
    %v2235 = vpop.f32.mrf.mxu0
    %v2236 = vadd.f32 %v2213, %v2235
    %2237 = vmatmul.f32.gmra.mxu0 %v1772
    %v2238 = vpop.f32.mrf.mxu0
    %v2239 = vadd.f32 %v2216, %v2238
    %2240 = vdwg.mxu0
    %v2241 = vld [vmem:[%s41] sm:$0x77]
    %v2243 = vperm.slane %v2241, 0
    %v2244 = vperm.slane %v2241, 4
    %v2247 = vperm.slane %v2243, 0
    %v2248 = vperm.slane %v2244, 0
    %v2249 = vadd.f32 %v2190, %v2247
    %v2250 = vadd.f32 %v2236, %v2248
    %v2251 = vadd.f32 %v2193, %v2247
    %v2252 = vadd.f32 %v2239, %v2248
    %vm2253 = vcmp.gt.f32.partialorder %v2249, 0.0
    %vm2254 = vcmp.gt.f32.partialorder %v2250, 0.0
    %vm2255 = vcmp.gt.f32.partialorder %v2251, 0.0
    %vm2256 = vcmp.gt.f32.partialorder %v2252, 0.0
    %v2257 = vmul.f32 %v2249, 0.01
    %v2258 = vmul.f32 %v2250, 0.01
    %v2259 = vmul.f32 %v2251, 0.01
    %v2260 = vmul.f32 %v2252, 0.01
    %v2261 = vsel %vm2253, %v2249, %v2257
    %v2262 = vsel %vm2254, %v2250, %v2258
    %v2263 = vsel %vm2255, %v2251, %v2259
    %v2264 = vsel %vm2256, %v2252, %v2260
    %v2265 = vadd.f32 %v2261, %v2263
    %v2266 = vrot.slane %v2265, 4
    %v2267 = vadd.f32 %v2265, %v2266
    %v2268 = vrot.slane %v2267, 2
    %v2269 = vadd.f32 %v2267, %v2268
    %v2270 = vrot.slane %v2269, 1
    %v2271 = vadd.f32 %v2269, %v2270
    %v2272 = vadd.f32 %v2262, %v2264
    %v2273 = vrot.slane %v2272, 4
    %v2274 = vadd.f32 %v2272, %v2273
    %v2275 = vrot.slane %v2274, 2
    %v2276 = vadd.f32 %v2274, %v2275
    %v2277 = vrot.slane %v2276, 1
    %v2278 = vadd.f32 %v2276, %v2277
    %v2279 = vmul.f32 %v2271, %v576
    %v2280 = vmul.f32 %v2278, %v576
    %v2281 = vsub.f32 %v2261, %v2279
    %v2282 = vsub.f32 %v2262, %v2280
    %v2283 = vsub.f32 %v2263, %v2279
    %v2284 = vsub.f32 %v2264, %v2280
    %v2285 = vmul.f32 %v2281, %v2281
    %v2286 = vmul.f32 %v2282, %v2282
    %v2287 = vmul.f32 %v2283, %v2283
    %v2288 = vmul.f32 %v2284, %v2284
    %v2289 = vadd.f32 %v2285, %v2287
    %v2290 = vrot.slane %v2289, 4
    %v2291 = vadd.f32 %v2289, %v2290
    %v2292 = vrot.slane %v2291, 2
    %v2293 = vadd.f32 %v2291, %v2292
    %v2294 = vrot.slane %v2293, 1
    %v2295 = vadd.f32 %v2293, %v2294
    %v2296 = vadd.f32 %v2286, %v2288
    %v2297 = vrot.slane %v2296, 4
    %v2298 = vadd.f32 %v2296, %v2297
    %v2299 = vrot.slane %v2298, 2
    %v2300 = vadd.f32 %v2298, %v2299
    %v2301 = vrot.slane %v2300, 1
    %v2302 = vadd.f32 %v2300, %v2301
    %v2303 = vmul.f32 %v2295, %v576
    %v2304 = vmul.f32 %v2302, %v576
    %v2305 = vadd.f32 %v2303, 1e-05
    %v2306 = vadd.f32 %v2304, 1e-05
    %v2307 = vrsqrt.pop %v2305
    %v2308 = vmul.f32 %v2307, %v2305
    %v2309 = vmul.f32 %v2308, %v2307
    %v2310 = vmul.f32 0.5, %v2309
    %v2311 = vsub.f32 1.5, %v2310
    %v2312 = vmul.f32 %v2307, %v2311
    %vm2313 = vweird.f32 %v2305
    %vm2314 = vweird.f32 %v2307
    %vm2315 = vmor %vm2313, %vm2314
    %v2316 = vsel %vm2315, %v2307, %v2312
    %v2317 = vrsqrt.pop %v2306
    %v2318 = vmul.f32 %v2317, %v2306
    %v2319 = vmul.f32 %v2318, %v2317
    %v2320 = vmul.f32 0.5, %v2319
    %v2321 = vsub.f32 1.5, %v2320
    %v2322 = vmul.f32 %v2317, %v2321
    %vm2323 = vweird.f32 %v2306
    %vm2324 = vweird.f32 %v2317
    %vm2325 = vmor %vm2323, %vm2324
    %v2326 = vsel %vm2325, %v2317, %v2322
    %v2327 = vperm.slane %v2241, 1
    %v2328 = vperm.slane %v2241, 5
    %v2331 = vmul.f32 %v2316, %v2327
    %v2332 = vmul.f32 %v2326, %v2328
    %v2333 = vperm.slane %v2331, 0
    %v2334 = vperm.slane %v2332, 0
    %v2335 = vmul.f32 %v2281, %v2333
    %v2336 = vmul.f32 %v2282, %v2334
    %v2337 = vmul.f32 %v2283, %v2333
    %v2338 = vmul.f32 %v2284, %v2334
    %v2339 = vperm.slane %v2241, 2
    %v2340 = vperm.slane %v2241, 6
    %v2343 = vperm.slane %v2339, 2
    %v2344 = vperm.slane %v2340, 2
    %v2345 = vadd.f32 %v2335, %v2343
    %v2346 = vadd.f32 %v2336, %v2344
    %v2347 = vadd.f32 %v2337, %v2343
    %v2348 = vadd.f32 %v2338, %v2344
    %v2349 = vld [vmem:[#allocation22] sm:$0xff]
    %v2350 = vld [vmem:[#allocation22 + $0x8] sm:$0xff]
    %v2351 = vld [vmem:[#allocation22 + $0x10] sm:$0xff]
    %v2352 = vld [vmem:[#allocation22 + $0x18] sm:$0xff]
    %v2353 = vld [vmem:[#allocation22 + $0x20] sm:$0xff]
    %v2354 = vld [vmem:[#allocation22 + $0x28] sm:$0xff]
    %v2355 = vld [vmem:[#allocation22 + $0x30] sm:$0xff]
    %v2356 = vld [vmem:[#allocation22 + $0x38] sm:$0xff]
    %v2357 = vld [vmem:[#allocation22 + $0x40] sm:$0xff]
    %v2358 = vld [vmem:[#allocation22 + $0x48] sm:$0xff]
    %v2359 = vld [vmem:[#allocation22 + $0x50] sm:$0xff]
    %v2360 = vld [vmem:[#allocation22 + $0x58] sm:$0xff]
    %v2361 = vld [vmem:[#allocation22 + $0x60] sm:$0xff]
    %v2362 = vld [vmem:[#allocation22 + $0x68] sm:$0xff]
    %v2363 = vld [vmem:[#allocation22 + $0x70] sm:$0xff]
    %v2364 = vld [vmem:[#allocation22 + $0x78] sm:$0xff]
    %v2365 = vld [vmem:[#allocation22 + $0x80] sm:$0xff]
    %v2366 = vld [vmem:[#allocation22 + $0x88] sm:$0xff]
    %v2367 = vld [vmem:[#allocation22 + $0x90] sm:$0xff]
    %v2368 = vld [vmem:[#allocation22 + $0x98] sm:$0xff]
    %v2369 = vld [vmem:[#allocation22 + $0xa0] sm:$0xff]
    %v2370 = vld [vmem:[#allocation22 + $0xa8] sm:$0xff]
    %v2371 = vld [vmem:[#allocation22 + $0xb0] sm:$0xff]
    %v2372 = vld [vmem:[#allocation22 + $0xb8] sm:$0xff]
    %v2373 = vld [vmem:[#allocation22 + $0xc0] sm:$0xff]
    %v2374 = vld [vmem:[#allocation22 + $0xc8] sm:$0xff]
    %v2375 = vld [vmem:[#allocation22 + $0xd0] sm:$0xff]
    %v2376 = vld [vmem:[#allocation22 + $0xd8] sm:$0xff]
    %v2377 = vld [vmem:[#allocation22 + $0xe0] sm:$0xff]
    %v2378 = vld [vmem:[#allocation22 + $0xe8] sm:$0xff]
    %v2379 = vld [vmem:[#allocation22 + $0xf0] sm:$0xff]
    %v2380 = vld [vmem:[#allocation22 + $0xf8] sm:$0xff]
    %v2381 = vld [vmem:[#allocation23] sm:$0x7]
    %v2382 = vperm.slane %v2381, 0
    %2383 = vmatpush.msra.mxu0 %v2364
    %2384 = vmatpush.msra.mxu0 %v2363
    %2385 = vmatpush.msra.mxu0 %v2362
    %2386 = vmatpush.msra.mxu0 %v2361
    %2387 = vmatpush.msra.mxu0 %v2360
    %2388 = vmatpush.msra.mxu0 %v2359
    %2389 = vmatpush.msra.mxu0 %v2358
    %2390 = vmatpush.msra.mxu0 %v2357
    %2391 = vmatpush.msra.mxu0 %v2356
    %2392 = vmatpush.msra.mxu0 %v2355
    %2393 = vmatpush.msra.mxu0 %v2354
    %2394 = vmatpush.msra.mxu0 %v2353
    %2395 = vmatpush.msra.mxu0 %v2352
    %2396 = vmatpush.msra.mxu0 %v2351
    %2397 = vmatpush.msra.mxu0 %v2350
    %2398 = vmatpush.msra.mxu0 %v2349
    %2399 = vmatmul.f32.gmra.mxu0 %v2345
    %v2400 = vpop.f32.mrf.mxu0
    %v2401 = vadd.f32 %v2382, %v2400
    %2402 = vmatmul.f32.gmra.mxu0 %v2347
    %v2403 = vpop.f32.mrf.mxu0
    %v2404 = vadd.f32 %v2382, %v2403
    %2405 = vdwg.mxu0
    %2406 = vmatpush.msra.mxu0 %v2380
    %2407 = vmatpush.msra.mxu0 %v2379
    %2408 = vmatpush.msra.mxu0 %v2378
    %2409 = vmatpush.msra.mxu0 %v2377
    %2410 = vmatpush.msra.mxu0 %v2376
    %2411 = vmatpush.msra.mxu0 %v2375
    %2412 = vmatpush.msra.mxu0 %v2374
    %2413 = vmatpush.msra.mxu0 %v2373
    %2414 = vmatpush.msra.mxu0 %v2372
    %2415 = vmatpush.msra.mxu0 %v2371
    %2416 = vmatpush.msra.mxu0 %v2370
    %2417 = vmatpush.msra.mxu0 %v2369
    %2418 = vmatpush.msra.mxu0 %v2368
    %2419 = vmatpush.msra.mxu0 %v2367
    %2420 = vmatpush.msra.mxu0 %v2366
    %2421 = vmatpush.msra.mxu0 %v2365
    %2422 = vmatmul.f32.gmra.mxu0 %v2346
    %v2423 = vpop.f32.mrf.mxu0
    %v2424 = vadd.f32 %v2401, %v2423
    %2425 = vmatmul.f32.gmra.mxu0 %v2348
    %v2426 = vpop.f32.mrf.mxu0
    %v2427 = vadd.f32 %v2404, %v2426
    %2428 = vdwg.mxu0
    %vm2429 = vcmp.gt.f32.partialorder %v2424, 0.0
    %vm2430 = vcmp.gt.f32.partialorder %v2427, 0.0
    %v2431 = vmul.f32 %v2424, 0.01
    %v2432 = vmul.f32 %v2427, 0.01
    %v2433 = vsel %vm2429, %v2424, %v2431
    %v2434 = vsel %vm2430, %v2427, %v2432
    %v2435 = vadd.f32 %v2433, %v2434
    %v2436 = vrot.slane %v2435, 4
    %v2437 = vadd.f32 %v2435, %v2436
    %v2438 = vrot.slane %v2437, 2
    %v2439 = vadd.f32 %v2437, %v2438
    %v2440 = vrot.slane %v2439, 1
    %v2441 = vadd.f32 %v2439, %v2440
    %v2442 = vmul.f32 %v2441, %v576
    %v2443 = vsub.f32 %v2433, %v2442
    %v2444 = vsub.f32 %v2434, %v2442
    %v2445 = vmul.f32 %v2443, %v2443
    %v2446 = vmul.f32 %v2444, %v2444
    %v2447 = vadd.f32 %v2445, %v2446
    %v2448 = vrot.slane %v2447, 4
    %v2449 = vadd.f32 %v2447, %v2448
    %v2450 = vrot.slane %v2449, 2
    %v2451 = vadd.f32 %v2449, %v2450
    %v2452 = vrot.slane %v2451, 1
    %v2453 = vadd.f32 %v2451, %v2452
    %v2454 = vmul.f32 %v2453, %v576
    %v2455 = vadd.f32 %v2454, 1e-05
    %v2456 = vrsqrt.pop %v2455
    %v2457 = vmul.f32 %v2456, %v2455
    %v2458 = vmul.f32 %v2457, %v2456
    %v2459 = vmul.f32 0.5, %v2458
    %v2460 = vsub.f32 1.5, %v2459
    %v2461 = vmul.f32 %v2456, %v2460
    %vm2462 = vweird.f32 %v2455
    %vm2463 = vweird.f32 %v2456
    %vm2464 = vmor %vm2462, %vm2463
    %v2465 = vsel %vm2464, %v2456, %v2461
    %v2466 = vmul.f32 %v2465, %v2381
    %v2467 = vperm.slane %v2466, 1
    %v2468 = vmul.f32 %v2443, %v2467
    %v2469 = vmul.f32 %v2444, %v2467
    %v2470 = vperm.slane %v2381, 2
    %v2471 = vadd.f32 %v2468, %v2470
    %v2472 = vadd.f32 %v2469, %v2470
    %v2473 = vld [vmem:[#allocation25] sm:$0xff]
    %v2474 = vld [vmem:[#allocation25 + $0x8] sm:$0xff]
    %v2475 = vld [vmem:[#allocation25 + $0x10] sm:$0xff]
    %v2476 = vld [vmem:[#allocation25 + $0x18] sm:$0xff]
    %v2477 = vld [vmem:[#allocation25 + $0x20] sm:$0xff]
    %v2478 = vld [vmem:[#allocation25 + $0x28] sm:$0xff]
    %v2479 = vld [vmem:[#allocation25 + $0x30] sm:$0xff]
    %v2480 = vld [vmem:[#allocation25 + $0x38] sm:$0xff]
    %v2481 = vld [vmem:[#allocation25 + $0x40] sm:$0xff]
    %v2482 = vld [vmem:[#allocation25 + $0x48] sm:$0xff]
    %v2483 = vld [vmem:[#allocation25 + $0x50] sm:$0xff]
    %v2484 = vld [vmem:[#allocation25 + $0x58] sm:$0xff]
    %v2485 = vld [vmem:[#allocation25 + $0x60] sm:$0xff]
    %v2486 = vld [vmem:[#allocation25 + $0x68] sm:$0xff]
    %v2487 = vld [vmem:[#allocation25 + $0x70] sm:$0xff]
    %v2488 = vld [vmem:[#allocation25 + $0x78] sm:$0xff]
    %v2489 = vld [vmem:[#allocation26] sm:$0xff]
    %v2490 = vld [vmem:[#allocation26 + $0x8] sm:$0xff]
    %v2491 = vld [vmem:[#allocation26 + $0x10] sm:$0xff]
    %v2492 = vld [vmem:[#allocation26 + $0x18] sm:$0xff]
    %v2493 = vld [vmem:[#allocation26 + $0x20] sm:$0xff]
    %v2494 = vld [vmem:[#allocation26 + $0x28] sm:$0xff]
    %v2495 = vld [vmem:[#allocation26 + $0x30] sm:$0xff]
    %v2496 = vld [vmem:[#allocation26 + $0x38] sm:$0xff]
    %v2497 = vld [vmem:[#allocation26 + $0x40] sm:$0xff]
    %v2498 = vld [vmem:[#allocation26 + $0x48] sm:$0xff]
    %v2499 = vld [vmem:[#allocation26 + $0x50] sm:$0xff]
    %v2500 = vld [vmem:[#allocation26 + $0x58] sm:$0xff]
    %v2501 = vld [vmem:[#allocation26 + $0x60] sm:$0xff]
    %v2502 = vld [vmem:[#allocation26 + $0x68] sm:$0xff]
    %v2503 = vld [vmem:[#allocation26 + $0x70] sm:$0xff]
    %v2504 = vld [vmem:[#allocation26 + $0x78] sm:$0xff]
    %v2505 = vld [vmem:[#allocation26 + $0x80] sm:$0xff]
    %v2506 = vld [vmem:[#allocation26 + $0x88] sm:$0xff]
    %v2507 = vld [vmem:[#allocation26 + $0x90] sm:$0xff]
    %v2508 = vld [vmem:[#allocation26 + $0x98] sm:$0xff]
    %v2509 = vld [vmem:[#allocation26 + $0xa0] sm:$0xff]
    %v2510 = vld [vmem:[#allocation26 + $0xa8] sm:$0xff]
    %v2511 = vld [vmem:[#allocation26 + $0xb0] sm:$0xff]
    %v2512 = vld [vmem:[#allocation26 + $0xb8] sm:$0xff]
    %v2513 = vld [vmem:[#allocation26 + $0xc0] sm:$0xff]
    %v2514 = vld [vmem:[#allocation26 + $0xc8] sm:$0xff]
    %v2515 = vld [vmem:[#allocation26 + $0xd0] sm:$0xff]
    %v2516 = vld [vmem:[#allocation26 + $0xd8] sm:$0xff]
    %v2517 = vld [vmem:[#allocation26 + $0xe0] sm:$0xff]
    %v2518 = vld [vmem:[#allocation26 + $0xe8] sm:$0xff]
    %v2519 = vld [vmem:[#allocation26 + $0xf0] sm:$0xff]
    %v2520 = vld [vmem:[#allocation26 + $0xf8] sm:$0xff]
    %2521 = vmatpush.msra.mxu0 %v2504
    %2522 = vmatpush.msra.mxu0 %v2503
    %2523 = vmatpush.msra.mxu0 %v2502
    %2524 = vmatpush.msra.mxu0 %v2501
    %2525 = vmatpush.msra.mxu0 %v2500
    %2526 = vmatpush.msra.mxu0 %v2499
    %2527 = vmatpush.msra.mxu0 %v2498
    %2528 = vmatpush.msra.mxu0 %v2497
    %2529 = vmatpush.msra.mxu0 %v2496
    %2530 = vmatpush.msra.mxu0 %v2495
    %2531 = vmatpush.msra.mxu0 %v2494
    %2532 = vmatpush.msra.mxu0 %v2493
    %2533 = vmatpush.msra.mxu0 %v2492
    %2534 = vmatpush.msra.mxu0 %v2491
    %2535 = vmatpush.msra.mxu0 %v2490
    %2536 = vmatpush.msra.mxu0 %v2489
    %2537 = vmatmul.f32.gmra.mxu0 %v871
    %v2538 = vpop.f32.mrf.mxu0
    %v2539 = vadd.f32 0.0, %v2538
    %2540 = vmatmul.f32.gmra.mxu0 %v873
    %v2541 = vpop.f32.mrf.mxu0
    %v2542 = vadd.f32 0.0, %v2541
    %2543 = vdwg.mxu0
    %2544 = vmatpush.msra.mxu0 %v2520
    %2545 = vmatpush.msra.mxu0 %v2519
    %2546 = vmatpush.msra.mxu0 %v2518
    %2547 = vmatpush.msra.mxu0 %v2517
    %2548 = vmatpush.msra.mxu0 %v2516
    %2549 = vmatpush.msra.mxu0 %v2515
    %2550 = vmatpush.msra.mxu0 %v2514
    %2551 = vmatpush.msra.mxu0 %v2513
    %2552 = vmatpush.msra.mxu0 %v2512
    %2553 = vmatpush.msra.mxu0 %v2511
    %2554 = vmatpush.msra.mxu0 %v2510
    %2555 = vmatpush.msra.mxu0 %v2509
    %2556 = vmatpush.msra.mxu0 %v2508
    %2557 = vmatpush.msra.mxu0 %v2507
    %2558 = vmatpush.msra.mxu0 %v2506
    %2559 = vmatpush.msra.mxu0 %v2505
    %2560 = vmatmul.f32.gmra.mxu0 %v872
    %v2561 = vpop.f32.mrf.mxu0
    %v2562 = vadd.f32 %v2539, %v2561
    %2563 = vmatmul.f32.gmra.mxu0 %v874
    %v2564 = vpop.f32.mrf.mxu0
    %v2565 = vadd.f32 %v2542, %v2564
    %2566 = vdwg.mxu0
    %2567 = vmatpush.msra.mxu0 %v2488
    %2568 = vmatpush.msra.mxu0 %v2487
    %2569 = vmatpush.msra.mxu0 %v2486
    %2570 = vmatpush.msra.mxu0 %v2485
    %2571 = vmatpush.msra.mxu0 %v2484
    %2572 = vmatpush.msra.mxu0 %v2483
    %2573 = vmatpush.msra.mxu0 %v2482
    %2574 = vmatpush.msra.mxu0 %v2481
    %2575 = vmatpush.msra.mxu0 %v2480
    %2576 = vmatpush.msra.mxu0 %v2479
    %2577 = vmatpush.msra.mxu0 %v2478
    %2578 = vmatpush.msra.mxu0 %v2477
    %2579 = vmatpush.msra.mxu0 %v2476
    %2580 = vmatpush.msra.mxu0 %v2475
    %2581 = vmatpush.msra.mxu0 %v2474
    %2582 = vmatpush.msra.mxu0 %v2473
    %2583 = vmatmul.f32.gmra.mxu0 %v2471
    %v2584 = vpop.f32.mrf.mxu0
    %v2585 = vadd.f32 %v2562, %v2584
    %2586 = vmatmul.f32.gmra.mxu0 %v2472
    %v2587 = vpop.f32.mrf.mxu0
    %v2588 = vadd.f32 %v2565, %v2587
    %2589 = vdwg.mxu0
    %v2590 = vld [vmem:[#allocation28] sm:$0x7]
    %v2591 = vperm.slane %v2590, 0
    %v2592 = vadd.f32 %v2585, %v2591
    %v2593 = vadd.f32 %v2588, %v2591
    %vm2594 = vcmp.gt.f32.partialorder %v2592, 0.0
    %vm2595 = vcmp.gt.f32.partialorder %v2593, 0.0
    %v2596 = vmul.f32 %v2592, 0.01
    %v2597 = vmul.f32 %v2593, 0.01
    %v2598 = vsel %vm2594, %v2592, %v2596
    %v2599 = vsel %vm2595, %v2593, %v2597
    %v2600 = vadd.f32 %v2598, %v2599
    %v2601 = vrot.slane %v2600, 4
    %v2602 = vadd.f32 %v2600, %v2601
    %v2603 = vrot.slane %v2602, 2
    %v2604 = vadd.f32 %v2602, %v2603
    %v2605 = vrot.slane %v2604, 1
    %v2606 = vadd.f32 %v2604, %v2605
    %v2607 = vmul.f32 %v2606, %v576
    %v2608 = vsub.f32 %v2598, %v2607
    %v2609 = vsub.f32 %v2599, %v2607
    %v2610 = vmul.f32 %v2608, %v2608
    %v2611 = vmul.f32 %v2609, %v2609
    %v2612 = vadd.f32 %v2610, %v2611
    %v2613 = vrot.slane %v2612, 4
    %v2614 = vadd.f32 %v2612, %v2613
    %v2615 = vrot.slane %v2614, 2
    %v2616 = vadd.f32 %v2614, %v2615
    %v2617 = vrot.slane %v2616, 1
    %v2618 = vadd.f32 %v2616, %v2617
    %v2619 = vmul.f32 %v2618, %v576
    %v2620 = vadd.f32 %v2619, 1e-05
    %v2621 = vrsqrt.pop %v2620
    %v2622 = vmul.f32 %v2621, %v2620
    %v2623 = vmul.f32 %v2622, %v2621
    %v2624 = vmul.f32 0.5, %v2623
    %v2625 = vsub.f32 1.5, %v2624
    %v2626 = vmul.f32 %v2621, %v2625
    %vm2627 = vweird.f32 %v2620
    %vm2628 = vweird.f32 %v2621
    %vm2629 = vmor %vm2627, %vm2628
    %v2630 = vsel %vm2629, %v2621, %v2626
    %v2631 = vmul.f32 %v2630, %v2590
    %v2632 = vperm.slane %v2631, 1
    %v2633 = vmul.f32 %v2608, %v2632
    %v2634 = vmul.f32 %v2609, %v2632
    %v2635 = vperm.slane %v2590, 2
    %v2636 = vadd.f32 %v2633, %v2635
    %v2637 = vadd.f32 %v2634, %v2635
    %v2638 = vld [vmem:[%s53] sm:$0xff]
    %v2639 = vld [vmem:[%s53 + $0x8] sm:$0xff]
    %v2640 = vld [vmem:[%s53 + $0x10] sm:$0xff]
    %v2641 = vld [vmem:[%s53 + $0x18] sm:$0xff]
    %v2642 = vld [vmem:[%s53 + $0x20] sm:$0xff]
    %v2643 = vld [vmem:[%s53 + $0x28] sm:$0xff]
    %v2644 = vld [vmem:[%s53 + $0x30] sm:$0xff]
    %v2645 = vld [vmem:[%s53 + $0x38] sm:$0xff]
    %v2646 = vld [vmem:[%s53 + $0x40] sm:$0xff]
    %v2647 = vld [vmem:[%s53 + $0x48] sm:$0xff]
    %v2648 = vld [vmem:[%s53 + $0x50] sm:$0xff]
    %v2649 = vld [vmem:[%s53 + $0x58] sm:$0xff]
    %v2650 = vld [vmem:[%s53 + $0x60] sm:$0xff]
    %v2651 = vld [vmem:[%s53 + $0x68] sm:$0xff]
    %v2652 = vld [vmem:[%s53 + $0x70] sm:$0xff]
    %v2653 = vld [vmem:[%s53 + $0x78] sm:$0xff]
    %v2654 = vld [vmem:[#allocation29] sm:$0x7]
    %v2655 = vperm.slane %v2654, 0
    %2656 = vmatpush.msra.mxu0 %v2653
    %2657 = vmatpush.msra.mxu0 %v2652
    %2658 = vmatpush.msra.mxu0 %v2651
    %2659 = vmatpush.msra.mxu0 %v2650
    %2660 = vmatpush.msra.mxu0 %v2649
    %2661 = vmatpush.msra.mxu0 %v2648
    %2662 = vmatpush.msra.mxu0 %v2647
    %2663 = vmatpush.msra.mxu0 %v2646
    %2664 = vmatpush.msra.mxu0 %v2645
    %2665 = vmatpush.msra.mxu0 %v2644
    %2666 = vmatpush.msra.mxu0 %v2643
    %2667 = vmatpush.msra.mxu0 %v2642
    %2668 = vmatpush.msra.mxu0 %v2641
    %2669 = vmatpush.msra.mxu0 %v2640
    %2670 = vmatpush.msra.mxu0 %v2639
    %2671 = vmatpush.msra.mxu0 %v2638
    %2672 = vmatmul.f32.gmra.mxu0 %v2636
    %v2673 = vpop.f32.mrf.mxu0
    %v2674 = vadd.f32 %v2655, %v2673
    %2675 = vmatmul.f32.gmra.mxu0 %v2637
    %v2676 = vpop.f32.mrf.mxu0
    %v2677 = vadd.f32 %v2655, %v2676
    %2678 = vdwg.mxu0
    %vm2679 = vcmp.gt.f32.partialorder %v2674, 0.0
    %vm2680 = vcmp.gt.f32.partialorder %v2677, 0.0
    %v2681 = vmul.f32 %v2674, 0.01
    %v2682 = vmul.f32 %v2677, 0.01
    %v2683 = vsel %vm2679, %v2674, %v2681
    %v2684 = vsel %vm2680, %v2677, %v2682
    %v2685 = vsel %vm560, %v2683, 0.0
    %v2686 = vsel %vm560, %v2684, 0.0
    %v2687 = vadd.f32 %v2685, %v2686
    %v2688 = vrot.slane %v2687, 4
    %v2689 = vadd.f32 %v2687, %v2688
    %v2690 = vrot.slane %v2689, 2
    %v2691 = vadd.f32 %v2689, %v2690
    %v2692 = vrot.slane %v2691, 1
    %v2693 = vadd.f32 %v2691, %v2692
    %v2694 = vmul.f32 %v2693, %v576
    %v2695 = vsub.f32 %v2683, %v2694
    %v2696 = vsub.f32 %v2684, %v2694
    %v2697 = vmul.f32 %v2695, %v2695
    %v2698 = vmul.f32 %v2696, %v2696
    %v2699 = vsel %vm560, %v2697, 0.0
    %v2700 = vsel %vm560, %v2698, 0.0
    %v2701 = vadd.f32 %v2699, %v2700
    %v2702 = vrot.slane %v2701, 4
    %v2703 = vadd.f32 %v2701, %v2702
    %v2704 = vrot.slane %v2703, 2
    %v2705 = vadd.f32 %v2703, %v2704
    %v2706 = vrot.slane %v2705, 1
    %v2707 = vadd.f32 %v2705, %v2706
    %v2708 = vmul.f32 %v2707, %v576
    %v2709 = vadd.f32 %v2708, 1e-05
    %v2710 = vrsqrt.pop %v2709
    %v2711 = vmul.f32 %v2710, %v2709
    %v2712 = vmul.f32 %v2711, %v2710
    %v2713 = vmul.f32 0.5, %v2712
    %v2714 = vsub.f32 1.5, %v2713
    %v2715 = vmul.f32 %v2710, %v2714
    %vm2716 = vweird.f32 %v2709
    %vm2717 = vweird.f32 %v2710
    %vm2718 = vmor %vm2716, %vm2717
    %v2719 = vsel %vm2718, %v2710, %v2715
    %v2720 = vmul.f32 %v2719, %v2654
    %v2721 = vperm.slane %v2720, 1
    %v2722 = vmul.f32 %v2695, %v2721
    %v2723 = vmul.f32 %v2696, %v2721
    %v2724 = vperm.slane %v2654, 2
    %v2725 = vadd.f32 %v2722, %v2724
    %v2726 = vadd.f32 %v2723, %v2724
    %v2727 = vld [vmem:[#allocation31] sm:$0xff]
    %v2728 = vld [vmem:[#allocation31 + $0x8] sm:$0xff]
    %v2729 = vld [vmem:[#allocation31 + $0x10] sm:$0xff]
    %v2730 = vld [vmem:[#allocation31 + $0x18] sm:$0xff]
    %v2731 = vld [vmem:[#allocation31 + $0x20] sm:$0xff]
    %v2732 = vld [vmem:[#allocation31 + $0x28] sm:$0xff]
    %v2733 = vld [vmem:[#allocation31 + $0x30] sm:$0xff]
    %v2734 = vld [vmem:[#allocation31 + $0x38] sm:$0xff]
    %v2735 = vld [vmem:[%s59] sm:$0xff]
    %v2736 = vld [vmem:[%s59 + $0x8] sm:$0xff]
    %v2737 = vld [vmem:[%s59 + $0x10] sm:$0xff]
    %v2738 = vld [vmem:[%s59 + $0x18] sm:$0xff]
    %v2739 = vld [vmem:[%s59 + $0x20] sm:$0xff]
    %v2740 = vld [vmem:[%s59 + $0x28] sm:$0xff]
    %v2741 = vld [vmem:[%s59 + $0x30] sm:$0xff]
    %v2742 = vld [vmem:[%s59 + $0x38] sm:$0xff]
    %v2743 = vld [vmem:[%s59 + $0x40] sm:$0xff]
    %v2744 = vld [vmem:[%s59 + $0x48] sm:$0xff]
    %v2745 = vld [vmem:[%s59 + $0x50] sm:$0xff]
    %v2746 = vld [vmem:[%s59 + $0x58] sm:$0xff]
    %v2747 = vld [vmem:[%s59 + $0x60] sm:$0xff]
    %v2748 = vld [vmem:[%s59 + $0x68] sm:$0xff]
    %v2749 = vld [vmem:[%s59 + $0x70] sm:$0xff]
    %v2750 = vld [vmem:[%s59 + $0x78] sm:$0xff]
    %2751 = vmatpush.msra.mxu0 %v2750
    %2752 = vmatpush.msra.mxu0 %v2749
    %2753 = vmatpush.msra.mxu0 %v2748
    %2754 = vmatpush.msra.mxu0 %v2747
    %2755 = vmatpush.msra.mxu0 %v2746
    %2756 = vmatpush.msra.mxu0 %v2745
    %2757 = vmatpush.msra.mxu0 %v2744
    %2758 = vmatpush.msra.mxu0 %v2743
    %2759 = vmatpush.msra.mxu0 %v2742
    %2760 = vmatpush.msra.mxu0 %v2741
    %2761 = vmatpush.msra.mxu0 %v2740
    %2762 = vmatpush.msra.mxu0 %v2739
    %2763 = vmatpush.msra.mxu0 %v2738
    %2764 = vmatpush.msra.mxu0 %v2737
    %2765 = vmatpush.msra.mxu0 %v2736
    %2766 = vmatpush.msra.mxu0 %v2735
    %2767 = vmatmul.f32.gmra.mxu0 %v691
    %v2768 = vpop.f32.mrf.mxu0
    %v2769 = vadd.f32 0.0, %v2768
    %2770 = vmatmul.f32.gmra.mxu0 %v692
    %v2771 = vpop.f32.mrf.mxu0
    %v2772 = vadd.f32 0.0, %v2771
    %2773 = vdwg.mxu0
    %v2775 = vsel %vm560, %v2725, 0
    %v2778 = vsel %vm560, %v2726, 0
    %2780 = vmatpush.msra.mxu0 0.0
    %2781 = vmatpush.msra.mxu0 0.0
    %2782 = vmatpush.msra.mxu0 0.0
    %2783 = vmatpush.msra.mxu0 0.0
    %2784 = vmatpush.msra.mxu0 0.0
    %2785 = vmatpush.msra.mxu0 0.0
    %2786 = vmatpush.msra.mxu0 0.0
    %2787 = vmatpush.msra.mxu0 0.0
    %2788 = vmatpush.msra.mxu0 %v2734
    %2789 = vmatpush.msra.mxu0 %v2733
    %2790 = vmatpush.msra.mxu0 %v2732
    %2791 = vmatpush.msra.mxu0 %v2731
    %2792 = vmatpush.msra.mxu0 %v2730
    %2793 = vmatpush.msra.mxu0 %v2729
    %2794 = vmatpush.msra.mxu0 %v2728
    %2795 = vmatpush.msra.mxu0 %v2727
    %2796 = vmatmul.f32.gmra.mxu0 %v2775
    %v2797 = vpop.f32.mrf.mxu0
    %v2798 = vadd.f32 %v2769, %v2797
    %2799 = vmatmul.f32.gmra.mxu0 %v2778
    %v2800 = vpop.f32.mrf.mxu0
    %v2801 = vadd.f32 %v2772, %v2800
    %2802 = vdwg.mxu0
    %v2803 = vld [vmem:[%s61] sm:$0x7]
    %v2804 = vperm.slane %v2803, 0
    %v2805 = vadd.f32 %v2798, %v2804
    %v2806 = vadd.f32 %v2801, %v2804
    %vm2807 = vcmp.gt.f32.partialorder %v2805, 0.0
    %vm2808 = vcmp.gt.f32.partialorder %v2806, 0.0
    %v2809 = vmul.f32 %v2805, 0.01
    %v2810 = vmul.f32 %v2806, 0.01
    %v2811 = vsel %vm2807, %v2805, %v2809
    %v2812 = vsel %vm2808, %v2806, %v2810
    %v2813 = vsel %vm560, %v2811, 0.0
    %v2814 = vsel %vm560, %v2812, 0.0
    %v2815 = vadd.f32 %v2813, %v2814
    %v2816 = vrot.slane %v2815, 4
    %v2817 = vadd.f32 %v2815, %v2816
    %v2818 = vrot.slane %v2817, 2
    %v2819 = vadd.f32 %v2817, %v2818
    %v2820 = vrot.slane %v2819, 1
    %v2821 = vadd.f32 %v2819, %v2820
    %v2822 = vmul.f32 %v2821, %v576
    %v2823 = vsub.f32 %v2811, %v2822
    %v2824 = vsub.f32 %v2812, %v2822
    %v2825 = vmul.f32 %v2823, %v2823
    %v2826 = vmul.f32 %v2824, %v2824
    %v2827 = vsel %vm560, %v2825, 0.0
    %v2828 = vsel %vm560, %v2826, 0.0
    %v2829 = vadd.f32 %v2827, %v2828
    %v2830 = vrot.slane %v2829, 4
    %v2831 = vadd.f32 %v2829, %v2830
    %v2832 = vrot.slane %v2831, 2
    %v2833 = vadd.f32 %v2831, %v2832
    %v2834 = vrot.slane %v2833, 1
    %v2835 = vadd.f32 %v2833, %v2834
    %v2836 = vmul.f32 %v2835, %v576
    %v2837 = vadd.f32 %v2836, 1e-05
    %v2838 = vrsqrt.pop %v2837
    %v2839 = vmul.f32 %v2838, %v2837
    %v2840 = vmul.f32 %v2839, %v2838
    %v2841 = vmul.f32 0.5, %v2840
    %v2842 = vsub.f32 1.5, %v2841
    %v2843 = vmul.f32 %v2838, %v2842
    %vm2844 = vweird.f32 %v2837
    %vm2845 = vweird.f32 %v2838
    %vm2846 = vmor %vm2844, %vm2845
    %v2847 = vsel %vm2846, %v2838, %v2843
    %v2848 = vmul.f32 %v2847, %v2803
    %v2849 = vperm.slane %v2848, 1
    %v2850 = vmul.f32 %v2823, %v2849
    %v2851 = vmul.f32 %v2824, %v2849
    %v2852 = vperm.slane %v2803, 2
    %v2853 = vadd.f32 %v2850, %v2852
    %v2854 = vadd.f32 %v2851, %v2852
    %v2855 = vld [vmem:[%s63] sm:$0xff]
    %v2856 = vld [vmem:[%s63 + $0x8] sm:$0xff]
    %v2857 = vld [vmem:[%s63 + $0x10] sm:$0xff]
    %v2858 = vld [vmem:[%s63 + $0x18] sm:$0xff]
    %v2859 = vld [vmem:[%s63 + $0x20] sm:$0xff]
    %v2860 = vld [vmem:[%s63 + $0x28] sm:$0xff]
    %v2861 = vld [vmem:[%s63 + $0x30] sm:$0xff]
    %v2862 = vld [vmem:[%s63 + $0x38] sm:$0xff]
    %v2863 = vld [vmem:[%s65] sm:$0x1]
    %v2865 = vperm.slane %v2863, 0
    %v2868 = vsel %vm560, %v2853, 0
    %v2871 = vsel %vm560, %v2854, 0
    %2873 = vmatpush.msra.mxu0 0.0
    %2874 = vmatpush.msra.mxu0 0.0
    %2875 = vmatpush.msra.mxu0 0.0
    %2876 = vmatpush.msra.mxu0 0.0
    %2877 = vmatpush.msra.mxu0 0.0
    %2878 = vmatpush.msra.mxu0 0.0
    %2879 = vmatpush.msra.mxu0 0.0
    %2880 = vmatpush.msra.mxu0 0.0
    %2881 = vmatpush.msra.mxu0 %v2862
    %2882 = vmatpush.msra.mxu0 %v2861
    %2883 = vmatpush.msra.mxu0 %v2860
    %2884 = vmatpush.msra.mxu0 %v2859
    %2885 = vmatpush.msra.mxu0 %v2858
    %2886 = vmatpush.msra.mxu0 %v2857
    %2887 = vmatpush.msra.mxu0 %v2856
    %2888 = vmatpush.msra.mxu0 %v2855
    %2889 = vmatmul.f32.gmra.mxu0 %v2868
    %v2890 = vpop.f32.mrf.mxu0
    %v2891 = vadd.f32 %v2865, %v2890
    %2892 = vmatmul.f32.gmra.mxu0 %v2871
    %v2893 = vpop.f32.mrf.mxu0
    %v2894 = vadd.f32 %v2865, %v2893
    %2895 = vdwg.mxu0
    %v2896 = vtanh.pop %v2891
    %v2897 = vtanh.pop %v2894
    %v2898 = vsub.f32 %v2896, %v422
    %v2899 = vsub.f32 %v2897, %v423
    %v2900 = vmul.f32 %v2898, %v2898
    %v2901 = vmul.f32 %v2899, %v2899
    %2902 = vset.pattern.permute.xlu0 3
    %2903 = vperm.xlu0 %2902, %v420
    %v2904 = vpop.permute.xlu0 %2903
    %2906 = vset.pattern.permute.xlu0 3
    %2907 = vperm.xlu0 %2906, %v421
    %v2908 = vpop.permute.xlu0 %2907
    %v2910 = vmul.f32 %v2900, %v2904
    %v2911 = vmul.f32 %v2901, %v2908
    %v2912 = vsel %vm501, %v2910, 0.0
    %v2913 = vsel %vm501, %v2911, 0.0
    %v2914 = vadd.f32 %v2912, %v2913
    %2915 = vadd.xlane.f32.xlu0 %v2914
    %v2916 = vpop.xlane.xlu0 %2915
    %v2917 = vrot.slane %v2916, 4
    %v2918 = vadd.f32 %v2916, %v2917
    %v2919 = vrot.slane %v2918, 2
    %v2920 = vadd.f32 %v2918, %v2919
    %v2921 = vrot.slane %v2920, 1
    %v2922 = vadd.f32 %v2920, %v2921
    %s2923 = vtos %v2922
    %2924 = vrot.lane.b32.xlu0 %v420, 125
    %v2925 = vpop.permute.xlu0 %2924
    %2926 = vrot.lane.b32.xlu0 %v421, 125
    %v2927 = vpop.permute.xlu0 %2926
    %vm2930 = vcmask 7168
    %v2931 = vsel %vm2930, %v2925, 0.0
    %v2932 = vsel %vm2930, %v2927, 0.0
    %v2933 = vadd.f32 %v2931, %v2932
    %2934 = vadd.xlane.f32.xlu0 %v2933
    %v2935 = vpop.xlane.xlu0 %2934
    %v2936 = vrot.slane %v2935, 4
    %v2937 = vadd.f32 %v2935, %v2936
    %v2938 = vrot.slane %v2937, 2
    %v2939 = vadd.f32 %v2937, %v2938
    %v2940 = vrot.slane %v2939, 1
    %v2941 = vadd.f32 %v2939, %v2940
    %s2942 = vtos %v2941
    %s2943 = smul.f32 %s2942, 50.0
    %v2944 = vstv %s2943
    %v2945 = vrcp.pop %v2944
    %v2946 = vmul.f32 %v2944, %v2945
    %v2947 = vsub.f32 1.0, %v2946
    %v2948 = vmul.f32 %v2945, %v2947
    %v2949 = vadd.f32 %v2945, %v2948
    %vm2950 = vweird.f32 %v2944
    %vm2951 = vweird.f32 %v2945
    %vm2952 = vmor %vm2950, %vm2951
    %v2953 = vsel %vm2952, %v2945, %v2949
    %v2954 = vand.u32 2147483647, %v2944
    %vm2955 = vcmp.eq.f32.partialorder %v2954, 8.507059e+37
    %v2956 = vand.u32 %v2944, 2147483648
    %v2957 = vor.u32 1.1754944e-38, %v2956
    %v2958 = vsel %vm2955, %v2957, %v2953
    %s2959 = vtos %v2958
    %s2960 = smul.f32 %s2923, %s2959
    %s2961 = scalar_lea.smem [#allocation32], 0
    %2962 = sst [smem:[%s2961]] %s2960
    // Predicated region
    $region210: #{tpu_custom_call.1} parent=1 // pred_check
      _
    $region211: #{tpu_custom_call.1} parent=1 // pred_check_branch
      %2964 = sbr.rel (0) target = $region213
    $region212: #{tpu_custom_call.1} parent=1 // pred_region
      %2966 = vsyncadd [#allocation4], 0
      %s2968 = sshll.u32 %s67, 4
      %s2969 = int_to_ptr.hbm [resolvable:$true] %s2968
      %2971 = dma.smem_to_hbm [#allocation32], 16, %s2969, [#allocation4]
    $region213: #{tpu_custom_call.1} parent=1 // pred_fallthru
      _
    // Predicated region
    $region214: #{tpu_custom_call.1} parent=1 // pred_check
      _
    $region215: #{tpu_custom_call.1} parent=1 // pred_check_branch
      %2973 = sbr.rel (0) target = $region217
    $region216: #{tpu_custom_call.1} parent=1 // pred_region
      %2975 = dma.done [#allocation4], 16
    $region217: #{tpu_custom_call.1} parent=1 // pred_fallthru
      _
    %2976 = sfence
    %2977 = vsyncpa [#allocation3], 1
    %2978 = vsyncpa [#allocation6], 1
    %2979 = vsyncpa [#allocation9], 1
    %2980 = vsyncpa [#allocation12], 1
    %2981 = vsyncpa [#allocation15], 1
    %2982 = vsyncpa [#allocation18], 1
    %2983 = vsyncpa [#allocation21], 1
    %2984 = vsyncpa [#allocation24], 1
    %2985 = vsyncpa [#allocation27], 1
    %2986 = vsyncpa [#allocation30], 1
    %2987 = vsyncpa [#allocation4], 1

</llo_original>
